<compile_context>
chip_gen: v6e
topology: v6e:2x2x1
jax: 0.10.0
libtpu: 0.0.40
codegen_flags: <defaults>
</compile_context>

<pallas_src>
import functools

import jax
import jax.numpy as jnp
from jax.experimental import pallas as pl
from jax.experimental.pallas import tpu as pltpu

N_HEADS = 4          # LoFTR default is 8; 4 divides the small test channels
N_LAYERS = 2         # n_layer of the PyTorch module
LN_EPS = 1e-5
# bf16 matmul inputs (MXU rate, half the weight DMA/VMEM); f32 accumulation.
MATMUL_DTYPE = jnp.bfloat16
WEIGHT_DTYPE = jnp.bfloat16


def _mm(a, b):
    return jnp.dot(a.astype(MATMUL_DTYPE), b.astype(MATMUL_DTYPE),
                   preferred_element_type=jnp.float32)


def _qkt(q, k):
    # q (S, D) . k (L, D)^T -> (S, L) without materializing the transpose
    return jax.lax.dot_general(
        q.astype(MATMUL_DTYPE), k.astype(MATMUL_DTYPE),
        dimension_numbers=(((1,), (1,)), ((), ())),
        preferred_element_type=jnp.float32)


def _layernorm(x, g, b):
    mu = jnp.mean(x, axis=-1, keepdims=True)
    var = jnp.mean((x - mu) ** 2, axis=-1, keepdims=True)
    return (x - mu) * jax.lax.rsqrt(var + LN_EPS) * g + b


# --------------------------------------------------------------------------
# Single fused kernel per channel group:
#   fl    = relu(Linear2(Linear1(x)))          (stays in VMEM)
#   x_out = x + fl
#   y_out = N_LAYERS x LoFTR cross-attention layers of (y <- attn(y, fl))
# Grid iterates the batch (parallel -> shards over v7x's 2 TensorCores).
# --------------------------------------------------------------------------
def _fused_scale_kernel(x_ref, y_ref,
                        lw_ref, lb_ref,
                        wq_ref, wkv_ref, wm_ref,
                        w1a_ref, w1b_ref, w2_ref,
                        ln_ref,
                        xo_ref, yo_ref, *, nhead, n_layers):
    x = x_ref[0].astype(jnp.float32)                       # (L, C)
    y = y_ref[0].astype(jnp.float32)                       # (S, C)
    C = x.shape[-1]
    D = C // nhead

    # ---- feature learner + residual (fl never leaves VMEM) ----
    h = _mm(x, lw_ref[0]) + lb_ref[0:1, :]
    h = _mm(h, lw_ref[1]) + lb_ref[1:2, :]
    fl = jnp.maximum(h, 0.0)                               # (L, C)
    xo_ref[0] = (x + fl).astype(xo_ref.dtype)

    fused = y
    for l in range(n_layers):                              # static unroll
        # 1/sqrt(D) temperature is folded into wq at init.
        q = _mm(fused, wq_ref[l])                          # (S, C)
        kv = _mm(fl, wkv_ref[l])                           # (L, 2C) = [k | v]

        # Per-head scores/softmax (contraction depth D is inherent to
        # attention); head outputs are concatenated once and merged with a
        # SINGLE (S,C)@(C,C) matmul (contraction C).
        heads = []
        for hh in range(nhead):
            qh = q[:, hh * D:(hh + 1) * D]                 # (S, D)
            kh = kv[:, hh * D:(hh + 1) * D]                # (L, D)
            vh = kv[:, C + hh * D:C + (hh + 1) * D]        # (L, D)
            sc = _qkt(qh, kh)                              # (S, L) f32
            sc = sc - jnp.max(sc, axis=-1, keepdims=True)
            p = jnp.exp(sc)
            p = p / jnp.sum(p, axis=-1, keepdims=True)     # exact softmax
            heads.append(_mm(p, vh))                       # (S, D)
        o = jnp.concatenate(heads, axis=-1)                # (S, C)
        merged = _mm(o, wm_ref[l])                         # (S, C), K = C

        lnl = ln_ref[l]                                    # (4, C) f32
        msg = _layernorm(merged, lnl[0:1, :], lnl[1:2, :])

        # concat-free MLP: cat([y, msg]) @ W1 == y @ W1a + msg @ W1b
        h1 = _mm(fused, w1a_ref[l]) + _mm(msg, w1b_ref[l])
        h1 = jnp.maximum(h1, 0.0)
        msg2 = _mm(h1, w2_ref[l])
        msg2 = _layernorm(msg2, lnl[2:3, :], lnl[3:4, :])
        fused = fused + msg2

    yo_ref[0] = fused.astype(yo_ref.dtype)


def _const_spec(a):
    """Full-array block, constant index_map (weights).  Single-buffered when
    the running JAX supports pipeline_mode (no point double-buffering data
    that is never re-fetched)."""
    nd = a.ndim

    def idx(i, _nd=nd):
        return (0,) * _nd

    if hasattr(pl, "Buffered"):
        try:
            return pl.BlockSpec(a.shape, idx, pipeline_mode=pl.Buffered(1))
        except Exception:  # older BlockSpec without pipeline_mode
            pass
    return pl.BlockSpec(a.shape, idx)


def fused_scale_forward(x, y, p):
    N, L, C = x.shape
    _, S, _ = y.shape
    x_spec = pl.BlockSpec((1, L, C), lambda i: (i, 0, 0))
    y_spec = pl.BlockSpec((1, S, C), lambda i: (i, 0, 0))
    weights = (p["learner_w"], p["learner_b"],
               p["wq"], p["wkv"], p["wm"],
               p["wmlp1a"], p["wmlp1b"], p["wmlp2"],
               p["ln"])
    n_layers = p["wq"].shape[0]
    xo, yo = pl.pallas_call(
        functools.partial(_fused_scale_kernel, nhead=N_HEADS, n_layers=n_layers),
        out_shape=(jax.ShapeDtypeStruct((N, L, C), x.dtype),
                   jax.ShapeDtypeStruct((N, S, C), y.dtype)),
        grid=(N,),
        in_specs=[x_spec, y_spec] + [_const_spec(w) for w in weights],
        out_specs=(x_spec, y_spec),
        compiler_params=pltpu.CompilerParams(
            dimension_semantics=("parallel",),
            # Explicit scoped-VMEM budget (default is only 16 MiB on v5e);
            # resize alongside block sizes when tiling for v7x's 64 MiB VMEM.
            vmem_limit_bytes=32 * 1024 * 1024),
    )(x, y, *weights)
    return xo, yo


# --------------------------------------------------------------------------
# Full module forward (return_class_token=False path)
# --------------------------------------------------------------------------
def attention_fusion_forward(xs, ys, params):
    assert len(xs) == len(ys) == len(params)
    xs_out, ys_out = [], []
    for x, y, p in zip(xs, ys, params):
        xo, yo = fused_scale_forward(x, y, p)
        xs_out.append(xo)
        ys_out.append(yo)
    return tuple(xs_out), tuple(ys_out)


# --------------------------------------------------------------------------
# Deterministic parameter init (synthetic weights, no checkpoint).
# Weights are pre-packed ONCE host-side: per-layer stacks, k/v fused into one
# (C, 2C) matrix, MLP W1 split into its [y | msg] halves, 1/sqrt(D) folded
# into Wq, matmul weights stored bf16, and all tiny LN/bias vectors packed
# into two stacked f32 arrays.
# --------------------------------------------------------------------------
def init_params(key, in_channels, n_layer=N_LAYERS, nhead=N_HEADS):
    params = []
    for C in in_channels:
        D = C // nhead
        sc = 1.0 / (C ** 0.5)
        sc2 = 1.0 / ((2 * C) ** 0.5)
        temp = 1.0 / (D ** 0.5)

        def stack(k, shape, scale):
            ks = jax.random.split(k, n_layer)
            return jnp.stack(
                [jax.random.normal(kk, shape, jnp.float32) * scale for kk in ks])

        key, k1, k2, k3, k4 = jax.random.split(key, 5)
        key, kq, kk_, kv_, km, km1, km2 = jax.random.split(key, 7)
        key, kg1, kb1, kg2, kb2 = jax.random.split(key, 5)

        lw1 = jax.random.normal(k1, (C, C), jnp.float32) * sc
        lb1 = jax.random.normal(k2, (C,), jnp.float32) * 0.01
        lw2 = jax.random.normal(k3, (C, C), jnp.float32) * sc
        lb2 = jax.random.normal(k4, (C,), jnp.float32) * 0.01

        wq = stack(kq, (C, C), sc)
        wk = stack(kk_, (C, C), sc)
        wv = stack(kv_, (C, C), sc)
        wm = stack(km, (C, C), sc)
        wmlp1 = stack(km1, (2 * C, 2 * C), sc2)
        wmlp2 = stack(km2, (2 * C, C), sc2)

        ln1_g = 1.0 + 0.1 * jax.random.normal(kg1, (n_layer, C), jnp.float32)
        ln1_b = 0.05 * jax.random.normal(kb1, (n_layer, C), jnp.float32)
        ln2_g = 1.0 + 0.1 * jax.random.normal(kg2, (n_layer, C), jnp.float32)
        ln2_b = 0.05 * jax.random.normal(kb2, (n_layer, C), jnp.float32)

        params.append(dict(
            # bf16-stored matmul weights (cast once, host-side):
            learner_w=jnp.stack([lw1, lw2]).astype(WEIGHT_DTYPE),       # (2,C,C)
            wq=(wq * temp).astype(WEIGHT_DTYPE),                        # (NL,C,C)
            wkv=jnp.concatenate([wk, wv], axis=2).astype(WEIGHT_DTYPE), # (NL,C,2C)
            wm=wm.astype(WEIGHT_DTYPE),                                 # (NL,C,C)
            wmlp1a=wmlp1[:, :C, :].astype(WEIGHT_DTYPE),                # (NL,C,2C)
            wmlp1b=wmlp1[:, C:, :].astype(WEIGHT_DTYPE),                # (NL,C,2C)
            wmlp2=wmlp2.astype(WEIGHT_DTYPE),                           # (NL,2C,C)
            # f32 elementwise params, packed:
            learner_b=jnp.stack([lb1, lb2]),                            # (2,C)
            ln=jnp.stack([ln1_g, ln1_b, ln2_g, ln2_b], axis=1),         # (NL,4,C)
        ))
    return params


# --------------------------------------------------------------------------
# Pure-JAX reference for the correctness check.  It mirrors the kernel's
# numerics exactly (same bf16-stored weights, same cast points, f32
# accumulation), so the comparison verifies the kernel structure/packing and
# stays well inside tolerance on both the interpreter and real hardware.
# --------------------------------------------------------------------------
def _cast(a):
    return a.astype(MATMUL_DTYPE)


def _mmr(a, b):
    return jnp.einsum("...ij,jk->...ik", _cast(a), _cast(b),
                      preferred_element_type=jnp.float32)


def reference_forward(xs, ys, params):
    xs_out, ys_out = [], []
    for x, y, p in zip(xs, ys, params):
        N, L, C = x.shape
        S = y.shape[1]
        D = C // N_HEADS

        lw, lb = p["learner_w"], p["learner_b"]
        h = _mmr(x, lw[0]) + lb[0]
        h = _mmr(h, lw[1]) + lb[1]
        fl = jnp.maximum(h, 0.0)
        xs_out.append(x + fl)

        fused = y
        n_layers = p["wq"].shape[0]
        for l in range(n_layers):
            q = _mmr(fused, p["wq"][l]).reshape(N, S, N_HEADS, D)
            kvm = _mmr(fl, p["wkv"][l])                      # (N, L, 2C)
            k = kvm[..., :C].reshape(N, L, N_HEADS, D)
            v = kvm[..., C:].reshape(N, L, N_HEADS, D)
            sc = jnp.einsum("nshd,nlhd->nhsl", _cast(q), _cast(k),
                            preferred_element_type=jnp.float32)
            sc = sc - jnp.max(sc, axis=-1, keepdims=True)
            pr = jnp.exp(sc)
            pr = pr / jnp.sum(pr, axis=-1, keepdims=True)
            o = jnp.einsum("nhsl,nlhd->nshd", _cast(pr), _cast(v),
                           preferred_element_type=jnp.float32).reshape(N, S, C)
            merged = _mmr(o, p["wm"][l])
            lnl = p["ln"][l]
            msg = _layernorm(merged, lnl[0], lnl[1])
            h1 = _mmr(fused, p["wmlp1a"][l]) + _mmr(msg, p["wmlp1b"][l])
            h1 = jnp.maximum(h1, 0.0)
            msg2 = _layernorm(_mmr(h1, p["wmlp2"][l]), lnl[2], lnl[3])
            fused = fused + msg2
        ys_out.append(fused)
    return tuple(xs_out), tuple(ys_out)


if __name__ == "__main__":
    key = jax.random.PRNGKey(0)
    in_channels = (32, 64)
    N, L, S = 2, 16, 8

    params = init_params(key, in_channels)

    kx = jax.random.split(jax.random.PRNGKey(1), len(in_channels))
    ky = jax.random.split(jax.random.PRNGKey(2), len(in_channels))
    xs = [jax.random.normal(kx[i], (N, L, C), jnp.float32)
          for i, C in enumerate(in_channels)]
    ys = [jax.random.normal(ky[i], (N, S, C), jnp.float32)
          for i, C in enumerate(in_channels)]

    xs_out, ys_out = attention_fusion_forward(xs, ys, params)
    jax.block_until_ready(xs_out)
    jax.block_until_ready(ys_out)

    xs_ref, ys_ref = reference_forward(xs, ys, params)
    # Reference mirrors the kernel's precision (bf16 matmul inputs, f32
    # accumulation), so the expected discrepancy is only fp reordering
    # (~1e-5); 1e-3 tolerance gives ample margin.
    for a, b in zip(xs_out, xs_ref):
        assert jnp.allclose(a, b, atol=1e-3, rtol=1e-3), "xs mismatch"
    for a, b in zip(ys_out, ys_ref):
        assert jnp.allclose(a, b, atol=1e-3, rtol=1e-3), "ys mismatch"

    print("KERNEL_OK")
</pallas_src>

<mosaic_0001>
module attributes {stable_mosaic.version = 11 : i64} {
  func.func @_fused_scale_kernel(%arg0: i32, %arg1: memref<1x16x32xf32, #tpu.memory_space<vmem>>, %arg2: memref<1x8x32xf32, #tpu.memory_space<vmem>>, %arg3: memref<2x32x32xbf16, #tpu.memory_space<vmem>>, %arg4: memref<2x32xf32, #tpu.memory_space<vmem>>, %arg5: memref<2x32x32xbf16, #tpu.memory_space<vmem>>, %arg6: memref<2x32x64xbf16, #tpu.memory_space<vmem>>, %arg7: memref<2x32x32xbf16, #tpu.memory_space<vmem>>, %arg8: memref<2x32x64xbf16, #tpu.memory_space<vmem>>, %arg9: memref<2x32x64xbf16, #tpu.memory_space<vmem>>, %arg10: memref<2x64x32xbf16, #tpu.memory_space<vmem>>, %arg11: memref<2x4x32xf32, #tpu.memory_space<vmem>>, %arg12: memref<1x16x32xf32, #tpu.memory_space<vmem>>, %arg13: memref<1x8x32xf32, #tpu.memory_space<vmem>>) attributes {dimension_semantics = [#tpu.dimension_semantics<parallel>], iteration_bounds = array<i64: 2>, scalar_prefetch = 0 : i64, scratch_operands = 0 : i64, tpu.core_type = #tpu.core_type<tc>, window_params = [{transform_indices = @transform_0, window_bounds = array<i64: 1, 16, 32>}, {transform_indices = @transform_1, window_bounds = array<i64: 1, 8, 32>}, {pipeline_mode = #tpu.pipeline_mode<synchronous>, transform_indices = @transform_2, window_bounds = array<i64: 2, 32, 32>}, {pipeline_mode = #tpu.pipeline_mode<synchronous>, transform_indices = @transform_3, window_bounds = array<i64: 2, 32>}, {pipeline_mode = #tpu.pipeline_mode<synchronous>, transform_indices = @transform_4, window_bounds = array<i64: 2, 32, 32>}, {pipeline_mode = #tpu.pipeline_mode<synchronous>, transform_indices = @transform_5, window_bounds = array<i64: 2, 32, 64>}, {pipeline_mode = #tpu.pipeline_mode<synchronous>, transform_indices = @transform_6, window_bounds = array<i64: 2, 32, 32>}, {pipeline_mode = #tpu.pipeline_mode<synchronous>, transform_indices = @transform_7, window_bounds = array<i64: 2, 32, 64>}, {pipeline_mode = #tpu.pipeline_mode<synchronous>, transform_indices = @transform_8, window_bounds = array<i64: 2, 32, 64>}, {pipeline_mode = #tpu.pipeline_mode<synchronous>, transform_indices = @transform_9, window_bounds = array<i64: 2, 64, 32>}, {pipeline_mode = #tpu.pipeline_mode<synchronous>, transform_indices = @transform_10, window_bounds = array<i64: 2, 4, 32>}, {transform_indices = @transform_11, window_bounds = array<i64: 1, 16, 32>}, {transform_indices = @transform_12, window_bounds = array<i64: 1, 8, 32>}]} {
    %c0 = arith.constant 0 : index
    %c0_0 = arith.constant 0 : index
    %c0_1 = arith.constant 0 : index
    %0 = vector.load %arg1[%c0, %c0_0, %c0_1] : memref<1x16x32xf32, #tpu.memory_space<vmem>>, vector<1x16x32xf32>
    %1 = vector.shape_cast %0 : vector<1x16x32xf32> to vector<16x32xf32>
    %c0_2 = arith.constant 0 : index
    %c0_3 = arith.constant 0 : index
    %c0_4 = arith.constant 0 : index
    %2 = vector.load %arg2[%c0_2, %c0_3, %c0_4] : memref<1x8x32xf32, #tpu.memory_space<vmem>>, vector<1x8x32xf32>
    %3 = vector.shape_cast %2 : vector<1x8x32xf32> to vector<8x32xf32>
    %c0_5 = arith.constant 0 : index
    %c0_6 = arith.constant 0 : index
    %c0_7 = arith.constant 0 : index
    %4 = vector.load %arg3[%c0_5, %c0_6, %c0_7] : memref<2x32x32xbf16, #tpu.memory_space<vmem>>, vector<1x32x32xbf16>
    %5 = vector.shape_cast %4 : vector<1x32x32xbf16> to vector<32x32xbf16>
    %6 = arith.truncf %1 : vector<16x32xf32> to vector<16x32xbf16>
    %cst = arith.constant dense<0.000000e+00> : vector<16x32xf32>
    %7 = tpu.matmul %6, %5, %cst {dimension_numbers = #tpu.dot_dimension_numbers<[1], [0], [0], [1], [0, 0, 1, 1], [], []>} : vector<16x32xbf16>, vector<32x32xbf16>, vector<16x32xf32> -> vector<16x32xf32>
    %c0_8 = arith.constant 0 : index
    %c0_9 = arith.constant 0 : index
    %8 = vector.load %arg4[%c0_8, %c0_9] : memref<2x32xf32, #tpu.memory_space<vmem>>, vector<1x32xf32>
    %9 = vector.broadcast %8 : vector<1x32xf32> to vector<16x32xf32>
    %10 = arith.addf %7, %9 : vector<16x32xf32>
    %c1 = arith.constant 1 : index
    %c0_10 = arith.constant 0 : index
    %c0_11 = arith.constant 0 : index
    %11 = vector.load %arg3[%c1, %c0_10, %c0_11] : memref<2x32x32xbf16, #tpu.memory_space<vmem>>, vector<1x32x32xbf16>
    %12 = vector.shape_cast %11 : vector<1x32x32xbf16> to vector<32x32xbf16>
    %13 = arith.truncf %10 : vector<16x32xf32> to vector<16x32xbf16>
    %cst_12 = arith.constant dense<0.000000e+00> : vector<16x32xf32>
    %14 = tpu.matmul %13, %12, %cst_12 {dimension_numbers = #tpu.dot_dimension_numbers<[1], [0], [0], [1], [0, 0, 1, 1], [], []>} : vector<16x32xbf16>, vector<32x32xbf16>, vector<16x32xf32> -> vector<16x32xf32>
    %c1_13 = arith.constant 1 : index
    %c0_14 = arith.constant 0 : index
    %15 = vector.load %arg4[%c1_13, %c0_14] : memref<2x32xf32, #tpu.memory_space<vmem>>, vector<1x32xf32>
    %16 = vector.broadcast %15 : vector<1x32xf32> to vector<16x32xf32>
    %17 = arith.addf %14, %16 : vector<16x32xf32>
    %cst_15 = arith.constant 0.000000e+00 : f32
    %18 = vector.broadcast %cst_15 : f32 to vector<16x32xf32>
    %19 = arith.maximumf %17, %18 : vector<16x32xf32>
    %20 = arith.addf %1, %19 : vector<16x32xf32>
    %c0_16 = arith.constant 0 : index
    %c0_17 = arith.constant 0 : index
    %c0_18 = arith.constant 0 : index
    %21 = vector.load %arg12[%c0_16, %c0_17, %c0_18] : memref<1x16x32xf32, #tpu.memory_space<vmem>>, vector<1x16x32xf32>
    %22 = vector.shape_cast %21 : vector<1x16x32xf32> to vector<16x32xf32>
    %23 = vector.shape_cast %20 : vector<16x32xf32> to vector<1x16x32xf32>
    tpu.vector_store %arg12[%c0_16, %c0_17, %c0_18], %23 {strides = array<i32>} : memref<1x16x32xf32, #tpu.memory_space<vmem>>, vector<1x16x32xf32>,
    %c0_19 = arith.constant 0 : index
    %c0_20 = arith.constant 0 : index
    %c0_21 = arith.constant 0 : index
    %24 = vector.load %arg5[%c0_19, %c0_20, %c0_21] : memref<2x32x32xbf16, #tpu.memory_space<vmem>>, vector<1x32x32xbf16>
    %25 = vector.shape_cast %24 : vector<1x32x32xbf16> to vector<32x32xbf16>
    %26 = arith.truncf %3 : vector<8x32xf32> to vector<8x32xbf16>
    %cst_22 = arith.constant dense<0.000000e+00> : vector<8x32xf32>
    %27 = tpu.matmul %26, %25, %cst_22 {dimension_numbers = #tpu.dot_dimension_numbers<[1], [0], [0], [1], [0, 0, 1, 1], [], []>} : vector<8x32xbf16>, vector<32x32xbf16>, vector<8x32xf32> -> vector<8x32xf32>
    %c0_23 = arith.constant 0 : index
    %c0_24 = arith.constant 0 : index
    %c0_25 = arith.constant 0 : index
    %28 = vector.load %arg6[%c0_23, %c0_24, %c0_25] : memref<2x32x64xbf16, #tpu.memory_space<vmem>>, vector<1x32x64xbf16>
    %29 = vector.shape_cast %28 : vector<1x32x64xbf16> to vector<32x64xbf16>
    %30 = arith.truncf %19 : vector<16x32xf32> to vector<16x32xbf16>
    %cst_26 = arith.constant dense<0.000000e+00> : vector<16x64xf32>
    %31 = tpu.matmul %30, %29, %cst_26 {dimension_numbers = #tpu.dot_dimension_numbers<[1], [0], [0], [1], [0, 0, 1, 1], [], []>} : vector<16x32xbf16>, vector<32x64xbf16>, vector<16x64xf32> -> vector<16x64xf32>
    %32 = vector.extract_strided_slice %27 {offsets = [0, 0], sizes = [8, 8], strides = [1, 1]} : vector<8x32xf32> to vector<8x8xf32>
    %33 = vector.extract_strided_slice %31 {offsets = [0, 0], sizes = [16, 8], strides = [1, 1]} : vector<16x64xf32> to vector<16x8xf32>
    %34 = vector.extract_strided_slice %31 {offsets = [0, 32], sizes = [16, 8], strides = [1, 1]} : vector<16x64xf32> to vector<16x8xf32>
    %35 = arith.truncf %32 : vector<8x8xf32> to vector<8x8xbf16>
    %36 = arith.truncf %33 : vector<16x8xf32> to vector<16x8xbf16>
    %cst_27 = arith.constant dense<0.000000e+00> : vector<8x16xf32>
    %37 = tpu.matmul %35, %36, %cst_27 {dimension_numbers = #tpu.dot_dimension_numbers<[1], [1], [0], [0], [0, 0, 1, 0], [], []>} : vector<8x8xbf16>, vector<16x8xbf16>, vector<8x16xf32> -> vector<8x16xf32>
    %cst_28 = arith.constant dense<0xFF800000> : vector<8xf32>
    %38 = vector.multi_reduction <maximumf>, %37, %cst_28 [1] : vector<8x16xf32> to vector<8xf32>
    %39 = vector.shape_cast %38 : vector<8xf32> to vector<8x1xf32>
    %40 = vector.broadcast %39 : vector<8x1xf32> to vector<8x16xf32>
    %41 = arith.subf %37, %40 : vector<8x16xf32>
    %42 = math.exp %41 : vector<8x16xf32>
    %cst_29 = arith.constant dense<0.000000e+00> : vector<8xf32>
    %43 = vector.multi_reduction <add>, %42, %cst_29 [1] : vector<8x16xf32> to vector<8xf32>
    %44 = vector.shape_cast %43 : vector<8xf32> to vector<8x1xf32>
    %45 = vector.broadcast %44 : vector<8x1xf32> to vector<8x16xf32>
    %46 = arith.divf %42, %45 : vector<8x16xf32>
    %47 = arith.truncf %46 : vector<8x16xf32> to vector<8x16xbf16>
    %48 = arith.truncf %34 : vector<16x8xf32> to vector<16x8xbf16>
    %cst_30 = arith.constant dense<0.000000e+00> : vector<8x8xf32>
    %49 = tpu.matmul %47, %48, %cst_30 {dimension_numbers = #tpu.dot_dimension_numbers<[1], [0], [0], [1], [0, 0, 1, 1], [], []>} : vector<8x16xbf16>, vector<16x8xbf16>, vector<8x8xf32> -> vector<8x8xf32>
    %50 = vector.extract_strided_slice %27 {offsets = [0, 8], sizes = [8, 8], strides = [1, 1]} : vector<8x32xf32> to vector<8x8xf32>
    %51 = vector.extract_strided_slice %31 {offsets = [0, 8], sizes = [16, 8], strides = [1, 1]} : vector<16x64xf32> to vector<16x8xf32>
    %52 = vector.extract_strided_slice %31 {offsets = [0, 40], sizes = [16, 8], strides = [1, 1]} : vector<16x64xf32> to vector<16x8xf32>
    %53 = arith.truncf %50 : vector<8x8xf32> to vector<8x8xbf16>
    %54 = arith.truncf %51 : vector<16x8xf32> to vector<16x8xbf16>
    %cst_31 = arith.constant dense<0.000000e+00> : vector<8x16xf32>
    %55 = tpu.matmul %53, %54, %cst_31 {dimension_numbers = #tpu.dot_dimension_numbers<[1], [1], [0], [0], [0, 0, 1, 0], [], []>} : vector<8x8xbf16>, vector<16x8xbf16>, vector<8x16xf32> -> vector<8x16xf32>
    %cst_32 = arith.constant dense<0xFF800000> : vector<8xf32>
    %56 = vector.multi_reduction <maximumf>, %55, %cst_32 [1] : vector<8x16xf32> to vector<8xf32>
    %57 = vector.shape_cast %56 : vector<8xf32> to vector<8x1xf32>
    %58 = vector.broadcast %57 : vector<8x1xf32> to vector<8x16xf32>
    %59 = arith.subf %55, %58 : vector<8x16xf32>
    %60 = math.exp %59 : vector<8x16xf32>
    %cst_33 = arith.constant dense<0.000000e+00> : vector<8xf32>
    %61 = vector.multi_reduction <add>, %60, %cst_33 [1] : vector<8x16xf32> to vector<8xf32>
    %62 = vector.shape_cast %61 : vector<8xf32> to vector<8x1xf32>
    %63 = vector.broadcast %62 : vector<8x1xf32> to vector<8x16xf32>
    %64 = arith.divf %60, %63 : vector<8x16xf32>
    %65 = arith.truncf %64 : vector<8x16xf32> to vector<8x16xbf16>
    %66 = arith.truncf %52 : vector<16x8xf32> to vector<16x8xbf16>
    %cst_34 = arith.constant dense<0.000000e+00> : vector<8x8xf32>
    %67 = tpu.matmul %65, %66, %cst_34 {dimension_numbers = #tpu.dot_dimension_numbers<[1], [0], [0], [1], [0, 0, 1, 1], [], []>} : vector<8x16xbf16>, vector<16x8xbf16>, vector<8x8xf32> -> vector<8x8xf32>
    %68 = vector.extract_strided_slice %27 {offsets = [0, 16], sizes = [8, 8], strides = [1, 1]} : vector<8x32xf32> to vector<8x8xf32>
    %69 = vector.extract_strided_slice %31 {offsets = [0, 16], sizes = [16, 8], strides = [1, 1]} : vector<16x64xf32> to vector<16x8xf32>
    %70 = vector.extract_strided_slice %31 {offsets = [0, 48], sizes = [16, 8], strides = [1, 1]} : vector<16x64xf32> to vector<16x8xf32>
    %71 = arith.truncf %68 : vector<8x8xf32> to vector<8x8xbf16>
    %72 = arith.truncf %69 : vector<16x8xf32> to vector<16x8xbf16>
    %cst_35 = arith.constant dense<0.000000e+00> : vector<8x16xf32>
    %73 = tpu.matmul %71, %72, %cst_35 {dimension_numbers = #tpu.dot_dimension_numbers<[1], [1], [0], [0], [0, 0, 1, 0], [], []>} : vector<8x8xbf16>, vector<16x8xbf16>, vector<8x16xf32> -> vector<8x16xf32>
    %cst_36 = arith.constant dense<0xFF800000> : vector<8xf32>
    %74 = vector.multi_reduction <maximumf>, %73, %cst_36 [1] : vector<8x16xf32> to vector<8xf32>
    %75 = vector.shape_cast %74 : vector<8xf32> to vector<8x1xf32>
    %76 = vector.broadcast %75 : vector<8x1xf32> to vector<8x16xf32>
    %77 = arith.subf %73, %76 : vector<8x16xf32>
    %78 = math.exp %77 : vector<8x16xf32>
    %cst_37 = arith.constant dense<0.000000e+00> : vector<8xf32>
    %79 = vector.multi_reduction <add>, %78, %cst_37 [1] : vector<8x16xf32> to vector<8xf32>
    %80 = vector.shape_cast %79 : vector<8xf32> to vector<8x1xf32>
    %81 = vector.broadcast %80 : vector<8x1xf32> to vector<8x16xf32>
    %82 = arith.divf %78, %81 : vector<8x16xf32>
    %83 = arith.truncf %82 : vector<8x16xf32> to vector<8x16xbf16>
    %84 = arith.truncf %70 : vector<16x8xf32> to vector<16x8xbf16>
    %cst_38 = arith.constant dense<0.000000e+00> : vector<8x8xf32>
    %85 = tpu.matmul %83, %84, %cst_38 {dimension_numbers = #tpu.dot_dimension_numbers<[1], [0], [0], [1], [0, 0, 1, 1], [], []>} : vector<8x16xbf16>, vector<16x8xbf16>, vector<8x8xf32> -> vector<8x8xf32>
    %86 = vector.extract_strided_slice %27 {offsets = [0, 24], sizes = [8, 8], strides = [1, 1]} : vector<8x32xf32> to vector<8x8xf32>
    %87 = vector.extract_strided_slice %31 {offsets = [0, 24], sizes = [16, 8], strides = [1, 1]} : vector<16x64xf32> to vector<16x8xf32>
    %88 = vector.extract_strided_slice %31 {offsets = [0, 56], sizes = [16, 8], strides = [1, 1]} : vector<16x64xf32> to vector<16x8xf32>
    %89 = arith.truncf %86 : vector<8x8xf32> to vector<8x8xbf16>
    %90 = arith.truncf %87 : vector<16x8xf32> to vector<16x8xbf16>
    %cst_39 = arith.constant dense<0.000000e+00> : vector<8x16xf32>
    %91 = tpu.matmul %89, %90, %cst_39 {dimension_numbers = #tpu.dot_dimension_numbers<[1], [1], [0], [0], [0, 0, 1, 0], [], []>} : vector<8x8xbf16>, vector<16x8xbf16>, vector<8x16xf32> -> vector<8x16xf32>
    %cst_40 = arith.constant dense<0xFF800000> : vector<8xf32>
    %92 = vector.multi_reduction <maximumf>, %91, %cst_40 [1] : vector<8x16xf32> to vector<8xf32>
    %93 = vector.shape_cast %92 : vector<8xf32> to vector<8x1xf32>
    %94 = vector.broadcast %93 : vector<8x1xf32> to vector<8x16xf32>
    %95 = arith.subf %91, %94 : vector<8x16xf32>
    %96 = math.exp %95 : vector<8x16xf32>
    %cst_41 = arith.constant dense<0.000000e+00> : vector<8xf32>
    %97 = vector.multi_reduction <add>, %96, %cst_41 [1] : vector<8x16xf32> to vector<8xf32>
    %98 = vector.shape_cast %97 : vector<8xf32> to vector<8x1xf32>
    %99 = vector.broadcast %98 : vector<8x1xf32> to vector<8x16xf32>
    %100 = arith.divf %96, %99 : vector<8x16xf32>
    %101 = arith.truncf %100 : vector<8x16xf32> to vector<8x16xbf16>
    %102 = arith.truncf %88 : vector<16x8xf32> to vector<16x8xbf16>
    %cst_42 = arith.constant dense<0.000000e+00> : vector<8x8xf32>
    %103 = tpu.matmul %101, %102, %cst_42 {dimension_numbers = #tpu.dot_dimension_numbers<[1], [0], [0], [1], [0, 0, 1, 1], [], []>} : vector<8x16xbf16>, vector<16x8xbf16>, vector<8x8xf32> -> vector<8x8xf32>
    %104 = tpu.concatenate %49, %67, %85, %103 in 1 : vector<8x8xf32>, vector<8x8xf32>, vector<8x8xf32>, vector<8x8xf32> -> vector<8x32xf32>
    %c0_43 = arith.constant 0 : index
    %c0_44 = arith.constant 0 : index
    %c0_45 = arith.constant 0 : index
    %105 = vector.load %arg7[%c0_43, %c0_44, %c0_45] : memref<2x32x32xbf16, #tpu.memory_space<vmem>>, vector<1x32x32xbf16>
    %106 = vector.shape_cast %105 : vector<1x32x32xbf16> to vector<32x32xbf16>
    %107 = arith.truncf %104 : vector<8x32xf32> to vector<8x32xbf16>
    %cst_46 = arith.constant dense<0.000000e+00> : vector<8x32xf32>
    %108 = tpu.matmul %107, %106, %cst_46 {dimension_numbers = #tpu.dot_dimension_numbers<[1], [0], [0], [1], [0, 0, 1, 1], [], []>} : vector<8x32xbf16>, vector<32x32xbf16>, vector<8x32xf32> -> vector<8x32xf32>
    %c0_47 = arith.constant 0 : index
    %c0_48 = arith.constant 0 : index
    %c0_49 = arith.constant 0 : index
    %109 = vector.load %arg11[%c0_47, %c0_48, %c0_49] : memref<2x4x32xf32, #tpu.memory_space<vmem>>, vector<1x4x32xf32>
    %110 = vector.shape_cast %109 : vector<1x4x32xf32> to vector<4x32xf32>
    %111 = vector.extract_strided_slice %110 {offsets = [0, 0], sizes = [1, 32], strides = [1, 1]} : vector<4x32xf32> to vector<1x32xf32>
    %112 = vector.extract_strided_slice %110 {offsets = [1, 0], sizes = [1, 32], strides = [1, 1]} : vector<4x32xf32> to vector<1x32xf32>
    %cst_50 = arith.constant dense<0.000000e+00> : vector<8xf32>
    %113 = vector.multi_reduction <add>, %108, %cst_50 [1] : vector<8x32xf32> to vector<8xf32>
    %114 = vector.shape_cast %113 : vector<8xf32> to vector<8x1xf32>
    %cst_51 = arith.constant 3.200000e+01 : f32
    %115 = vector.broadcast %cst_51 : f32 to vector<8x1xf32>
    %116 = arith.divf %114, %115 : vector<8x1xf32>
    %117 = vector.broadcast %116 : vector<8x1xf32> to vector<8x32xf32>
    %118 = arith.subf %108, %117 : vector<8x32xf32>
    %119 = arith.mulf %118, %118 : vector<8x32xf32>
    %cst_52 = arith.constant dense<0.000000e+00> : vector<8xf32>
    %120 = vector.multi_reduction <add>, %119, %cst_52 [1] : vector<8x32xf32> to vector<8xf32>
    %121 = vector.shape_cast %120 : vector<8xf32> to vector<8x1xf32>
    %cst_53 = arith.constant 3.200000e+01 : f32
    %122 = vector.broadcast %cst_53 : f32 to vector<8x1xf32>
    %123 = arith.divf %121, %122 : vector<8x1xf32>
    %124 = vector.broadcast %116 : vector<8x1xf32> to vector<8x32xf32>
    %125 = arith.subf %108, %124 : vector<8x32xf32>
    %cst_54 = arith.constant 9.99999974E-6 : f32
    %126 = vector.broadcast %cst_54 : f32 to vector<8x1xf32>
    %127 = arith.addf %123, %126 : vector<8x1xf32>
    %128 = math.rsqrt %127 : vector<8x1xf32>
    %129 = vector.broadcast %128 : vector<8x1xf32> to vector<8x32xf32>
    %130 = arith.mulf %125, %129 : vector<8x32xf32>
    %131 = vector.broadcast %111 : vector<1x32xf32> to vector<8x32xf32>
    %132 = arith.mulf %130, %131 : vector<8x32xf32>
    %133 = vector.broadcast %112 : vector<1x32xf32> to vector<8x32xf32>
    %134 = arith.addf %132, %133 : vector<8x32xf32>
    %c0_55 = arith.constant 0 : index
    %c0_56 = arith.constant 0 : index
    %c0_57 = arith.constant 0 : index
    %135 = vector.load %arg8[%c0_55, %c0_56, %c0_57] : memref<2x32x64xbf16, #tpu.memory_space<vmem>>, vector<1x32x64xbf16>
    %136 = vector.shape_cast %135 : vector<1x32x64xbf16> to vector<32x64xbf16>
    %137 = arith.truncf %3 : vector<8x32xf32> to vector<8x32xbf16>
    %cst_58 = arith.constant dense<0.000000e+00> : vector<8x64xf32>
    %138 = tpu.matmul %137, %136, %cst_58 {dimension_numbers = #tpu.dot_dimension_numbers<[1], [0], [0], [1], [0, 0, 1, 1], [], []>} : vector<8x32xbf16>, vector<32x64xbf16>, vector<8x64xf32> -> vector<8x64xf32>
    %c0_59 = arith.constant 0 : index
    %c0_60 = arith.constant 0 : index
    %c0_61 = arith.constant 0 : index
    %139 = vector.load %arg9[%c0_59, %c0_60, %c0_61] : memref<2x32x64xbf16, #tpu.memory_space<vmem>>, vector<1x32x64xbf16>
    %140 = vector.shape_cast %139 : vector<1x32x64xbf16> to vector<32x64xbf16>
    %141 = arith.truncf %134 : vector<8x32xf32> to vector<8x32xbf16>
    %cst_62 = arith.constant dense<0.000000e+00> : vector<8x64xf32>
    %142 = tpu.matmul %141, %140, %cst_62 {dimension_numbers = #tpu.dot_dimension_numbers<[1], [0], [0], [1], [0, 0, 1, 1], [], []>} : vector<8x32xbf16>, vector<32x64xbf16>, vector<8x64xf32> -> vector<8x64xf32>
    %143 = arith.addf %138, %142 : vector<8x64xf32>
    %cst_63 = arith.constant 0.000000e+00 : f32
    %144 = vector.broadcast %cst_63 : f32 to vector<8x64xf32>
    %145 = arith.maximumf %143, %144 : vector<8x64xf32>
    %c0_64 = arith.constant 0 : index
    %c0_65 = arith.constant 0 : index
    %c0_66 = arith.constant 0 : index
    %146 = vector.load %arg10[%c0_64, %c0_65, %c0_66] : memref<2x64x32xbf16, #tpu.memory_space<vmem>>, vector<1x64x32xbf16>
    %147 = vector.shape_cast %146 : vector<1x64x32xbf16> to vector<64x32xbf16>
    %148 = arith.truncf %145 : vector<8x64xf32> to vector<8x64xbf16>
    %cst_67 = arith.constant dense<0.000000e+00> : vector<8x32xf32>
    %149 = tpu.matmul %148, %147, %cst_67 {dimension_numbers = #tpu.dot_dimension_numbers<[1], [0], [0], [1], [0, 0, 1, 1], [], []>} : vector<8x64xbf16>, vector<64x32xbf16>, vector<8x32xf32> -> vector<8x32xf32>
    %150 = vector.extract_strided_slice %110 {offsets = [2, 0], sizes = [1, 32], strides = [1, 1]} : vector<4x32xf32> to vector<1x32xf32>
    %151 = vector.extract_strided_slice %110 {offsets = [3, 0], sizes = [1, 32], strides = [1, 1]} : vector<4x32xf32> to vector<1x32xf32>
    %cst_68 = arith.constant dense<0.000000e+00> : vector<8xf32>
    %152 = vector.multi_reduction <add>, %149, %cst_68 [1] : vector<8x32xf32> to vector<8xf32>
    %153 = vector.shape_cast %152 : vector<8xf32> to vector<8x1xf32>
    %cst_69 = arith.constant 3.200000e+01 : f32
    %154 = vector.broadcast %cst_69 : f32 to vector<8x1xf32>
    %155 = arith.divf %153, %154 : vector<8x1xf32>
    %156 = vector.broadcast %155 : vector<8x1xf32> to vector<8x32xf32>
    %157 = arith.subf %149, %156 : vector<8x32xf32>
    %158 = arith.mulf %157, %157 : vector<8x32xf32>
    %cst_70 = arith.constant dense<0.000000e+00> : vector<8xf32>
    %159 = vector.multi_reduction <add>, %158, %cst_70 [1] : vector<8x32xf32> to vector<8xf32>
    %160 = vector.shape_cast %159 : vector<8xf32> to vector<8x1xf32>
    %cst_71 = arith.constant 3.200000e+01 : f32
    %161 = vector.broadcast %cst_71 : f32 to vector<8x1xf32>
    %162 = arith.divf %160, %161 : vector<8x1xf32>
    %163 = vector.broadcast %155 : vector<8x1xf32> to vector<8x32xf32>
    %164 = arith.subf %149, %163 : vector<8x32xf32>
    %cst_72 = arith.constant 9.99999974E-6 : f32
    %165 = vector.broadcast %cst_72 : f32 to vector<8x1xf32>
    %166 = arith.addf %162, %165 : vector<8x1xf32>
    %167 = math.rsqrt %166 : vector<8x1xf32>
    %168 = vector.broadcast %167 : vector<8x1xf32> to vector<8x32xf32>
    %169 = arith.mulf %164, %168 : vector<8x32xf32>
    %170 = vector.broadcast %150 : vector<1x32xf32> to vector<8x32xf32>
    %171 = arith.mulf %169, %170 : vector<8x32xf32>
    %172 = vector.broadcast %151 : vector<1x32xf32> to vector<8x32xf32>
    %173 = arith.addf %171, %172 : vector<8x32xf32>
    %174 = arith.addf %3, %173 : vector<8x32xf32>
    %c1_73 = arith.constant 1 : index
    %c0_74 = arith.constant 0 : index
    %c0_75 = arith.constant 0 : index
    %175 = vector.load %arg5[%c1_73, %c0_74, %c0_75] : memref<2x32x32xbf16, #tpu.memory_space<vmem>>, vector<1x32x32xbf16>
    %176 = vector.shape_cast %175 : vector<1x32x32xbf16> to vector<32x32xbf16>
    %177 = arith.truncf %174 : vector<8x32xf32> to vector<8x32xbf16>
    %cst_76 = arith.constant dense<0.000000e+00> : vector<8x32xf32>
    %178 = tpu.matmul %177, %176, %cst_76 {dimension_numbers = #tpu.dot_dimension_numbers<[1], [0], [0], [1], [0, 0, 1, 1], [], []>} : vector<8x32xbf16>, vector<32x32xbf16>, vector<8x32xf32> -> vector<8x32xf32>
    %c1_77 = arith.constant 1 : index
    %c0_78 = arith.constant 0 : index
    %c0_79 = arith.constant 0 : index
    %179 = vector.load %arg6[%c1_77, %c0_78, %c0_79] : memref<2x32x64xbf16, #tpu.memory_space<vmem>>, vector<1x32x64xbf16>
    %180 = vector.shape_cast %179 : vector<1x32x64xbf16> to vector<32x64xbf16>
    %181 = arith.truncf %19 : vector<16x32xf32> to vector<16x32xbf16>
    %cst_80 = arith.constant dense<0.000000e+00> : vector<16x64xf32>
    %182 = tpu.matmul %181, %180, %cst_80 {dimension_numbers = #tpu.dot_dimension_numbers<[1], [0], [0], [1], [0, 0, 1, 1], [], []>} : vector<16x32xbf16>, vector<32x64xbf16>, vector<16x64xf32> -> vector<16x64xf32>
    %183 = vector.extract_strided_slice %178 {offsets = [0, 0], sizes = [8, 8], strides = [1, 1]} : vector<8x32xf32> to vector<8x8xf32>
    %184 = vector.extract_strided_slice %182 {offsets = [0, 0], sizes = [16, 8], strides = [1, 1]} : vector<16x64xf32> to vector<16x8xf32>
    %185 = vector.extract_strided_slice %182 {offsets = [0, 32], sizes = [16, 8], strides = [1, 1]} : vector<16x64xf32> to vector<16x8xf32>
    %186 = arith.truncf %183 : vector<8x8xf32> to vector<8x8xbf16>
    %187 = arith.truncf %184 : vector<16x8xf32> to vector<16x8xbf16>
    %cst_81 = arith.constant dense<0.000000e+00> : vector<8x16xf32>
    %188 = tpu.matmul %186, %187, %cst_81 {dimension_numbers = #tpu.dot_dimension_numbers<[1], [1], [0], [0], [0, 0, 1, 0], [], []>} : vector<8x8xbf16>, vector<16x8xbf16>, vector<8x16xf32> -> vector<8x16xf32>
    %cst_82 = arith.constant dense<0xFF800000> : vector<8xf32>
    %189 = vector.multi_reduction <maximumf>, %188, %cst_82 [1] : vector<8x16xf32> to vector<8xf32>
    %190 = vector.shape_cast %189 : vector<8xf32> to vector<8x1xf32>
    %191 = vector.broadcast %190 : vector<8x1xf32> to vector<8x16xf32>
    %192 = arith.subf %188, %191 : vector<8x16xf32>
    %193 = math.exp %192 : vector<8x16xf32>
    %cst_83 = arith.constant dense<0.000000e+00> : vector<8xf32>
    %194 = vector.multi_reduction <add>, %193, %cst_83 [1] : vector<8x16xf32> to vector<8xf32>
    %195 = vector.shape_cast %194 : vector<8xf32> to vector<8x1xf32>
    %196 = vector.broadcast %195 : vector<8x1xf32> to vector<8x16xf32>
    %197 = arith.divf %193, %196 : vector<8x16xf32>
    %198 = arith.truncf %197 : vector<8x16xf32> to vector<8x16xbf16>
    %199 = arith.truncf %185 : vector<16x8xf32> to vector<16x8xbf16>
    %cst_84 = arith.constant dense<0.000000e+00> : vector<8x8xf32>
    %200 = tpu.matmul %198, %199, %cst_84 {dimension_numbers = #tpu.dot_dimension_numbers<[1], [0], [0], [1], [0, 0, 1, 1], [], []>} : vector<8x16xbf16>, vector<16x8xbf16>, vector<8x8xf32> -> vector<8x8xf32>
    %201 = vector.extract_strided_slice %178 {offsets = [0, 8], sizes = [8, 8], strides = [1, 1]} : vector<8x32xf32> to vector<8x8xf32>
    %202 = vector.extract_strided_slice %182 {offsets = [0, 8], sizes = [16, 8], strides = [1, 1]} : vector<16x64xf32> to vector<16x8xf32>
    %203 = vector.extract_strided_slice %182 {offsets = [0, 40], sizes = [16, 8], strides = [1, 1]} : vector<16x64xf32> to vector<16x8xf32>
    %204 = arith.truncf %201 : vector<8x8xf32> to vector<8x8xbf16>
    %205 = arith.truncf %202 : vector<16x8xf32> to vector<16x8xbf16>
    %cst_85 = arith.constant dense<0.000000e+00> : vector<8x16xf32>
    %206 = tpu.matmul %204, %205, %cst_85 {dimension_numbers = #tpu.dot_dimension_numbers<[1], [1], [0], [0], [0, 0, 1, 0], [], []>} : vector<8x8xbf16>, vector<16x8xbf16>, vector<8x16xf32> -> vector<8x16xf32>
    %cst_86 = arith.constant dense<0xFF800000> : vector<8xf32>
    %207 = vector.multi_reduction <maximumf>, %206, %cst_86 [1] : vector<8x16xf32> to vector<8xf32>
    %208 = vector.shape_cast %207 : vector<8xf32> to vector<8x1xf32>
    %209 = vector.broadcast %208 : vector<8x1xf32> to vector<8x16xf32>
    %210 = arith.subf %206, %209 : vector<8x16xf32>
    %211 = math.exp %210 : vector<8x16xf32>
    %cst_87 = arith.constant dense<0.000000e+00> : vector<8xf32>
    %212 = vector.multi_reduction <add>, %211, %cst_87 [1] : vector<8x16xf32> to vector<8xf32>
    %213 = vector.shape_cast %212 : vector<8xf32> to vector<8x1xf32>
    %214 = vector.broadcast %213 : vector<8x1xf32> to vector<8x16xf32>
    %215 = arith.divf %211, %214 : vector<8x16xf32>
    %216 = arith.truncf %215 : vector<8x16xf32> to vector<8x16xbf16>
    %217 = arith.truncf %203 : vector<16x8xf32> to vector<16x8xbf16>
    %cst_88 = arith.constant dense<0.000000e+00> : vector<8x8xf32>
    %218 = tpu.matmul %216, %217, %cst_88 {dimension_numbers = #tpu.dot_dimension_numbers<[1], [0], [0], [1], [0, 0, 1, 1], [], []>} : vector<8x16xbf16>, vector<16x8xbf16>, vector<8x8xf32> -> vector<8x8xf32>
    %219 = vector.extract_strided_slice %178 {offsets = [0, 16], sizes = [8, 8], strides = [1, 1]} : vector<8x32xf32> to vector<8x8xf32>
    %220 = vector.extract_strided_slice %182 {offsets = [0, 16], sizes = [16, 8], strides = [1, 1]} : vector<16x64xf32> to vector<16x8xf32>
    %221 = vector.extract_strided_slice %182 {offsets = [0, 48], sizes = [16, 8], strides = [1, 1]} : vector<16x64xf32> to vector<16x8xf32>
    %222 = arith.truncf %219 : vector<8x8xf32> to vector<8x8xbf16>
    %223 = arith.truncf %220 : vector<16x8xf32> to vector<16x8xbf16>
    %cst_89 = arith.constant dense<0.000000e+00> : vector<8x16xf32>
    %224 = tpu.matmul %222, %223, %cst_89 {dimension_numbers = #tpu.dot_dimension_numbers<[1], [1], [0], [0], [0, 0, 1, 0], [], []>} : vector<8x8xbf16>, vector<16x8xbf16>, vector<8x16xf32> -> vector<8x16xf32>
    %cst_90 = arith.constant dense<0xFF800000> : vector<8xf32>
    %225 = vector.multi_reduction <maximumf>, %224, %cst_90 [1] : vector<8x16xf32> to vector<8xf32>
    %226 = vector.shape_cast %225 : vector<8xf32> to vector<8x1xf32>
    %227 = vector.broadcast %226 : vector<8x1xf32> to vector<8x16xf32>
    %228 = arith.subf %224, %227 : vector<8x16xf32>
    %229 = math.exp %228 : vector<8x16xf32>
    %cst_91 = arith.constant dense<0.000000e+00> : vector<8xf32>
    %230 = vector.multi_reduction <add>, %229, %cst_91 [1] : vector<8x16xf32> to vector<8xf32>
    %231 = vector.shape_cast %230 : vector<8xf32> to vector<8x1xf32>
    %232 = vector.broadcast %231 : vector<8x1xf32> to vector<8x16xf32>
    %233 = arith.divf %229, %232 : vector<8x16xf32>
    %234 = arith.truncf %233 : vector<8x16xf32> to vector<8x16xbf16>
    %235 = arith.truncf %221 : vector<16x8xf32> to vector<16x8xbf16>
    %cst_92 = arith.constant dense<0.000000e+00> : vector<8x8xf32>
    %236 = tpu.matmul %234, %235, %cst_92 {dimension_numbers = #tpu.dot_dimension_numbers<[1], [0], [0], [1], [0, 0, 1, 1], [], []>} : vector<8x16xbf16>, vector<16x8xbf16>, vector<8x8xf32> -> vector<8x8xf32>
    %237 = vector.extract_strided_slice %178 {offsets = [0, 24], sizes = [8, 8], strides = [1, 1]} : vector<8x32xf32> to vector<8x8xf32>
    %238 = vector.extract_strided_slice %182 {offsets = [0, 24], sizes = [16, 8], strides = [1, 1]} : vector<16x64xf32> to vector<16x8xf32>
    %239 = vector.extract_strided_slice %182 {offsets = [0, 56], sizes = [16, 8], strides = [1, 1]} : vector<16x64xf32> to vector<16x8xf32>
    %240 = arith.truncf %237 : vector<8x8xf32> to vector<8x8xbf16>
    %241 = arith.truncf %238 : vector<16x8xf32> to vector<16x8xbf16>
    %cst_93 = arith.constant dense<0.000000e+00> : vector<8x16xf32>
    %242 = tpu.matmul %240, %241, %cst_93 {dimension_numbers = #tpu.dot_dimension_numbers<[1], [1], [0], [0], [0, 0, 1, 0], [], []>} : vector<8x8xbf16>, vector<16x8xbf16>, vector<8x16xf32> -> vector<8x16xf32>
    %cst_94 = arith.constant dense<0xFF800000> : vector<8xf32>
    %243 = vector.multi_reduction <maximumf>, %242, %cst_94 [1] : vector<8x16xf32> to vector<8xf32>
    %244 = vector.shape_cast %243 : vector<8xf32> to vector<8x1xf32>
    %245 = vector.broadcast %244 : vector<8x1xf32> to vector<8x16xf32>
    %246 = arith.subf %242, %245 : vector<8x16xf32>
    %247 = math.exp %246 : vector<8x16xf32>
    %cst_95 = arith.constant dense<0.000000e+00> : vector<8xf32>
    %248 = vector.multi_reduction <add>, %247, %cst_95 [1] : vector<8x16xf32> to vector<8xf32>
    %249 = vector.shape_cast %248 : vector<8xf32> to vector<8x1xf32>
    %250 = vector.broadcast %249 : vector<8x1xf32> to vector<8x16xf32>
    %251 = arith.divf %247, %250 : vector<8x16xf32>
    %252 = arith.truncf %251 : vector<8x16xf32> to vector<8x16xbf16>
    %253 = arith.truncf %239 : vector<16x8xf32> to vector<16x8xbf16>
    %cst_96 = arith.constant dense<0.000000e+00> : vector<8x8xf32>
    %254 = tpu.matmul %252, %253, %cst_96 {dimension_numbers = #tpu.dot_dimension_numbers<[1], [0], [0], [1], [0, 0, 1, 1], [], []>} : vector<8x16xbf16>, vector<16x8xbf16>, vector<8x8xf32> -> vector<8x8xf32>
    %255 = tpu.concatenate %200, %218, %236, %254 in 1 : vector<8x8xf32>, vector<8x8xf32>, vector<8x8xf32>, vector<8x8xf32> -> vector<8x32xf32>
    %c1_97 = arith.constant 1 : index
    %c0_98 = arith.constant 0 : index
    %c0_99 = arith.constant 0 : index
    %256 = vector.load %arg7[%c1_97, %c0_98, %c0_99] : memref<2x32x32xbf16, #tpu.memory_space<vmem>>, vector<1x32x32xbf16>
    %257 = vector.shape_cast %256 : vector<1x32x32xbf16> to vector<32x32xbf16>
    %258 = arith.truncf %255 : vector<8x32xf32> to vector<8x32xbf16>
    %cst_100 = arith.constant dense<0.000000e+00> : vector<8x32xf32>
    %259 = tpu.matmul %258, %257, %cst_100 {dimension_numbers = #tpu.dot_dimension_numbers<[1], [0], [0], [1], [0, 0, 1, 1], [], []>} : vector<8x32xbf16>, vector<32x32xbf16>, vector<8x32xf32> -> vector<8x32xf32>
    %c1_101 = arith.constant 1 : index
    %c0_102 = arith.constant 0 : index
    %c0_103 = arith.constant 0 : index
    %260 = vector.load %arg11[%c1_101, %c0_102, %c0_103] : memref<2x4x32xf32, #tpu.memory_space<vmem>>, vector<1x4x32xf32>
    %261 = vector.shape_cast %260 : vector<1x4x32xf32> to vector<4x32xf32>
    %262 = vector.extract_strided_slice %261 {offsets = [0, 0], sizes = [1, 32], strides = [1, 1]} : vector<4x32xf32> to vector<1x32xf32>
    %263 = vector.extract_strided_slice %261 {offsets = [1, 0], sizes = [1, 32], strides = [1, 1]} : vector<4x32xf32> to vector<1x32xf32>
    %cst_104 = arith.constant dense<0.000000e+00> : vector<8xf32>
    %264 = vector.multi_reduction <add>, %259, %cst_104 [1] : vector<8x32xf32> to vector<8xf32>
    %265 = vector.shape_cast %264 : vector<8xf32> to vector<8x1xf32>
    %cst_105 = arith.constant 3.200000e+01 : f32
    %266 = vector.broadcast %cst_105 : f32 to vector<8x1xf32>
    %267 = arith.divf %265, %266 : vector<8x1xf32>
    %268 = vector.broadcast %267 : vector<8x1xf32> to vector<8x32xf32>
    %269 = arith.subf %259, %268 : vector<8x32xf32>
    %270 = arith.mulf %269, %269 : vector<8x32xf32>
    %cst_106 = arith.constant dense<0.000000e+00> : vector<8xf32>
    %271 = vector.multi_reduction <add>, %270, %cst_106 [1] : vector<8x32xf32> to vector<8xf32>
    %272 = vector.shape_cast %271 : vector<8xf32> to vector<8x1xf32>
    %cst_107 = arith.constant 3.200000e+01 : f32
    %273 = vector.broadcast %cst_107 : f32 to vector<8x1xf32>
    %274 = arith.divf %272, %273 : vector<8x1xf32>
    %275 = vector.broadcast %267 : vector<8x1xf32> to vector<8x32xf32>
    %276 = arith.subf %259, %275 : vector<8x32xf32>
    %cst_108 = arith.constant 9.99999974E-6 : f32
    %277 = vector.broadcast %cst_108 : f32 to vector<8x1xf32>
    %278 = arith.addf %274, %277 : vector<8x1xf32>
    %279 = math.rsqrt %278 : vector<8x1xf32>
    %280 = vector.broadcast %279 : vector<8x1xf32> to vector<8x32xf32>
    %281 = arith.mulf %276, %280 : vector<8x32xf32>
    %282 = vector.broadcast %262 : vector<1x32xf32> to vector<8x32xf32>
    %283 = arith.mulf %281, %282 : vector<8x32xf32>
    %284 = vector.broadcast %263 : vector<1x32xf32> to vector<8x32xf32>
    %285 = arith.addf %283, %284 : vector<8x32xf32>
    %c1_109 = arith.constant 1 : index
    %c0_110 = arith.constant 0 : index
    %c0_111 = arith.constant 0 : index
    %286 = vector.load %arg8[%c1_109, %c0_110, %c0_111] : memref<2x32x64xbf16, #tpu.memory_space<vmem>>, vector<1x32x64xbf16>
    %287 = vector.shape_cast %286 : vector<1x32x64xbf16> to vector<32x64xbf16>
    %288 = arith.truncf %174 : vector<8x32xf32> to vector<8x32xbf16>
    %cst_112 = arith.constant dense<0.000000e+00> : vector<8x64xf32>
    %289 = tpu.matmul %288, %287, %cst_112 {dimension_numbers = #tpu.dot_dimension_numbers<[1], [0], [0], [1], [0, 0, 1, 1], [], []>} : vector<8x32xbf16>, vector<32x64xbf16>, vector<8x64xf32> -> vector<8x64xf32>
    %c1_113 = arith.constant 1 : index
    %c0_114 = arith.constant 0 : index
    %c0_115 = arith.constant 0 : index
    %290 = vector.load %arg9[%c1_113, %c0_114, %c0_115] : memref<2x32x64xbf16, #tpu.memory_space<vmem>>, vector<1x32x64xbf16>
    %291 = vector.shape_cast %290 : vector<1x32x64xbf16> to vector<32x64xbf16>
    %292 = arith.truncf %285 : vector<8x32xf32> to vector<8x32xbf16>
    %cst_116 = arith.constant dense<0.000000e+00> : vector<8x64xf32>
    %293 = tpu.matmul %292, %291, %cst_116 {dimension_numbers = #tpu.dot_dimension_numbers<[1], [0], [0], [1], [0, 0, 1, 1], [], []>} : vector<8x32xbf16>, vector<32x64xbf16>, vector<8x64xf32> -> vector<8x64xf32>
    %294 = arith.addf %289, %293 : vector<8x64xf32>
    %cst_117 = arith.constant 0.000000e+00 : f32
    %295 = vector.broadcast %cst_117 : f32 to vector<8x64xf32>
    %296 = arith.maximumf %294, %295 : vector<8x64xf32>
    %c1_118 = arith.constant 1 : index
    %c0_119 = arith.constant 0 : index
    %c0_120 = arith.constant 0 : index
    %297 = vector.load %arg10[%c1_118, %c0_119, %c0_120] : memref<2x64x32xbf16, #tpu.memory_space<vmem>>, vector<1x64x32xbf16>
    %298 = vector.shape_cast %297 : vector<1x64x32xbf16> to vector<64x32xbf16>
    %299 = arith.truncf %296 : vector<8x64xf32> to vector<8x64xbf16>
    %cst_121 = arith.constant dense<0.000000e+00> : vector<8x32xf32>
    %300 = tpu.matmul %299, %298, %cst_121 {dimension_numbers = #tpu.dot_dimension_numbers<[1], [0], [0], [1], [0, 0, 1, 1], [], []>} : vector<8x64xbf16>, vector<64x32xbf16>, vector<8x32xf32> -> vector<8x32xf32>
    %301 = vector.extract_strided_slice %261 {offsets = [2, 0], sizes = [1, 32], strides = [1, 1]} : vector<4x32xf32> to vector<1x32xf32>
    %302 = vector.extract_strided_slice %261 {offsets = [3, 0], sizes = [1, 32], strides = [1, 1]} : vector<4x32xf32> to vector<1x32xf32>
    %cst_122 = arith.constant dense<0.000000e+00> : vector<8xf32>
    %303 = vector.multi_reduction <add>, %300, %cst_122 [1] : vector<8x32xf32> to vector<8xf32>
    %304 = vector.shape_cast %303 : vector<8xf32> to vector<8x1xf32>
    %cst_123 = arith.constant 3.200000e+01 : f32
    %305 = vector.broadcast %cst_123 : f32 to vector<8x1xf32>
    %306 = arith.divf %304, %305 : vector<8x1xf32>
    %307 = vector.broadcast %306 : vector<8x1xf32> to vector<8x32xf32>
    %308 = arith.subf %300, %307 : vector<8x32xf32>
    %309 = arith.mulf %308, %308 : vector<8x32xf32>
    %cst_124 = arith.constant dense<0.000000e+00> : vector<8xf32>
    %310 = vector.multi_reduction <add>, %309, %cst_124 [1] : vector<8x32xf32> to vector<8xf32>
    %311 = vector.shape_cast %310 : vector<8xf32> to vector<8x1xf32>
    %cst_125 = arith.constant 3.200000e+01 : f32
    %312 = vector.broadcast %cst_125 : f32 to vector<8x1xf32>
    %313 = arith.divf %311, %312 : vector<8x1xf32>
    %314 = vector.broadcast %306 : vector<8x1xf32> to vector<8x32xf32>
    %315 = arith.subf %300, %314 : vector<8x32xf32>
    %cst_126 = arith.constant 9.99999974E-6 : f32
    %316 = vector.broadcast %cst_126 : f32 to vector<8x1xf32>
    %317 = arith.addf %313, %316 : vector<8x1xf32>
    %318 = math.rsqrt %317 : vector<8x1xf32>
    %319 = vector.broadcast %318 : vector<8x1xf32> to vector<8x32xf32>
    %320 = arith.mulf %315, %319 : vector<8x32xf32>
    %321 = vector.broadcast %301 : vector<1x32xf32> to vector<8x32xf32>
    %322 = arith.mulf %320, %321 : vector<8x32xf32>
    %323 = vector.broadcast %302 : vector<1x32xf32> to vector<8x32xf32>
    %324 = arith.addf %322, %323 : vector<8x32xf32>
    %325 = arith.addf %174, %324 : vector<8x32xf32>
    %c0_127 = arith.constant 0 : index
    %c0_128 = arith.constant 0 : index
    %c0_129 = arith.constant 0 : index
    %326 = vector.load %arg13[%c0_127, %c0_128, %c0_129] : memref<1x8x32xf32, #tpu.memory_space<vmem>>, vector<1x8x32xf32>
    %327 = vector.shape_cast %326 : vector<1x8x32xf32> to vector<8x32xf32>
    %328 = vector.shape_cast %325 : vector<8x32xf32> to vector<1x8x32xf32>
    tpu.vector_store %arg13[%c0_127, %c0_128, %c0_129], %328 {strides = array<i32>} : memref<1x8x32xf32, #tpu.memory_space<vmem>>, vector<1x8x32xf32>,
    return
  }
  func.func @transform_0(%arg0: i32) -> (i32, i32, i32) {
    %c0_i32 = arith.constant 0 : i32
    %c0_i32_0 = arith.constant 0 : i32
    %c0_i32_1 = arith.constant 0 : i32
    return %arg0, %c0_i32, %c0_i32_0 : i32, i32, i32
  }
  func.func @transform_1(%arg0: i32) -> (i32, i32, i32) {
    %c0_i32 = arith.constant 0 : i32
    %c0_i32_0 = arith.constant 0 : i32
    %c0_i32_1 = arith.constant 0 : i32
    return %arg0, %c0_i32, %c0_i32_0 : i32, i32, i32
  }
  func.func @transform_2(%arg0: i32) -> (i32, i32, i32) {
    %c0_i32 = arith.constant 0 : i32
    %c0_i32_0 = arith.constant 0 : i32
    %c0_i32_1 = arith.constant 0 : i32
    %c0_i32_2 = arith.constant 0 : i32
    return %c0_i32, %c0_i32_0, %c0_i32_1 : i32, i32, i32
  }
  func.func @transform_3(%arg0: i32) -> (i32, i32) {
    %c0_i32 = arith.constant 0 : i32
    %c0_i32_0 = arith.constant 0 : i32
    %c0_i32_1 = arith.constant 0 : i32
    return %c0_i32, %c0_i32_0 : i32, i32
  }
  func.func @transform_4(%arg0: i32) -> (i32, i32, i32) {
    %c0_i32 = arith.constant 0 : i32
    %c0_i32_0 = arith.constant 0 : i32
    %c0_i32_1 = arith.constant 0 : i32
    %c0_i32_2 = arith.constant 0 : i32
    return %c0_i32, %c0_i32_0, %c0_i32_1 : i32, i32, i32
  }
  func.func @transform_5(%arg0: i32) -> (i32, i32, i32) {
    %c0_i32 = arith.constant 0 : i32
    %c0_i32_0 = arith.constant 0 : i32
    %c0_i32_1 = arith.constant 0 : i32
    %c0_i32_2 = arith.constant 0 : i32
    return %c0_i32, %c0_i32_0, %c0_i32_1 : i32, i32, i32
  }
  func.func @transform_6(%arg0: i32) -> (i32, i32, i32) {
    %c0_i32 = arith.constant 0 : i32
    %c0_i32_0 = arith.constant 0 : i32
    %c0_i32_1 = arith.constant 0 : i32
    %c0_i32_2 = arith.constant 0 : i32
    return %c0_i32, %c0_i32_0, %c0_i32_1 : i32, i32, i32
  }
  func.func @transform_7(%arg0: i32) -> (i32, i32, i32) {
    %c0_i32 = arith.constant 0 : i32
    %c0_i32_0 = arith.constant 0 : i32
    %c0_i32_1 = arith.constant 0 : i32
    %c0_i32_2 = arith.constant 0 : i32
    return %c0_i32, %c0_i32_0, %c0_i32_1 : i32, i32, i32
  }
  func.func @transform_8(%arg0: i32) -> (i32, i32, i32) {
    %c0_i32 = arith.constant 0 : i32
    %c0_i32_0 = arith.constant 0 : i32
    %c0_i32_1 = arith.constant 0 : i32
    %c0_i32_2 = arith.constant 0 : i32
    return %c0_i32, %c0_i32_0, %c0_i32_1 : i32, i32, i32
  }
  func.func @transform_9(%arg0: i32) -> (i32, i32, i32) {
    %c0_i32 = arith.constant 0 : i32
    %c0_i32_0 = arith.constant 0 : i32
    %c0_i32_1 = arith.constant 0 : i32
    %c0_i32_2 = arith.constant 0 : i32
    return %c0_i32, %c0_i32_0, %c0_i32_1 : i32, i32, i32
  }
  func.func @transform_10(%arg0: i32) -> (i32, i32, i32) {
    %c0_i32 = arith.constant 0 : i32
    %c0_i32_0 = arith.constant 0 : i32
    %c0_i32_1 = arith.constant 0 : i32
    %c0_i32_2 = arith.constant 0 : i32
    return %c0_i32, %c0_i32_0, %c0_i32_1 : i32, i32, i32
  }
  func.func @transform_11(%arg0: i32) -> (i32, i32, i32) {
    %c0_i32 = arith.constant 0 : i32
    %c0_i32_0 = arith.constant 0 : i32
    %c0_i32_1 = arith.constant 0 : i32
    return %arg0, %c0_i32, %c0_i32_0 : i32, i32, i32
  }
  func.func @transform_12(%arg0: i32) -> (i32, i32, i32) {
    %c0_i32 = arith.constant 0 : i32
    %c0_i32_0 = arith.constant 0 : i32
    %c0_i32_1 = arith.constant 0 : i32
    return %arg0, %c0_i32, %c0_i32_0 : i32, i32, i32
  }
}

</mosaic_0001>

<llo_original>
// kernel: tpu_custom_call.1
$region0: #{tpu_custom_call.1}
  #allocation0 [shape = 'u32[]', space=smem, size = 0x4, offset = 0x4, fixed_abs, tag = 'smem constant byte address 0x4 - core index']
  #allocation1 [shape = 'u32[144,128]{1,0:T(1,128)}', space=vmem, size = 0x12000, scoped, tag = 'internal scratch']
  %s0 = inlined_call_operand.vmem [shape: f32[2,16,32], index: 0, kind: input, shape index: {}]
  %s1 = inlined_call_operand.hbm [shape: f32[2,8,32], index: 1, kind: input, shape index: {}]
  %s2 = inlined_call_operand.vmem [shape: bf16[2,32,32], index: 2, kind: input, shape index: {}]
  %s3 = inlined_call_operand.hbm [shape: f32[2,32], index: 3, kind: input, shape index: {}]
  %s4 = inlined_call_operand.vmem [shape: bf16[2,32,32], index: 4, kind: input, shape index: {}]
  %s5 = inlined_call_operand.hbm [shape: bf16[2,32,64], index: 5, kind: input, shape index: {}]
  %s6 = inlined_call_operand.hbm [shape: bf16[2,32,32], index: 6, kind: input, shape index: {}]
  %s7 = inlined_call_operand.hbm [shape: bf16[2,32,64], index: 7, kind: input, shape index: {}]
  %s8 = inlined_call_operand.hbm [shape: bf16[2,32,64], index: 8, kind: input, shape index: {}]
  %s9 = inlined_call_operand.vmem [shape: bf16[2,64,32], index: 9, kind: input, shape index: {}]
  %s10 = inlined_call_operand.vmem [shape: f32[2,4,32], index: 10, kind: input, shape index: {}]
  %s11 = inlined_call_operand.hbm [shape: f32[2,16,32], index: 11, kind: output, shape index: {0}]
  %s12 = inlined_call_operand.hbm [shape: f32[2,8,32], index: 12, kind: output, shape index: {1}]
  %13 = xla_tuple %s11, %s12
  %s14 = sld [smem:[#allocation0]]
  $region109: #{tpu_custom_call.1} parent=0
    _
  %s16 = ssub.s32 1, %s14
  %s17 = scalar_select 0, %s16, %s14
  $region1: #{tpu_custom_call.1} parent=0
    #allocation2 [shape = 'u8[8192]{0}', space=vmem, size = 0x2000, scoped, tag = 'input window, operand 1']
    #allocation3 [shape = 's32[2]{0}', space=sflag, size = 0x8, scoped, tag = 'scoped memory for tpu_custom_call.1']
    #allocation4 [shape = 's32[2]{0}', space=sflag, size = 0x8, scoped, tag = 'scoped memory for tpu_custom_call.1']
    #allocation5 [shape = 'u8[1024]{0}', space=vmem, size = 0x400, scoped, tag = 'input window, operand 3, single buffered']
    #allocation6 [shape = 's32[1]{0}', space=sflag, size = 0x4, scoped, tag = 'scoped memory for tpu_custom_call.1']
    #allocation7 [shape = 'u8[16384]{0}', space=vmem, size = 0x4000, scoped, tag = 'input window, operand 5, single buffered']
    #allocation8 [shape = 'u8[16384]{0}', space=vmem, size = 0x4000, scoped, tag = 'input window, operand 6, single buffered']
    #allocation9 [shape = 's32[1]{0}', space=sflag, size = 0x4, scoped, tag = 'scoped memory for tpu_custom_call.1']
    #allocation10 [shape = 'u8[16384]{0}', space=vmem, size = 0x4000, scoped, tag = 'input window, operand 7, single buffered']
    #allocation11 [shape = 'u8[16384]{0}', space=vmem, size = 0x4000, scoped, tag = 'input window, operand 8, single buffered']
    #allocation12 [shape = 's32[1]{0}', space=sflag, size = 0x4, scoped, tag = 'scoped memory for tpu_custom_call.1']
    #allocation13 [shape = 'u8[16384]{0}', space=vmem, size = 0x4000, scoped, tag = 'output window, operand 0']
    #allocation14 [shape = 'u8[8192]{0}', space=vmem, size = 0x2000, scoped, tag = 'output window, operand 1']
    #allocation15 [shape = 's32[2]{0}', space=sflag, size = 0x8, scoped, tag = 'scoped memory for tpu_custom_call.1']
    %18 = vsyncpa [#allocation3], 0
    %s19 = scalar_lea.sflag [#allocation3], 1
    %20 = vsyncpa %s19, 0
    %21 = vsyncpa [#allocation6], 0
    %22 = vsyncpa [#allocation9], 0
    %23 = vsyncpa [#allocation12], 0
    %24 = vsyncpa [#allocation4], 0
    %s25 = scalar_lea.sflag [#allocation4], 1
    %26 = vsyncpa %s25, 0
    %27 = vsyncpa [#allocation15], 0
    %s28 = scalar_lea.sflag [#allocation15], 1
    %29 = vsyncpa %s28, 0
    loop: start=0, step=1, limit=4
    $region2: #{tpu_custom_call.1} parent=1 // loop_pre_header
      _
    $region3: #{tpu_custom_call.1} parent=1 // loop_header
      %s31 = sphi 0, %s35
      %p32 = scmp.ge.s32.totalorder %s31, 4
      %s41 = sphi 0, %s43
      %s44 = sphi 0, %s41
      %s45 = sphi 0, %s44
      %s61 = sphi 0, %s45
      %s67 = sphi 0, %s69
      %s70 = sphi 0, %s67
      %s71 = sphi 0, %s70
      %s87 = sphi 0, %s71
      %s91 = sphi 0, %s91
      %s93 = sphi 0, %s91
      %s94 = sphi 0, %s93
      %s108 = sphi 0, %s94
      %s112 = sphi 0, %s112
      %s114 = sphi 0, %s112
      %s115 = sphi 0, %s114
      %s129 = sphi 0, %s115
      %s133 = sphi 0, %s133
      %s135 = sphi 0, %s133
      %s136 = sphi 0, %s135
      %s150 = sphi 0, %s136
      %s154 = sphi 0, %s154
      %s156 = sphi 0, %s154
      %s157 = sphi 0, %s156
      %s171 = sphi 0, %s157
      %s175 = sphi 0, %s175
      %s177 = sphi 0, %s175
      %s178 = sphi 0, %s177
      %s192 = sphi 0, %s178
      %s196 = sphi 0, %s196
      %s198 = sphi 0, %s196
      %s199 = sphi 0, %s198
      %s213 = sphi 0, %s199
      %s217 = sphi 0, %s217
      %s219 = sphi 0, %s217
      %s220 = sphi 0, %s219
      %s234 = sphi 0, %s220
      %s238 = sphi 0, %s238
      %s240 = sphi 0, %s238
      %s241 = sphi 0, %s240
      %s255 = sphi 0, %s241
      %s259 = sphi 0, %s259
      %s261 = sphi 0, %s259
      %s262 = sphi 0, %s261
      %s276 = sphi 0, %s262
      %s282 = sphi 0, %s284
      %s285 = sphi 0, %s282
      %s286 = sphi 0, %s285
      %s302 = sphi 0, %s286
      %s308 = sphi 0, %s310
      %s311 = sphi 0, %s308
      %s312 = sphi 0, %s311
      %s328 = sphi 0, %s312
    $region4: #{tpu_custom_call.1} parent=1 // loop_header_branch
      %34 = sbr.rel (%p32) target = $region8
    $region5: #{tpu_custom_call.1} parent=1 // loop_body
      %s36 = ssub.s32 %s31, 1
      %s37 = ssub.s32 %s31, 2
      %s38 = sadd.s32 %s31, 1
      %s39 = ssub.s32 %s31, %s38
      %p40 = scmp.eq.s32.totalorder %s39, 0
      %s42 = sadd.s32 %s41, 1
      %s43 = scalar_select %p40, %s41, %s42
      %p46 = pneg %p40
      %p47 = scmp.eq.s32.totalorder %s31, 1
      %p48 = por %p46, %p47
      %p49 = scmp.ne.s32.totalorder %s41, %s44
      %p50 = scmp.eq.s32.totalorder %s31, 0
      %p51 = por %p49, %p50
      %p52 = scmp.ne.s32.totalorder %s41, %s44
      %p53 = scmp.eq.s32.totalorder %s36, 1
      %p54 = por %p52, %p53
      %p55 = scmp.ne.s32.totalorder %s44, %s45
      %p56 = scmp.eq.s32.totalorder %s36, 0
      %p57 = por %p55, %p56
      %p58 = scmp.ne.s32.totalorder %s44, %s45
      %p59 = scmp.eq.s32.totalorder %s37, 1
      %p60 = por %p58, %p59
      %p62 = scmp.ne.s32.totalorder %s45, %s61
      %p63 = scmp.eq.s32.totalorder %s37, 0
      %p64 = por %p62, %p63
      %s65 = ssub.s32 %s31, %s38
      %p66 = scmp.eq.s32.totalorder %s65, 0
      %s68 = sadd.s32 %s67, 1
      %s69 = scalar_select %p66, %s67, %s68
      %p72 = pneg %p66
      %p73 = scmp.eq.s32.totalorder %s31, 1
      %p74 = por %p72, %p73
      %p75 = scmp.ne.s32.totalorder %s67, %s70
      %p76 = scmp.eq.s32.totalorder %s31, 0
      %p77 = por %p75, %p76
      %p78 = scmp.ne.s32.totalorder %s67, %s70
      %p79 = scmp.eq.s32.totalorder %s36, 1
      %p80 = por %p78, %p79
      %p81 = scmp.ne.s32.totalorder %s70, %s71
      %p82 = scmp.eq.s32.totalorder %s36, 0
      %p83 = por %p81, %p82
      %p84 = scmp.ne.s32.totalorder %s70, %s71
      %p85 = scmp.eq.s32.totalorder %s37, 1
      %p86 = por %p84, %p85
      %p88 = scmp.ne.s32.totalorder %s71, %s87
      %p89 = scmp.eq.s32.totalorder %s37, 0
      %p90 = por %p88, %p89
      %s92 = sadd.s32 %s91, 1
      %p95 = scmp.eq.s32.totalorder %s31, 1
      %p96 = scmp.ne.s32.totalorder %s91, %s93
      %p97 = scmp.eq.s32.totalorder %s31, 0
      %p98 = por %p96, %p97
      %p99 = scmp.ne.s32.totalorder %s91, %s93
      %p100 = scmp.eq.s32.totalorder %s36, 1
      %p101 = por %p99, %p100
      %p102 = scmp.ne.s32.totalorder %s93, %s94
      %p103 = scmp.eq.s32.totalorder %s36, 0
      %p104 = por %p102, %p103
      %p105 = scmp.ne.s32.totalorder %s93, %s94
      %p106 = scmp.eq.s32.totalorder %s37, 1
      %p107 = por %p105, %p106
      %p109 = scmp.ne.s32.totalorder %s94, %s108
      %p110 = scmp.eq.s32.totalorder %s37, 0
      %p111 = por %p109, %p110
      %s113 = sadd.s32 %s112, 1
      %p116 = scmp.eq.s32.totalorder %s31, 1
      %p117 = scmp.ne.s32.totalorder %s112, %s114
      %p118 = scmp.eq.s32.totalorder %s31, 0
      %p119 = por %p117, %p118
      %p120 = scmp.ne.s32.totalorder %s112, %s114
      %p121 = scmp.eq.s32.totalorder %s36, 1
      %p122 = por %p120, %p121
      %p123 = scmp.ne.s32.totalorder %s114, %s115
      %p124 = scmp.eq.s32.totalorder %s36, 0
      %p125 = por %p123, %p124
      %p126 = scmp.ne.s32.totalorder %s114, %s115
      %p127 = scmp.eq.s32.totalorder %s37, 1
      %p128 = por %p126, %p127
      %p130 = scmp.ne.s32.totalorder %s115, %s129
      %p131 = scmp.eq.s32.totalorder %s37, 0
      %p132 = por %p130, %p131
      %s134 = sadd.s32 %s133, 1
      %p137 = scmp.eq.s32.totalorder %s31, 1
      %p138 = scmp.ne.s32.totalorder %s133, %s135
      %p139 = scmp.eq.s32.totalorder %s31, 0
      %p140 = por %p138, %p139
      %p141 = scmp.ne.s32.totalorder %s133, %s135
      %p142 = scmp.eq.s32.totalorder %s36, 1
      %p143 = por %p141, %p142
      %p144 = scmp.ne.s32.totalorder %s135, %s136
      %p145 = scmp.eq.s32.totalorder %s36, 0
      %p146 = por %p144, %p145
      %p147 = scmp.ne.s32.totalorder %s135, %s136
      %p148 = scmp.eq.s32.totalorder %s37, 1
      %p149 = por %p147, %p148
      %p151 = scmp.ne.s32.totalorder %s136, %s150
      %p152 = scmp.eq.s32.totalorder %s37, 0
      %p153 = por %p151, %p152
      %s155 = sadd.s32 %s154, 1
      %p158 = scmp.eq.s32.totalorder %s31, 1
      %p159 = scmp.ne.s32.totalorder %s154, %s156
      %p160 = scmp.eq.s32.totalorder %s31, 0
      %p161 = por %p159, %p160
      %p162 = scmp.ne.s32.totalorder %s154, %s156
      %p163 = scmp.eq.s32.totalorder %s36, 1
      %p164 = por %p162, %p163
      %p165 = scmp.ne.s32.totalorder %s156, %s157
      %p166 = scmp.eq.s32.totalorder %s36, 0
      %p167 = por %p165, %p166
      %p168 = scmp.ne.s32.totalorder %s156, %s157
      %p169 = scmp.eq.s32.totalorder %s37, 1
      %p170 = por %p168, %p169
      %p172 = scmp.ne.s32.totalorder %s157, %s171
      %p173 = scmp.eq.s32.totalorder %s37, 0
      %p174 = por %p172, %p173
      %s176 = sadd.s32 %s175, 1
      %p179 = scmp.eq.s32.totalorder %s31, 1
      %p180 = scmp.ne.s32.totalorder %s175, %s177
      %p181 = scmp.eq.s32.totalorder %s31, 0
      %p182 = por %p180, %p181
      %p183 = scmp.ne.s32.totalorder %s175, %s177
      %p184 = scmp.eq.s32.totalorder %s36, 1
      %p185 = por %p183, %p184
      %p186 = scmp.ne.s32.totalorder %s177, %s178
      %p187 = scmp.eq.s32.totalorder %s36, 0
      %p188 = por %p186, %p187
      %p189 = scmp.ne.s32.totalorder %s177, %s178
      %p190 = scmp.eq.s32.totalorder %s37, 1
      %p191 = por %p189, %p190
      %p193 = scmp.ne.s32.totalorder %s178, %s192
      %p194 = scmp.eq.s32.totalorder %s37, 0
      %p195 = por %p193, %p194
      %s197 = sadd.s32 %s196, 1
      %p200 = scmp.eq.s32.totalorder %s31, 1
      %p201 = scmp.ne.s32.totalorder %s196, %s198
      %p202 = scmp.eq.s32.totalorder %s31, 0
      %p203 = por %p201, %p202
      %p204 = scmp.ne.s32.totalorder %s196, %s198
      %p205 = scmp.eq.s32.totalorder %s36, 1
      %p206 = por %p204, %p205
      %p207 = scmp.ne.s32.totalorder %s198, %s199
      %p208 = scmp.eq.s32.totalorder %s36, 0
      %p209 = por %p207, %p208
      %p210 = scmp.ne.s32.totalorder %s198, %s199
      %p211 = scmp.eq.s32.totalorder %s37, 1
      %p212 = por %p210, %p211
      %p214 = scmp.ne.s32.totalorder %s199, %s213
      %p215 = scmp.eq.s32.totalorder %s37, 0
      %p216 = por %p214, %p215
      %s218 = sadd.s32 %s217, 1
      %p221 = scmp.eq.s32.totalorder %s31, 1
      %p222 = scmp.ne.s32.totalorder %s217, %s219
      %p223 = scmp.eq.s32.totalorder %s31, 0
      %p224 = por %p222, %p223
      %p225 = scmp.ne.s32.totalorder %s217, %s219
      %p226 = scmp.eq.s32.totalorder %s36, 1
      %p227 = por %p225, %p226
      %p228 = scmp.ne.s32.totalorder %s219, %s220
      %p229 = scmp.eq.s32.totalorder %s36, 0
      %p230 = por %p228, %p229
      %p231 = scmp.ne.s32.totalorder %s219, %s220
      %p232 = scmp.eq.s32.totalorder %s37, 1
      %p233 = por %p231, %p232
      %p235 = scmp.ne.s32.totalorder %s220, %s234
      %p236 = scmp.eq.s32.totalorder %s37, 0
      %p237 = por %p235, %p236
      %s239 = sadd.s32 %s238, 1
      %p242 = scmp.eq.s32.totalorder %s31, 1
      %p243 = scmp.ne.s32.totalorder %s238, %s240
      %p244 = scmp.eq.s32.totalorder %s31, 0
      %p245 = por %p243, %p244
      %p246 = scmp.ne.s32.totalorder %s238, %s240
      %p247 = scmp.eq.s32.totalorder %s36, 1
      %p248 = por %p246, %p247
      %p249 = scmp.ne.s32.totalorder %s240, %s241
      %p250 = scmp.eq.s32.totalorder %s36, 0
      %p251 = por %p249, %p250
      %p252 = scmp.ne.s32.totalorder %s240, %s241
      %p253 = scmp.eq.s32.totalorder %s37, 1
      %p254 = por %p252, %p253
      %p256 = scmp.ne.s32.totalorder %s241, %s255
      %p257 = scmp.eq.s32.totalorder %s37, 0
      %p258 = por %p256, %p257
      %s260 = sadd.s32 %s259, 1
      %p263 = scmp.eq.s32.totalorder %s31, 1
      %p264 = scmp.ne.s32.totalorder %s259, %s261
      %p265 = scmp.eq.s32.totalorder %s31, 0
      %p266 = por %p264, %p265
      %p267 = scmp.ne.s32.totalorder %s259, %s261
      %p268 = scmp.eq.s32.totalorder %s36, 1
      %p269 = por %p267, %p268
      %p270 = scmp.ne.s32.totalorder %s261, %s262
      %p271 = scmp.eq.s32.totalorder %s36, 0
      %p272 = por %p270, %p271
      %p273 = scmp.ne.s32.totalorder %s261, %s262
      %p274 = scmp.eq.s32.totalorder %s37, 1
      %p275 = por %p273, %p274
      %p277 = scmp.ne.s32.totalorder %s262, %s276
      %p278 = scmp.eq.s32.totalorder %s37, 0
      %p279 = por %p277, %p278
      %s280 = ssub.s32 %s31, %s38
      %p281 = scmp.eq.s32.totalorder %s280, 0
      %s283 = sadd.s32 %s282, 1
      %s284 = scalar_select %p281, %s282, %s283
      %p287 = pneg %p281
      %p288 = scmp.eq.s32.totalorder %s31, 1
      %p289 = por %p287, %p288
      %p290 = scmp.ne.s32.totalorder %s282, %s285
      %p291 = scmp.eq.s32.totalorder %s31, 0
      %p292 = por %p290, %p291
      %p293 = scmp.ne.s32.totalorder %s282, %s285
      %p294 = scmp.eq.s32.totalorder %s36, 1
      %p295 = por %p293, %p294
      %p296 = scmp.ne.s32.totalorder %s285, %s286
      %p297 = scmp.eq.s32.totalorder %s36, 0
      %p298 = por %p296, %p297
      %p299 = scmp.ne.s32.totalorder %s285, %s286
      %p300 = scmp.eq.s32.totalorder %s37, 1
      %p301 = por %p299, %p300
      %p303 = scmp.ne.s32.totalorder %s286, %s302
      %p304 = scmp.eq.s32.totalorder %s37, 0
      %p305 = por %p303, %p304
      %s306 = ssub.s32 %s31, %s38
      %p307 = scmp.eq.s32.totalorder %s306, 0
      %s309 = sadd.s32 %s308, 1
      %s310 = scalar_select %p307, %s308, %s309
      %p313 = pneg %p307
      %p314 = scmp.eq.s32.totalorder %s31, 1
      %p315 = por %p313, %p314
      %p316 = scmp.ne.s32.totalorder %s308, %s311
      %p317 = scmp.eq.s32.totalorder %s31, 0
      %p318 = por %p316, %p317
      %p319 = scmp.ne.s32.totalorder %s308, %s311
      %p320 = scmp.eq.s32.totalorder %s36, 1
      %p321 = por %p319, %p320
      %p322 = scmp.ne.s32.totalorder %s311, %s312
      %p323 = scmp.eq.s32.totalorder %s36, 0
      %p324 = por %p322, %p323
      %p325 = scmp.ne.s32.totalorder %s311, %s312
      %p326 = scmp.eq.s32.totalorder %s37, 1
      %p327 = por %p325, %p326
      %p329 = scmp.ne.s32.totalorder %s312, %s328
      %p330 = scmp.eq.s32.totalorder %s37, 0
      %p331 = por %p329, %p330
      %p332 = scmp.le.s32.totalorder 1, %s31
      %p333 = scmp.lt.s32.totalorder %s31, 3
      %p334 = pnand %p332, %p333
      %p335 = pneg %p334
      // Predicated region
      $region9: #{tpu_custom_call.1} parent=5 // pred_check
        _
      $region10: #{tpu_custom_call.1} parent=5 // pred_check_branch
        %337 = sbr.rel (%p334) target = $region12
      $region11: #{tpu_custom_call.1} parent=5 // pred_region
        %s338 = ssub.s32 %s31, 1
        // Predicated region
        $region13: #{tpu_custom_call.1} parent=11 // pred_check
          %p339 = pneg %p104
        $region14: #{tpu_custom_call.1} parent=11 // pred_check_branch
          %341 = sbr.rel (%p339) target = $region16
        $region15: #{tpu_custom_call.1} parent=11 // pred_region
          _
        $region16: #{tpu_custom_call.1} parent=11 // pred_fallthru
          _
        // Predicated region
        $region17: #{tpu_custom_call.1} parent=11 // pred_check
          %p342 = pneg %p125
        $region18: #{tpu_custom_call.1} parent=11 // pred_check_branch
          %344 = sbr.rel (%p342) target = $region20
        $region19: #{tpu_custom_call.1} parent=11 // pred_region
          %s346 = ssub.s32 32, 32
          %347 = vsyncadd [#allocation6], %s346
          %s349 = sshll.u32 [#allocation5], 4
          %s350 = int_to_ptr.vmem [resolvable:$true] %s349
          %352 = dma.hbm_to_vmem [thread:$0]  %s3, 32, %s350, [#allocation6]
        $region20: #{tpu_custom_call.1} parent=11 // pred_fallthru
          _
        // Predicated region
        $region21: #{tpu_custom_call.1} parent=11 // pred_check
          %p353 = pneg %p146
        $region22: #{tpu_custom_call.1} parent=11 // pred_check_branch
          %355 = sbr.rel (%p353) target = $region24
        $region23: #{tpu_custom_call.1} parent=11 // pred_region
          _
        $region24: #{tpu_custom_call.1} parent=11 // pred_fallthru
          _
        // Predicated region
        $region25: #{tpu_custom_call.1} parent=11 // pred_check
          %p356 = pneg %p167
        $region26: #{tpu_custom_call.1} parent=11 // pred_check_branch
          %358 = sbr.rel (%p356) target = $region28
        $region27: #{tpu_custom_call.1} parent=11 // pred_region
          %s360 = ssub.s32 512, 512
          %361 = vsyncadd [#allocation6], %s360
          %s362 = sshll.u32 [#allocation7], 4
          %s363 = int_to_ptr.vmem [resolvable:$true] %s362
          %368 = dma.hbm_to_vmem [thread:$0]  %s5, 512, %s363, [#allocation6], 64, 64, 4
        $region28: #{tpu_custom_call.1} parent=11 // pred_fallthru
          _
        // Predicated region
        $region29: #{tpu_custom_call.1} parent=11 // pred_check
          %p369 = pneg %p188
        $region30: #{tpu_custom_call.1} parent=11 // pred_check_branch
          %371 = sbr.rel (%p369) target = $region32
        $region31: #{tpu_custom_call.1} parent=11 // pred_region
          %s373 = ssub.s32 512, 512
          %374 = vsyncadd [#allocation9], %s373
          %s375 = sshll.u32 [#allocation8], 4
          %s376 = int_to_ptr.vmem [resolvable:$true] %s375
          %381 = dma.hbm_to_vmem [thread:$0]  %s6, 512, %s376, [#allocation9], 64, 64, 4
        $region32: #{tpu_custom_call.1} parent=11 // pred_fallthru
          _
        // Predicated region
        $region33: #{tpu_custom_call.1} parent=11 // pred_check
          %p382 = pneg %p209
        $region34: #{tpu_custom_call.1} parent=11 // pred_check_branch
          %384 = sbr.rel (%p382) target = $region36
        $region35: #{tpu_custom_call.1} parent=11 // pred_region
          %s386 = ssub.s32 512, 512
          %387 = vsyncadd [#allocation9], %s386
          %s388 = sshll.u32 [#allocation10], 4
          %s389 = int_to_ptr.vmem [resolvable:$true] %s388
          %394 = dma.hbm_to_vmem [thread:$0]  %s7, 512, %s389, [#allocation9], 64, 64, 4
        $region36: #{tpu_custom_call.1} parent=11 // pred_fallthru
          _
        // Predicated region
        $region37: #{tpu_custom_call.1} parent=11 // pred_check
          %p395 = pneg %p230
        $region38: #{tpu_custom_call.1} parent=11 // pred_check_branch
          %397 = sbr.rel (%p395) target = $region40
        $region39: #{tpu_custom_call.1} parent=11 // pred_region
          %s399 = ssub.s32 512, 512
          %400 = vsyncadd [#allocation12], %s399
          %s401 = sshll.u32 [#allocation11], 4
          %s402 = int_to_ptr.vmem [resolvable:$true] %s401
          %407 = dma.hbm_to_vmem [thread:$0]  %s8, 512, %s402, [#allocation12], 64, 64, 4
        $region40: #{tpu_custom_call.1} parent=11 // pred_fallthru
          _
        // Predicated region
        $region41: #{tpu_custom_call.1} parent=11 // pred_check
          %p408 = pneg %p251
        $region42: #{tpu_custom_call.1} parent=11 // pred_check_branch
          %410 = sbr.rel (%p408) target = $region44
        $region43: #{tpu_custom_call.1} parent=11 // pred_region
          _
        $region44: #{tpu_custom_call.1} parent=11 // pred_fallthru
          _
        // Predicated region
        $region45: #{tpu_custom_call.1} parent=11 // pred_check
          %p411 = pneg %p272
        $region46: #{tpu_custom_call.1} parent=11 // pred_check_branch
          %413 = sbr.rel (%p411) target = $region48
        $region47: #{tpu_custom_call.1} parent=11 // pred_region
          _
        $region48: #{tpu_custom_call.1} parent=11 // pred_fallthru
          _
      $region12: #{tpu_custom_call.1} parent=5 // pred_fallthru
        _
      %p414 = scmp.lt.s32.totalorder %s31, 2
      // Predicated region
      $region49: #{tpu_custom_call.1} parent=5 // pred_check
        %p415 = pneg %p414
      $region50: #{tpu_custom_call.1} parent=5 // pred_check_branch
        %417 = sbr.rel (%p415) target = $region52
      $region51: #{tpu_custom_call.1} parent=5 // pred_region
        // Predicated region
        $region53: #{tpu_custom_call.1} parent=51 // pred_check
          %p418 = pneg %p51
        $region54: #{tpu_custom_call.1} parent=51 // pred_check_branch
          %420 = sbr.rel (%p418) target = $region56
        $region55: #{tpu_custom_call.1} parent=51 // pred_region
          %p421 = scmp.lt.s32.totalorder %s31, 1
          %s422 = scalar_select %p421, %s31, 1
          %s423 = smul.addr %s422, 2
          %s424 = smul.addr %s423, 8
          %s425 = scalar_lea.vmem %s0, %s424
        $region56: #{tpu_custom_call.1} parent=51 // pred_fallthru
          _
        // Predicated region
        $region57: #{tpu_custom_call.1} parent=51 // pred_check
          %p426 = pneg %p77
        $region58: #{tpu_custom_call.1} parent=51 // pred_check_branch
          %428 = sbr.rel (%p426) target = $region60
        $region59: #{tpu_custom_call.1} parent=51 // pred_region
          %s429 = sand.u32 %s67, 1
          %s430 = scalar_lea.sflag [#allocation3], %s429
          %s431 = sand.u32 %s67, 1
          %s432 = smul.addr %s431, 8
          %s433 = scalar_lea.vmem [#allocation2], %s432
          %s435 = ssub.s32 128, 128
          %436 = vsyncadd %s430, %s435
          %s437 = smul.addr %s31, 128
          %s438 = scalar_lea.hbm %s1, %s437
          %s440 = sshll.u32 %s433, 4
          %s441 = int_to_ptr.vmem [resolvable:$true] %s440
          %443 = dma.hbm_to_vmem [thread:$0]  %s438, 128, %s441, %s430
        $region60: #{tpu_custom_call.1} parent=51 // pred_fallthru
          _
      $region52: #{tpu_custom_call.1} parent=5 // pred_fallthru
        _
      %p444 = scmp.le.s32.totalorder 1, %s31
      %p445 = scmp.lt.s32.totalorder %s31, 3
      %p446 = pnand %p444, %p445
      %p447 = pneg %p446
      // Predicated region
      $region61: #{tpu_custom_call.1} parent=5 // pred_check
        _
      $region62: #{tpu_custom_call.1} parent=5 // pred_check_branch
        %449 = sbr.rel (%p446) target = $region64
      $region63: #{tpu_custom_call.1} parent=5 // pred_region
        %s450 = ssub.s32 %s31, 1
        %s451 = sand.u32 %s70, 1
        %s452 = scalar_lea.sflag [#allocation3], %s451
        %s453 = sand.u32 %s70, 1
        %s454 = smul.addr %s453, 8
        %s455 = scalar_lea.vmem [#allocation2], %s454
        // Predicated region
        $region65: #{tpu_custom_call.1} parent=63 // pred_check
          %p456 = pneg %p83
        $region66: #{tpu_custom_call.1} parent=63 // pred_check_branch
          %458 = sbr.rel (%p456) target = $region68
        $region67: #{tpu_custom_call.1} parent=63 // pred_region
          %459 = dma.done %s452, 128
        $region68: #{tpu_custom_call.1} parent=63 // pred_fallthru
          _
        // Predicated region
        $region69: #{tpu_custom_call.1} parent=63 // pred_check
          %p460 = pneg %p125
        $region70: #{tpu_custom_call.1} parent=63 // pred_check_branch
          %462 = sbr.rel (%p460) target = $region72
        $region71: #{tpu_custom_call.1} parent=63 // pred_region
          %463 = dma.done [#allocation6], 32
        $region72: #{tpu_custom_call.1} parent=63 // pred_fallthru
          _
        // Predicated region
        $region73: #{tpu_custom_call.1} parent=63 // pred_check
          %p464 = pneg %p167
        $region74: #{tpu_custom_call.1} parent=63 // pred_check_branch
          %466 = sbr.rel (%p464) target = $region76
        $region75: #{tpu_custom_call.1} parent=63 // pred_region
          %467 = dma.done [#allocation6], 512
        $region76: #{tpu_custom_call.1} parent=63 // pred_fallthru
          _
        // Predicated region
        $region77: #{tpu_custom_call.1} parent=63 // pred_check
          %p468 = pneg %p188
        $region78: #{tpu_custom_call.1} parent=63 // pred_check_branch
          %470 = sbr.rel (%p468) target = $region80
        $region79: #{tpu_custom_call.1} parent=63 // pred_region
          %471 = dma.done [#allocation9], 512
        $region80: #{tpu_custom_call.1} parent=63 // pred_fallthru
          _
        // Predicated region
        $region81: #{tpu_custom_call.1} parent=63 // pred_check
          %p472 = pneg %p209
        $region82: #{tpu_custom_call.1} parent=63 // pred_check_branch
          %474 = sbr.rel (%p472) target = $region84
        $region83: #{tpu_custom_call.1} parent=63 // pred_region
          %475 = dma.done [#allocation9], 512
        $region84: #{tpu_custom_call.1} parent=63 // pred_fallthru
          _
        // Predicated region
        $region85: #{tpu_custom_call.1} parent=63 // pred_check
          %p476 = pneg %p230
        $region86: #{tpu_custom_call.1} parent=63 // pred_check_branch
          %478 = sbr.rel (%p476) target = $region88
        $region87: #{tpu_custom_call.1} parent=63 // pred_region
          %479 = dma.done [#allocation12], 512
        $region88: #{tpu_custom_call.1} parent=63 // pred_fallthru
          _
        %p480 = scmp.lt.s32.totalorder %s36, 1
        %s481 = scalar_select %p480, %s36, 1
        %s482 = smul.addr %s481, 2
        %s483 = smul.addr %s482, 8
        %s484 = scalar_lea.vmem %s0, %s483
        %p485 = pneg %p57
        %p486 = pneg %p54
        %s487 = sand.u32 %s70, 1
        %s488 = scalar_lea.sflag [#allocation3], %s487
        %s489 = sand.u32 %s70, 1
        %s490 = smul.addr %s489, 8
        %s491 = scalar_lea.vmem [#allocation2], %s490
        %p492 = pneg %p83
        %p493 = pneg %p80
        %p494 = pneg %p104
        %p495 = pneg %p101
        %p496 = pneg %p125
        %p497 = pneg %p122
        %p498 = pneg %p146
        %p499 = pneg %p143
        %p500 = pneg %p167
        %p501 = pneg %p164
        %p502 = pneg %p188
        %p503 = pneg %p185
        %p504 = pneg %p209
        %p505 = pneg %p206
        %p506 = pneg %p230
        %p507 = pneg %p227
        %p508 = pneg %p251
        %p509 = pneg %p248
        %p510 = pneg %p272
        %p511 = pneg %p269
        %p512 = pneg %p298
        %p513 = pneg %p295
        %s514 = sand.u32 %s285, 1
        %s515 = scalar_lea.sflag [#allocation4], %s514
        %s516 = sand.u32 %s285, 1
        %s517 = smul.addr %s516, 16
        %s518 = scalar_lea.vmem [#allocation13], %s517
        %p519 = pneg %p324
        %p520 = pneg %p321
        %s521 = sand.u32 %s311, 1
        %s522 = scalar_lea.sflag [#allocation15], %s521
        %s523 = sand.u32 %s311, 1
        %s524 = smul.addr %s523, 8
        %s525 = scalar_lea.vmem [#allocation14], %s524
        %p526 = scmp.lt.s32.totalorder %s36, 1
        %s527 = scalar_select %p526, %s36, 1
        %s528 = smul.addr %s527, 2
        %s529 = smul.addr %s528, 8
        %s530 = scalar_lea.vmem %s0, %s529
        %v532 = vld [vmem:[%s530] sm:$0xff]
        %v533 = vld [vmem:[%s530 + $0x8] sm:$0xff]
        %v534 = vld [vmem:[%s455] sm:$0xff]
        %v535 = vld [vmem:[%s2] sm:$0xf]
        %v536 = vld [vmem:[%s2 + $0x4] sm:$0xf]
        %v537 = vld [vmem:[%s2 + $0x8] sm:$0xf]
        %v538 = vld [vmem:[%s2 + $0xc] sm:$0xf]
        %v539 = vpack.c.bf16 %v533, %v532
        %v540 = vld [vmem:[#allocation5] sm:$0x1]
        %v541 = vlaneseq
        %v542 = vshrl.u32 %v541, 7
        %v543 = vsub.s32 0, %v542
        %v544 = vrot.slane %v540, %v543
        %v549 = vunpack.c.l.b16 %v535
        %v550 = vunpack.c.l.b16 %v536
        %v551 = vunpack.c.l.b16 %v537
        %v552 = vunpack.c.l.b16 %v538
        %v553 = vpack.c.b16 %v550, %v549
        %v554 = vpack.c.b16 %v552, %v551
        %vm557 = vcmask 261120
        %v559 = vsel %vm557, %v539, 0
        %561 = vmatprep.subr.bf16.mxu0 0
        %562 = vmatpush1.bf16.msra.mxu0 0
        %563 = vmatprep.subr.bf16.mxu0 0
        %564 = vmatpush1.bf16.msra.mxu0 0
        %565 = vmatprep.subr.bf16.mxu0 0
        %566 = vmatpush1.bf16.msra.mxu0 0
        %567 = vmatprep.subr.bf16.mxu0 0
        %568 = vmatpush1.bf16.msra.mxu0 0
        %569 = vmatprep.subr.bf16.mxu0 0
        %570 = vmatpush1.bf16.msra.mxu0 0
        %571 = vmatprep.subr.bf16.mxu0 0
        %572 = vmatpush1.bf16.msra.mxu0 0
        %573 = vmatprep.subr.bf16.mxu0 0
        %574 = vmatpush1.bf16.msra.mxu0 %v554
        %575 = vmatprep.subr.bf16.mxu0 0
        %576 = vmatpush1.bf16.msra.mxu0 %v553
        %577 = vmatprep.subr.bf16.mxu0 0
        %578 = vmatpush2.bf16.msra.mxu0 0
        %579 = vmatprep.subr.bf16.mxu0 0
        %580 = vmatpush2.bf16.msra.mxu0 0
        %581 = vmatprep.subr.bf16.mxu0 0
        %582 = vmatpush2.bf16.msra.mxu0 0
        %583 = vmatprep.subr.bf16.mxu0 0
        %584 = vmatpush2.bf16.msra.mxu0 0
        %585 = vmatprep.subr.bf16.mxu0 0
        %586 = vmatpush2.bf16.msra.mxu0 0
        %587 = vmatprep.subr.bf16.mxu0 0
        %588 = vmatpush2.bf16.msra.mxu0 0
        %589 = vmatprep.subr.bf16.mxu0 0
        %590 = vmatpush2.bf16.msra.mxu0 0
        %591 = vmatprep.subr.bf16.mxu0 0
        %592 = vmatpush2.bf16.msra.mxu0 0
        %593 = vmatprep.mubr.bf16.mxu0 0
        %594 = vmatmul.mubr.bf16.gmra.mxu0 %v559
        %v595 = vpop.f32.mrf.mxu0
        %v596 = vadd.f32 %v544, %v595
        %v597 = vpop.f32.mrf.mxu0
        %v598 = vpop.f32.mrf.mxu0
        %v599 = vadd.f32 %v544, %v598
        %v600 = vpop.f32.mrf.mxu0
        %601 = vdwg.mxu0
        %s602 = scalar_lea.vmem %s2, 16
        %v603 = vld [vmem:[%s602] sm:$0xf]
        %v604 = vld [vmem:[%s602 + $0x4] sm:$0xf]
        %v605 = vld [vmem:[%s602 + $0x8] sm:$0xf]
        %v606 = vld [vmem:[%s602 + $0xc] sm:$0xf]
        %v607 = vpack.c.bf16 %v599, %v596
        %v608 = vld [vmem:[#allocation5 + $0x1] sm:$0x1]
        %v609 = vlaneseq
        %v610 = vshrl.u32 %v609, 7
        %v611 = vsub.s32 0, %v610
        %v612 = vrot.slane %v608, %v611
        %v617 = vunpack.c.l.b16 %v603
        %v618 = vunpack.c.l.b16 %v604
        %v619 = vunpack.c.l.b16 %v605
        %v620 = vunpack.c.l.b16 %v606
        %v621 = vpack.c.b16 %v618, %v617
        %v622 = vpack.c.b16 %v620, %v619
        %v626 = vsel %vm557, %v607, 0
        %628 = vmatprep.subr.bf16.mxu0 0
        %629 = vmatpush1.bf16.msra.mxu0 0
        %630 = vmatprep.subr.bf16.mxu0 0
        %631 = vmatpush1.bf16.msra.mxu0 0
        %632 = vmatprep.subr.bf16.mxu0 0
        %633 = vmatpush1.bf16.msra.mxu0 0
        %634 = vmatprep.subr.bf16.mxu0 0
        %635 = vmatpush1.bf16.msra.mxu0 0
        %636 = vmatprep.subr.bf16.mxu0 0
        %637 = vmatpush1.bf16.msra.mxu0 0
        %638 = vmatprep.subr.bf16.mxu0 0
        %639 = vmatpush1.bf16.msra.mxu0 0
        %640 = vmatprep.subr.bf16.mxu0 0
        %641 = vmatpush1.bf16.msra.mxu0 %v622
        %642 = vmatprep.subr.bf16.mxu0 0
        %643 = vmatpush1.bf16.msra.mxu0 %v621
        %644 = vmatprep.subr.bf16.mxu0 0
        %645 = vmatpush2.bf16.msra.mxu0 0
        %646 = vmatprep.subr.bf16.mxu0 0
        %647 = vmatpush2.bf16.msra.mxu0 0
        %648 = vmatprep.subr.bf16.mxu0 0
        %649 = vmatpush2.bf16.msra.mxu0 0
        %650 = vmatprep.subr.bf16.mxu0 0
        %651 = vmatpush2.bf16.msra.mxu0 0
        %652 = vmatprep.subr.bf16.mxu0 0
        %653 = vmatpush2.bf16.msra.mxu0 0
        %654 = vmatprep.subr.bf16.mxu0 0
        %655 = vmatpush2.bf16.msra.mxu0 0
        %656 = vmatprep.subr.bf16.mxu0 0
        %657 = vmatpush2.bf16.msra.mxu0 0
        %658 = vmatprep.subr.bf16.mxu0 0
        %659 = vmatpush2.bf16.msra.mxu0 0
        %660 = vmatprep.mubr.bf16.mxu0 0
        %661 = vmatmul.mubr.bf16.gmra.mxu0 %v626
        %v662 = vpop.f32.mrf.mxu0
        %v663 = vadd.f32 %v612, %v662
        %v664 = vpop.f32.mrf.mxu0
        %v665 = vpop.f32.mrf.mxu0
        %v666 = vadd.f32 %v612, %v665
        %v667 = vpop.f32.mrf.mxu0
        %668 = vdwg.mxu0
        %v669 = vmax.f32 %v663, 0.0
        %v670 = vmax.f32 %v666, 0.0
        %v671 = vadd.f32 %v532, %v669
        %v672 = vadd.f32 %v533, %v670
        %673 = vst.msk [vmem:[%s518] sm:$0xff] %vm557, %v671
        %674 = vst.msk [vmem:[%s518 + $0x8] sm:$0xff] %vm557, %v672
        %v675 = vld [vmem:[%s4] sm:$0xf]
        %v676 = vld [vmem:[%s4 + $0x4] sm:$0xf]
        %v677 = vld [vmem:[%s4 + $0x8] sm:$0xf]
        %v678 = vld [vmem:[%s4 + $0xc] sm:$0xf]
        %v679 = vpack.c.bf16 %v534, %v534
        %v684 = vunpack.c.l.b16 %v675
        %v685 = vunpack.c.l.b16 %v676
        %v686 = vunpack.c.l.b16 %v677
        %v687 = vunpack.c.l.b16 %v678
        %v688 = vpack.c.b16 %v685, %v684
        %v689 = vpack.c.b16 %v687, %v686
        %v693 = vsel %vm557, %v679, 0
        %695 = vmatprep.subr.bf16.mxu0 0
        %696 = vmatpush1.bf16.msra.mxu0 0
        %697 = vmatprep.subr.bf16.mxu0 0
        %698 = vmatpush1.bf16.msra.mxu0 0
        %699 = vmatprep.subr.bf16.mxu0 0
        %700 = vmatpush1.bf16.msra.mxu0 0
        %701 = vmatprep.subr.bf16.mxu0 0
        %702 = vmatpush1.bf16.msra.mxu0 0
        %703 = vmatprep.subr.bf16.mxu0 0
        %704 = vmatpush1.bf16.msra.mxu0 0
        %705 = vmatprep.subr.bf16.mxu0 0
        %706 = vmatpush1.bf16.msra.mxu0 0
        %707 = vmatprep.subr.bf16.mxu0 0
        %708 = vmatpush1.bf16.msra.mxu0 %v689
        %709 = vmatprep.subr.bf16.mxu0 0
        %710 = vmatpush1.bf16.msra.mxu0 %v688
        %711 = vmatprep.subr.bf16.mxu0 0
        %712 = vmatpush2.bf16.msra.mxu0 0
        %713 = vmatprep.subr.bf16.mxu0 0
        %714 = vmatpush2.bf16.msra.mxu0 0
        %715 = vmatprep.subr.bf16.mxu0 0
        %716 = vmatpush2.bf16.msra.mxu0 0
        %717 = vmatprep.subr.bf16.mxu0 0
        %718 = vmatpush2.bf16.msra.mxu0 0
        %719 = vmatprep.subr.bf16.mxu0 0
        %720 = vmatpush2.bf16.msra.mxu0 0
        %721 = vmatprep.subr.bf16.mxu0 0
        %722 = vmatpush2.bf16.msra.mxu0 0
        %723 = vmatprep.subr.bf16.mxu0 0
        %724 = vmatpush2.bf16.msra.mxu0 0
        %725 = vmatprep.subr.bf16.mxu0 0
        %726 = vmatpush2.bf16.msra.mxu0 0
        %727 = vmatprep.mubr.bf16.mxu0 0
        %728 = vmatmul.mubr.bf16.gmra.mxu0 %v693
        %v729 = vpop.f32.mrf.mxu0
        %v730 = vadd.f32 0.0, %v729
        %v731 = vpop.f32.mrf.mxu0
        %v732 = vpop.f32.mrf.mxu0
        %v733 = vpop.f32.mrf.mxu0
        %734 = vdwg.mxu0
        %v735 = vld [vmem:[#allocation7] sm:$0xf]
        %v736 = vld [vmem:[#allocation7 + $0x4] sm:$0xf]
        %v737 = vld [vmem:[#allocation7 + $0x8] sm:$0xf]
        %v738 = vld [vmem:[#allocation7 + $0xc] sm:$0xf]
        %v739 = vpack.c.bf16 %v670, %v669
        %v744 = vunpack.c.l.b16 %v735
        %v745 = vunpack.c.l.b16 %v736
        %v746 = vunpack.c.l.b16 %v737
        %v747 = vunpack.c.l.b16 %v738
        %v748 = vpack.c.b16 %v745, %v744
        %v749 = vpack.c.b16 %v747, %v746
        %v753 = vsel %vm557, %v739, 0
        %755 = vmatprep.subr.bf16.mxu0 0
        %756 = vmatpush1.bf16.msra.mxu0 0
        %757 = vmatprep.subr.bf16.mxu0 0
        %758 = vmatpush1.bf16.msra.mxu0 0
        %759 = vmatprep.subr.bf16.mxu0 0
        %760 = vmatpush1.bf16.msra.mxu0 0
        %761 = vmatprep.subr.bf16.mxu0 0
        %762 = vmatpush1.bf16.msra.mxu0 0
        %763 = vmatprep.subr.bf16.mxu0 0
        %764 = vmatpush1.bf16.msra.mxu0 0
        %765 = vmatprep.subr.bf16.mxu0 0
        %766 = vmatpush1.bf16.msra.mxu0 0
        %767 = vmatprep.subr.bf16.mxu0 0
        %768 = vmatpush1.bf16.msra.mxu0 %v749
        %769 = vmatprep.subr.bf16.mxu0 0
        %770 = vmatpush1.bf16.msra.mxu0 %v748
        %771 = vmatprep.subr.bf16.mxu0 0
        %772 = vmatpush2.bf16.msra.mxu0 0
        %773 = vmatprep.subr.bf16.mxu0 0
        %774 = vmatpush2.bf16.msra.mxu0 0
        %775 = vmatprep.subr.bf16.mxu0 0
        %776 = vmatpush2.bf16.msra.mxu0 0
        %777 = vmatprep.subr.bf16.mxu0 0
        %778 = vmatpush2.bf16.msra.mxu0 0
        %779 = vmatprep.subr.bf16.mxu0 0
        %780 = vmatpush2.bf16.msra.mxu0 0
        %781 = vmatprep.subr.bf16.mxu0 0
        %782 = vmatpush2.bf16.msra.mxu0 0
        %783 = vmatprep.subr.bf16.mxu0 0
        %784 = vmatpush2.bf16.msra.mxu0 0
        %785 = vmatprep.subr.bf16.mxu0 0
        %786 = vmatpush2.bf16.msra.mxu0 0
        %787 = vmatprep.mubr.bf16.mxu0 0
        %788 = vmatmul.mubr.bf16.gmra.mxu0 %v753
        %v789 = vpop.f32.mrf.mxu0
        %v790 = vadd.f32 0.0, %v789
        %v791 = vpop.f32.mrf.mxu0
        %v792 = vpop.f32.mrf.mxu0
        %v793 = vadd.f32 0.0, %v792
        %v794 = vpop.f32.mrf.mxu0
        %795 = vdwg.mxu0
        %v796 = vpack.c.bf16 %v730, %v730
        %v797 = vpack.c.bf16 %v793, %v790
        %vm798 = vcmask 64512
        %v800 = vsel %vm798, %v796, 0
        %v803 = vsel %vm798, %v797, 0
        %805 = vmatprep.subr.bf16.mxu0 0
        %806 = vmatpush1.bf16.xpose.msra.mxu0 0
        %807 = vmatprep.subr.bf16.mxu0 0
        %808 = vmatpush1.bf16.xpose.msra.mxu0 0
        %809 = vmatprep.subr.bf16.mxu0 0
        %810 = vmatpush1.bf16.xpose.msra.mxu0 0
        %811 = vmatprep.subr.bf16.mxu0 0
        %812 = vmatpush1.bf16.xpose.msra.mxu0 0
        %813 = vmatprep.subr.bf16.mxu0 0
        %814 = vmatpush1.bf16.xpose.msra.mxu0 0
        %815 = vmatprep.subr.bf16.mxu0 0
        %816 = vmatpush1.bf16.xpose.msra.mxu0 0
        %817 = vmatprep.subr.bf16.mxu0 0
        %818 = vmatpush1.bf16.xpose.msra.mxu0 0
        %819 = vmatprep.subr.bf16.mxu0 0
        %820 = vmatpush1.bf16.xpose.msra.mxu0 %v803
        %821 = vmatprep.subr.bf16.mxu0 0
        %822 = vmatpush2.bf16.xpose.msra.mxu0 0
        %823 = vmatprep.subr.bf16.mxu0 0
        %824 = vmatpush2.bf16.xpose.msra.mxu0 0
        %825 = vmatprep.subr.bf16.mxu0 0
        %826 = vmatpush2.bf16.xpose.msra.mxu0 0
        %827 = vmatprep.subr.bf16.mxu0 0
        %828 = vmatpush2.bf16.xpose.msra.mxu0 0
        %829 = vmatprep.subr.bf16.mxu0 0
        %830 = vmatpush2.bf16.xpose.msra.mxu0 0
        %831 = vmatprep.subr.bf16.mxu0 0
        %832 = vmatpush2.bf16.xpose.msra.mxu0 0
        %833 = vmatprep.subr.bf16.mxu0 0
        %834 = vmatpush2.bf16.xpose.msra.mxu0 0
        %835 = vmatprep.subr.bf16.mxu0 0
        %836 = vmatpush2.bf16.xpose.msra.mxu0 0
        %837 = vmatprep.mubr.bf16.mxu0 0
        %838 = vmatmul.mubr.bf16.gmra.mxu0 %v800
        %v839 = vpop.f32.mrf.mxu0
        %v840 = vadd.f32 0.0, %v839
        %v841 = vpop.f32.mrf.mxu0
        %v842 = vpop.f32.mrf.mxu0
        %v843 = vpop.f32.mrf.mxu0
        %844 = vdwg.mxu0
        %vm845 = vcmask 130048
        %v846 = vsel %vm845, %v840, -inf
        %847 = vmax.xlane.f32.xlu0 %v846
        %v848 = vpop.xlane.xlu0 %847
        %v849 = vsub.f32 %v840, %v848
        %v850 = vmul.f32 %v849, 1.442695
        %v851 = vpow.pop %v850
        %v852 = vsel %vm845, %v851, 0.0
        %853 = vadd.xlane.f32.xlu0 %v852
        %v854 = vpop.xlane.xlu0 %853
        %v855 = vrcp.pop %v854
        %v856 = vmul.f32 %v851, %v855
        %v857 = vpack.c.bf16 %v856, %v856
        %859 = vrot.lane.b32.xlu0 %v797, 96
        %v860 = vpop.permute.xlu0 %859
        %v863 = vsel %vm845, %v857, 0
        %865 = vmatprep.subr.bf16.mxu0 0
        %866 = vmatpush1.bf16.msra.mxu0 0
        %867 = vmatprep.subr.bf16.mxu0 0
        %868 = vmatpush1.bf16.msra.mxu0 0
        %869 = vmatprep.subr.bf16.mxu0 0
        %870 = vmatpush1.bf16.msra.mxu0 0
        %871 = vmatprep.subr.bf16.mxu0 0
        %872 = vmatpush1.bf16.msra.mxu0 0
        %873 = vmatprep.subr.bf16.mxu0 0
        %874 = vmatpush1.bf16.msra.mxu0 0
        %875 = vmatprep.subr.bf16.mxu0 0
        %876 = vmatpush1.bf16.msra.mxu0 0
        %877 = vmatprep.subr.bf16.mxu0 0
        %878 = vmatpush1.bf16.msra.mxu0 0
        %879 = vmatprep.subr.bf16.mxu0 0
        %880 = vmatpush1.bf16.msra.mxu0 %v860
        %881 = vmatprep.subr.bf16.mxu0 0
        %882 = vmatpush2.bf16.msra.mxu0 0
        %883 = vmatprep.subr.bf16.mxu0 0
        %884 = vmatpush2.bf16.msra.mxu0 0
        %885 = vmatprep.subr.bf16.mxu0 0
        %886 = vmatpush2.bf16.msra.mxu0 0
        %887 = vmatprep.subr.bf16.mxu0 0
        %888 = vmatpush2.bf16.msra.mxu0 0
        %889 = vmatprep.subr.bf16.mxu0 0
        %890 = vmatpush2.bf16.msra.mxu0 0
        %891 = vmatprep.subr.bf16.mxu0 0
        %892 = vmatpush2.bf16.msra.mxu0 0
        %893 = vmatprep.subr.bf16.mxu0 0
        %894 = vmatpush2.bf16.msra.mxu0 0
        %895 = vmatprep.subr.bf16.mxu0 0
        %896 = vmatpush2.bf16.msra.mxu0 0
        %897 = vmatprep.mubr.bf16.mxu0 0
        %898 = vmatmul.mubr.bf16.gmra.mxu0 %v863
        %v899 = vpop.f32.mrf.mxu0
        %v900 = vadd.f32 0.0, %v899
        %v901 = vpop.f32.mrf.mxu0
        %v902 = vpop.f32.mrf.mxu0
        %v903 = vpop.f32.mrf.mxu0
        %904 = vdwg.mxu0
        %906 = vrot.lane.b32.xlu0 %v796, 120
        %v907 = vpop.permute.xlu0 %906
        %908 = vrot.lane.b32.xlu0 %v797, 120
        %v909 = vpop.permute.xlu0 %908
        %v911 = vsel %vm798, %v907, 0
        %v914 = vsel %vm798, %v909, 0
        %916 = vmatprep.subr.bf16.mxu0 0
        %917 = vmatpush1.bf16.xpose.msra.mxu0 0
        %918 = vmatprep.subr.bf16.mxu0 0
        %919 = vmatpush1.bf16.xpose.msra.mxu0 0
        %920 = vmatprep.subr.bf16.mxu0 0
        %921 = vmatpush1.bf16.xpose.msra.mxu0 0
        %922 = vmatprep.subr.bf16.mxu0 0
        %923 = vmatpush1.bf16.xpose.msra.mxu0 0
        %924 = vmatprep.subr.bf16.mxu0 0
        %925 = vmatpush1.bf16.xpose.msra.mxu0 0
        %926 = vmatprep.subr.bf16.mxu0 0
        %927 = vmatpush1.bf16.xpose.msra.mxu0 0
        %928 = vmatprep.subr.bf16.mxu0 0
        %929 = vmatpush1.bf16.xpose.msra.mxu0 0
        %930 = vmatprep.subr.bf16.mxu0 0
        %931 = vmatpush1.bf16.xpose.msra.mxu0 %v914
        %932 = vmatprep.subr.bf16.mxu0 0
        %933 = vmatpush2.bf16.xpose.msra.mxu0 0
        %934 = vmatprep.subr.bf16.mxu0 0
        %935 = vmatpush2.bf16.xpose.msra.mxu0 0
        %936 = vmatprep.subr.bf16.mxu0 0
        %937 = vmatpush2.bf16.xpose.msra.mxu0 0
        %938 = vmatprep.subr.bf16.mxu0 0
        %939 = vmatpush2.bf16.xpose.msra.mxu0 0
        %940 = vmatprep.subr.bf16.mxu0 0
        %941 = vmatpush2.bf16.xpose.msra.mxu0 0
        %942 = vmatprep.subr.bf16.mxu0 0
        %943 = vmatpush2.bf16.xpose.msra.mxu0 0
        %944 = vmatprep.subr.bf16.mxu0 0
        %945 = vmatpush2.bf16.xpose.msra.mxu0 0
        %946 = vmatprep.subr.bf16.mxu0 0
        %947 = vmatpush2.bf16.xpose.msra.mxu0 0
        %948 = vmatprep.mubr.bf16.mxu0 0
        %949 = vmatmul.mubr.bf16.gmra.mxu0 %v911
        %v950 = vpop.f32.mrf.mxu0
        %v951 = vadd.f32 0.0, %v950
        %v952 = vpop.f32.mrf.mxu0
        %v953 = vpop.f32.mrf.mxu0
        %v954 = vpop.f32.mrf.mxu0
        %955 = vdwg.mxu0
        %v956 = vsel %vm845, %v951, -inf
        %957 = vmax.xlane.f32.xlu0 %v956
        %v958 = vpop.xlane.xlu0 %957
        %v959 = vsub.f32 %v951, %v958
        %v960 = vmul.f32 %v959, 1.442695
        %v961 = vpow.pop %v960
        %v962 = vsel %vm845, %v961, 0.0
        %963 = vadd.xlane.f32.xlu0 %v962
        %v964 = vpop.xlane.xlu0 %963
        %v965 = vrcp.pop %v964
        %v966 = vmul.f32 %v961, %v965
        %v967 = vpack.c.bf16 %v966, %v966
        %968 = vrot.lane.b32.xlu0 %v797, 88
        %v969 = vpop.permute.xlu0 %968
        %v972 = vsel %vm845, %v967, 0
        %974 = vmatprep.subr.bf16.mxu0 0
        %975 = vmatpush1.bf16.msra.mxu0 0
        %976 = vmatprep.subr.bf16.mxu0 0
        %977 = vmatpush1.bf16.msra.mxu0 0
        %978 = vmatprep.subr.bf16.mxu0 0
        %979 = vmatpush1.bf16.msra.mxu0 0
        %980 = vmatprep.subr.bf16.mxu0 0
        %981 = vmatpush1.bf16.msra.mxu0 0
        %982 = vmatprep.subr.bf16.mxu0 0
        %983 = vmatpush1.bf16.msra.mxu0 0
        %984 = vmatprep.subr.bf16.mxu0 0
        %985 = vmatpush1.bf16.msra.mxu0 0
        %986 = vmatprep.subr.bf16.mxu0 0
        %987 = vmatpush1.bf16.msra.mxu0 0
        %988 = vmatprep.subr.bf16.mxu0 0
        %989 = vmatpush1.bf16.msra.mxu0 %v969
        %990 = vmatprep.subr.bf16.mxu0 0
        %991 = vmatpush2.bf16.msra.mxu0 0
        %992 = vmatprep.subr.bf16.mxu0 0
        %993 = vmatpush2.bf16.msra.mxu0 0
        %994 = vmatprep.subr.bf16.mxu0 0
        %995 = vmatpush2.bf16.msra.mxu0 0
        %996 = vmatprep.subr.bf16.mxu0 0
        %997 = vmatpush2.bf16.msra.mxu0 0
        %998 = vmatprep.subr.bf16.mxu0 0
        %999 = vmatpush2.bf16.msra.mxu0 0
        %1000 = vmatprep.subr.bf16.mxu0 0
        %1001 = vmatpush2.bf16.msra.mxu0 0
        %1002 = vmatprep.subr.bf16.mxu0 0
        %1003 = vmatpush2.bf16.msra.mxu0 0
        %1004 = vmatprep.subr.bf16.mxu0 0
        %1005 = vmatpush2.bf16.msra.mxu0 0
        %1006 = vmatprep.mubr.bf16.mxu0 0
        %1007 = vmatmul.mubr.bf16.gmra.mxu0 %v972
        %v1008 = vpop.f32.mrf.mxu0
        %v1009 = vadd.f32 0.0, %v1008
        %v1010 = vpop.f32.mrf.mxu0
        %v1011 = vpop.f32.mrf.mxu0
        %v1012 = vpop.f32.mrf.mxu0
        %1013 = vdwg.mxu0
        %1014 = vrot.lane.b32.xlu0 %v796, 112
        %v1015 = vpop.permute.xlu0 %1014
        %1016 = vrot.lane.b32.xlu0 %v797, 112
        %v1017 = vpop.permute.xlu0 %1016
        %v1019 = vsel %vm798, %v1015, 0
        %v1022 = vsel %vm798, %v1017, 0
        %1024 = vmatprep.subr.bf16.mxu0 0
        %1025 = vmatpush1.bf16.xpose.msra.mxu0 0
        %1026 = vmatprep.subr.bf16.mxu0 0
        %1027 = vmatpush1.bf16.xpose.msra.mxu0 0
        %1028 = vmatprep.subr.bf16.mxu0 0
        %1029 = vmatpush1.bf16.xpose.msra.mxu0 0
        %1030 = vmatprep.subr.bf16.mxu0 0
        %1031 = vmatpush1.bf16.xpose.msra.mxu0 0
        %1032 = vmatprep.subr.bf16.mxu0 0
        %1033 = vmatpush1.bf16.xpose.msra.mxu0 0
        %1034 = vmatprep.subr.bf16.mxu0 0
        %1035 = vmatpush1.bf16.xpose.msra.mxu0 0
        %1036 = vmatprep.subr.bf16.mxu0 0
        %1037 = vmatpush1.bf16.xpose.msra.mxu0 0
        %1038 = vmatprep.subr.bf16.mxu0 0
        %1039 = vmatpush1.bf16.xpose.msra.mxu0 %v1022
        %1040 = vmatprep.subr.bf16.mxu0 0
        %1041 = vmatpush2.bf16.xpose.msra.mxu0 0
        %1042 = vmatprep.subr.bf16.mxu0 0
        %1043 = vmatpush2.bf16.xpose.msra.mxu0 0
        %1044 = vmatprep.subr.bf16.mxu0 0
        %1045 = vmatpush2.bf16.xpose.msra.mxu0 0
        %1046 = vmatprep.subr.bf16.mxu0 0
        %1047 = vmatpush2.bf16.xpose.msra.mxu0 0
        %1048 = vmatprep.subr.bf16.mxu0 0
        %1049 = vmatpush2.bf16.xpose.msra.mxu0 0
        %1050 = vmatprep.subr.bf16.mxu0 0
        %1051 = vmatpush2.bf16.xpose.msra.mxu0 0
        %1052 = vmatprep.subr.bf16.mxu0 0
        %1053 = vmatpush2.bf16.xpose.msra.mxu0 0
        %1054 = vmatprep.subr.bf16.mxu0 0
        %1055 = vmatpush2.bf16.xpose.msra.mxu0 0
        %1056 = vmatprep.mubr.bf16.mxu0 0
        %1057 = vmatmul.mubr.bf16.gmra.mxu0 %v1019
        %v1058 = vpop.f32.mrf.mxu0
        %v1059 = vadd.f32 0.0, %v1058
        %v1060 = vpop.f32.mrf.mxu0
        %v1061 = vpop.f32.mrf.mxu0
        %v1062 = vpop.f32.mrf.mxu0
        %1063 = vdwg.mxu0
        %v1064 = vsel %vm845, %v1059, -inf
        %1065 = vmax.xlane.f32.xlu0 %v1064
        %v1066 = vpop.xlane.xlu0 %1065
        %v1067 = vsub.f32 %v1059, %v1066
        %v1068 = vmul.f32 %v1067, 1.442695
        %v1069 = vpow.pop %v1068
        %v1070 = vsel %vm845, %v1069, 0.0
        %1071 = vadd.xlane.f32.xlu0 %v1070
        %v1072 = vpop.xlane.xlu0 %1071
        %v1073 = vrcp.pop %v1072
        %v1074 = vmul.f32 %v1069, %v1073
        %v1075 = vpack.c.bf16 %v1074, %v1074
        %1076 = vrot.lane.b32.xlu0 %v797, 80
        %v1077 = vpop.permute.xlu0 %1076
        %v1080 = vsel %vm845, %v1075, 0
        %1082 = vmatprep.subr.bf16.mxu0 0
        %1083 = vmatpush1.bf16.msra.mxu0 0
        %1084 = vmatprep.subr.bf16.mxu0 0
        %1085 = vmatpush1.bf16.msra.mxu0 0
        %1086 = vmatprep.subr.bf16.mxu0 0
        %1087 = vmatpush1.bf16.msra.mxu0 0
        %1088 = vmatprep.subr.bf16.mxu0 0
        %1089 = vmatpush1.bf16.msra.mxu0 0
        %1090 = vmatprep.subr.bf16.mxu0 0
        %1091 = vmatpush1.bf16.msra.mxu0 0
        %1092 = vmatprep.subr.bf16.mxu0 0
        %1093 = vmatpush1.bf16.msra.mxu0 0
        %1094 = vmatprep.subr.bf16.mxu0 0
        %1095 = vmatpush1.bf16.msra.mxu0 0
        %1096 = vmatprep.subr.bf16.mxu0 0
        %1097 = vmatpush1.bf16.msra.mxu0 %v1077
        %1098 = vmatprep.subr.bf16.mxu0 0
        %1099 = vmatpush2.bf16.msra.mxu0 0
        %1100 = vmatprep.subr.bf16.mxu0 0
        %1101 = vmatpush2.bf16.msra.mxu0 0
        %1102 = vmatprep.subr.bf16.mxu0 0
        %1103 = vmatpush2.bf16.msra.mxu0 0
        %1104 = vmatprep.subr.bf16.mxu0 0
        %1105 = vmatpush2.bf16.msra.mxu0 0
        %1106 = vmatprep.subr.bf16.mxu0 0
        %1107 = vmatpush2.bf16.msra.mxu0 0
        %1108 = vmatprep.subr.bf16.mxu0 0
        %1109 = vmatpush2.bf16.msra.mxu0 0
        %1110 = vmatprep.subr.bf16.mxu0 0
        %1111 = vmatpush2.bf16.msra.mxu0 0
        %1112 = vmatprep.subr.bf16.mxu0 0
        %1113 = vmatpush2.bf16.msra.mxu0 0
        %1114 = vmatprep.mubr.bf16.mxu0 0
        %1115 = vmatmul.mubr.bf16.gmra.mxu0 %v1080
        %v1116 = vpop.f32.mrf.mxu0
        %v1117 = vadd.f32 0.0, %v1116
        %v1118 = vpop.f32.mrf.mxu0
        %v1119 = vpop.f32.mrf.mxu0
        %v1120 = vpop.f32.mrf.mxu0
        %1121 = vdwg.mxu0
        %1122 = vrot.lane.b32.xlu0 %v796, 104
        %v1123 = vpop.permute.xlu0 %1122
        %1124 = vrot.lane.b32.xlu0 %v797, 104
        %v1125 = vpop.permute.xlu0 %1124
        %v1127 = vsel %vm798, %v1123, 0
        %v1130 = vsel %vm798, %v1125, 0
        %1132 = vmatprep.subr.bf16.mxu0 0
        %1133 = vmatpush1.bf16.xpose.msra.mxu0 0
        %1134 = vmatprep.subr.bf16.mxu0 0
        %1135 = vmatpush1.bf16.xpose.msra.mxu0 0
        %1136 = vmatprep.subr.bf16.mxu0 0
        %1137 = vmatpush1.bf16.xpose.msra.mxu0 0
        %1138 = vmatprep.subr.bf16.mxu0 0
        %1139 = vmatpush1.bf16.xpose.msra.mxu0 0
        %1140 = vmatprep.subr.bf16.mxu0 0
        %1141 = vmatpush1.bf16.xpose.msra.mxu0 0
        %1142 = vmatprep.subr.bf16.mxu0 0
        %1143 = vmatpush1.bf16.xpose.msra.mxu0 0
        %1144 = vmatprep.subr.bf16.mxu0 0
        %1145 = vmatpush1.bf16.xpose.msra.mxu0 0
        %1146 = vmatprep.subr.bf16.mxu0 0
        %1147 = vmatpush1.bf16.xpose.msra.mxu0 %v1130
        %1148 = vmatprep.subr.bf16.mxu0 0
        %1149 = vmatpush2.bf16.xpose.msra.mxu0 0
        %1150 = vmatprep.subr.bf16.mxu0 0
        %1151 = vmatpush2.bf16.xpose.msra.mxu0 0
        %1152 = vmatprep.subr.bf16.mxu0 0
        %1153 = vmatpush2.bf16.xpose.msra.mxu0 0
        %1154 = vmatprep.subr.bf16.mxu0 0
        %1155 = vmatpush2.bf16.xpose.msra.mxu0 0
        %1156 = vmatprep.subr.bf16.mxu0 0
        %1157 = vmatpush2.bf16.xpose.msra.mxu0 0
        %1158 = vmatprep.subr.bf16.mxu0 0
        %1159 = vmatpush2.bf16.xpose.msra.mxu0 0
        %1160 = vmatprep.subr.bf16.mxu0 0
        %1161 = vmatpush2.bf16.xpose.msra.mxu0 0
        %1162 = vmatprep.subr.bf16.mxu0 0
        %1163 = vmatpush2.bf16.xpose.msra.mxu0 0
        %1164 = vmatprep.mubr.bf16.mxu0 0
        %1165 = vmatmul.mubr.bf16.gmra.mxu0 %v1127
        %v1166 = vpop.f32.mrf.mxu0
        %v1167 = vadd.f32 0.0, %v1166
        %v1168 = vpop.f32.mrf.mxu0
        %v1169 = vpop.f32.mrf.mxu0
        %v1170 = vpop.f32.mrf.mxu0
        %1171 = vdwg.mxu0
        %v1172 = vsel %vm845, %v1167, -inf
        %1173 = vmax.xlane.f32.xlu0 %v1172
        %v1174 = vpop.xlane.xlu0 %1173
        %v1175 = vsub.f32 %v1167, %v1174
        %v1176 = vmul.f32 %v1175, 1.442695
        %v1177 = vpow.pop %v1176
        %v1178 = vsel %vm845, %v1177, 0.0
        %1179 = vadd.xlane.f32.xlu0 %v1178
        %v1180 = vpop.xlane.xlu0 %1179
        %v1181 = vrcp.pop %v1180
        %v1182 = vmul.f32 %v1177, %v1181
        %v1183 = vpack.c.bf16 %v1182, %v1182
        %1184 = vrot.lane.b32.xlu0 %v797, 72
        %v1185 = vpop.permute.xlu0 %1184
        %v1188 = vsel %vm845, %v1183, 0
        %1190 = vmatprep.subr.bf16.mxu0 0
        %1191 = vmatpush1.bf16.msra.mxu0 0
        %1192 = vmatprep.subr.bf16.mxu0 0
        %1193 = vmatpush1.bf16.msra.mxu0 0
        %1194 = vmatprep.subr.bf16.mxu0 0
        %1195 = vmatpush1.bf16.msra.mxu0 0
        %1196 = vmatprep.subr.bf16.mxu0 0
        %1197 = vmatpush1.bf16.msra.mxu0 0
        %1198 = vmatprep.subr.bf16.mxu0 0
        %1199 = vmatpush1.bf16.msra.mxu0 0
        %1200 = vmatprep.subr.bf16.mxu0 0
        %1201 = vmatpush1.bf16.msra.mxu0 0
        %1202 = vmatprep.subr.bf16.mxu0 0
        %1203 = vmatpush1.bf16.msra.mxu0 0
        %1204 = vmatprep.subr.bf16.mxu0 0
        %1205 = vmatpush1.bf16.msra.mxu0 %v1185
        %1206 = vmatprep.subr.bf16.mxu0 0
        %1207 = vmatpush2.bf16.msra.mxu0 0
        %1208 = vmatprep.subr.bf16.mxu0 0
        %1209 = vmatpush2.bf16.msra.mxu0 0
        %1210 = vmatprep.subr.bf16.mxu0 0
        %1211 = vmatpush2.bf16.msra.mxu0 0
        %1212 = vmatprep.subr.bf16.mxu0 0
        %1213 = vmatpush2.bf16.msra.mxu0 0
        %1214 = vmatprep.subr.bf16.mxu0 0
        %1215 = vmatpush2.bf16.msra.mxu0 0
        %1216 = vmatprep.subr.bf16.mxu0 0
        %1217 = vmatpush2.bf16.msra.mxu0 0
        %1218 = vmatprep.subr.bf16.mxu0 0
        %1219 = vmatpush2.bf16.msra.mxu0 0
        %1220 = vmatprep.subr.bf16.mxu0 0
        %1221 = vmatpush2.bf16.msra.mxu0 0
        %1222 = vmatprep.mubr.bf16.mxu0 0
        %1223 = vmatmul.mubr.bf16.gmra.mxu0 %v1188
        %v1224 = vpop.f32.mrf.mxu0
        %v1225 = vadd.f32 0.0, %v1224
        %v1226 = vpop.f32.mrf.mxu0
        %v1227 = vpop.f32.mrf.mxu0
        %v1228 = vpop.f32.mrf.mxu0
        %1229 = vdwg.mxu0
        %1231 = vrot.lane.b32.xlu0 %v1009, 8
        %v1232 = vpop.permute.xlu0 %1231
        %1235 = vrot.lane.b32.xlu0 %v1117, 16
        %v1236 = vpop.permute.xlu0 %1235
        %1239 = vrot.lane.b32.xlu0 %v1225, 24
        %v1240 = vpop.permute.xlu0 %1239
        %v1242 = vsel %vm798, %v900, %v1232
        %v1243 = vsel %vm845, %v1242, %v1236
        %vm1244 = vcmask 195584
        %v1245 = vsel %vm1244, %v1243, %v1240
        %v1246 = vld [vmem:[#allocation8] sm:$0xf]
        %v1247 = vld [vmem:[#allocation8 + $0x4] sm:$0xf]
        %v1248 = vld [vmem:[#allocation8 + $0x8] sm:$0xf]
        %v1249 = vld [vmem:[#allocation8 + $0xc] sm:$0xf]
        %v1250 = vpack.c.bf16 %v1245, %v1245
        %v1255 = vunpack.c.l.b16 %v1246
        %v1256 = vunpack.c.l.b16 %v1247
        %v1257 = vunpack.c.l.b16 %v1248
        %v1258 = vunpack.c.l.b16 %v1249
        %v1259 = vpack.c.b16 %v1256, %v1255
        %v1260 = vpack.c.b16 %v1258, %v1257
        %v1264 = vsel %vm557, %v1250, 0
        %1266 = vmatprep.subr.bf16.mxu0 0
        %1267 = vmatpush1.bf16.msra.mxu0 0
        %1268 = vmatprep.subr.bf16.mxu0 0
        %1269 = vmatpush1.bf16.msra.mxu0 0
        %1270 = vmatprep.subr.bf16.mxu0 0
        %1271 = vmatpush1.bf16.msra.mxu0 0
        %1272 = vmatprep.subr.bf16.mxu0 0
        %1273 = vmatpush1.bf16.msra.mxu0 0
        %1274 = vmatprep.subr.bf16.mxu0 0
        %1275 = vmatpush1.bf16.msra.mxu0 0
        %1276 = vmatprep.subr.bf16.mxu0 0
        %1277 = vmatpush1.bf16.msra.mxu0 0
        %1278 = vmatprep.subr.bf16.mxu0 0
        %1279 = vmatpush1.bf16.msra.mxu0 %v1260
        %1280 = vmatprep.subr.bf16.mxu0 0
        %1281 = vmatpush1.bf16.msra.mxu0 %v1259
        %1282 = vmatprep.subr.bf16.mxu0 0
        %1283 = vmatpush2.bf16.msra.mxu0 0
        %1284 = vmatprep.subr.bf16.mxu0 0
        %1285 = vmatpush2.bf16.msra.mxu0 0
        %1286 = vmatprep.subr.bf16.mxu0 0
        %1287 = vmatpush2.bf16.msra.mxu0 0
        %1288 = vmatprep.subr.bf16.mxu0 0
        %1289 = vmatpush2.bf16.msra.mxu0 0
        %1290 = vmatprep.subr.bf16.mxu0 0
        %1291 = vmatpush2.bf16.msra.mxu0 0
        %1292 = vmatprep.subr.bf16.mxu0 0
        %1293 = vmatpush2.bf16.msra.mxu0 0
        %1294 = vmatprep.subr.bf16.mxu0 0
        %1295 = vmatpush2.bf16.msra.mxu0 0
        %1296 = vmatprep.subr.bf16.mxu0 0
        %1297 = vmatpush2.bf16.msra.mxu0 0
        %1298 = vmatprep.mubr.bf16.mxu0 0
        %1299 = vmatmul.mubr.bf16.gmra.mxu0 %v1264
        %v1300 = vpop.f32.mrf.mxu0
        %v1301 = vadd.f32 0.0, %v1300
        %v1302 = vpop.f32.mrf.mxu0
        %v1303 = vpop.f32.mrf.mxu0
        %v1304 = vpop.f32.mrf.mxu0
        %1305 = vdwg.mxu0
        %v1306 = vld [vmem:[%s10] sm:$0xf]
        %v1307 = vsel %vm557, %v1301, 0.0
        %1308 = vadd.xlane.f32.xlu0 %v1307
        %v1309 = vpop.xlane.xlu0 %1308
        %v1310 = vrcp.pop 32.0
        %v1311 = vmul.f32 %v1309, %v1310
        %v1312 = vsub.f32 %v1301, %v1311
        %v1313 = vmul.f32 %v1312, %v1312
        %v1314 = vsel %vm557, %v1313, 0.0
        %1315 = vadd.xlane.f32.xlu0 %v1314
        %v1316 = vpop.xlane.xlu0 %1315
        %v1317 = vmul.f32 %v1316, %v1310
        %v1318 = vadd.f32 %v1317, 1e-05
        %v1319 = vrsqrt.pop %v1318
        %v1320 = vmul.f32 %v1312, %v1319
        %v1321 = vlaneseq
        %v1322 = vshrl.u32 %v1321, 7
        %v1323 = vsub.s32 0, %v1322
        %v1324 = vrot.slane %v1306, %v1323
        %v1325 = vmul.f32 %v1320, %v1324
        %v1326 = vlaneseq
        %v1327 = vshrl.u32 %v1326, 7
        %v1328 = vsub.s32 1, %v1327
        %v1329 = vrot.slane %v1306, %v1328
        %v1330 = vadd.f32 %v1325, %v1329
        %v1331 = vld [vmem:[#allocation10] sm:$0xf]
        %v1332 = vld [vmem:[#allocation10 + $0x4] sm:$0xf]
        %v1333 = vld [vmem:[#allocation10 + $0x8] sm:$0xf]
        %v1334 = vld [vmem:[#allocation10 + $0xc] sm:$0xf]
        %v1335 = vld [vmem:[#allocation11] sm:$0xf]
        %v1336 = vld [vmem:[#allocation11 + $0x4] sm:$0xf]
        %v1337 = vld [vmem:[#allocation11 + $0x8] sm:$0xf]
        %v1338 = vld [vmem:[#allocation11 + $0xc] sm:$0xf]
        %v1339 = vpack.c.bf16 %v1330, %v1330
        %v1344 = vunpack.c.l.b16 %v1335
        %v1345 = vunpack.c.l.b16 %v1336
        %v1346 = vunpack.c.l.b16 %v1337
        %v1347 = vunpack.c.l.b16 %v1338
        %v1348 = vpack.c.b16 %v1345, %v1344
        %v1349 = vpack.c.b16 %v1347, %v1346
        %v1353 = vsel %vm557, %v1339, 0
        %1355 = vmatprep.subr.bf16.mxu0 0
        %1356 = vmatpush1.bf16.msra.mxu0 0
        %1357 = vmatprep.subr.bf16.mxu0 0
        %1358 = vmatpush1.bf16.msra.mxu0 0
        %1359 = vmatprep.subr.bf16.mxu0 0
        %1360 = vmatpush1.bf16.msra.mxu0 0
        %1361 = vmatprep.subr.bf16.mxu0 0
        %1362 = vmatpush1.bf16.msra.mxu0 0
        %1363 = vmatprep.subr.bf16.mxu0 0
        %1364 = vmatpush1.bf16.msra.mxu0 0
        %1365 = vmatprep.subr.bf16.mxu0 0
        %1366 = vmatpush1.bf16.msra.mxu0 0
        %1367 = vmatprep.subr.bf16.mxu0 0
        %1368 = vmatpush1.bf16.msra.mxu0 %v1349
        %1369 = vmatprep.subr.bf16.mxu0 0
        %1370 = vmatpush1.bf16.msra.mxu0 %v1348
        %1371 = vmatprep.subr.bf16.mxu0 0
        %1372 = vmatpush2.bf16.msra.mxu0 0
        %1373 = vmatprep.subr.bf16.mxu0 0
        %1374 = vmatpush2.bf16.msra.mxu0 0
        %1375 = vmatprep.subr.bf16.mxu0 0
        %1376 = vmatpush2.bf16.msra.mxu0 0
        %1377 = vmatprep.subr.bf16.mxu0 0
        %1378 = vmatpush2.bf16.msra.mxu0 0
        %1379 = vmatprep.subr.bf16.mxu0 0
        %1380 = vmatpush2.bf16.msra.mxu0 0
        %1381 = vmatprep.subr.bf16.mxu0 0
        %1382 = vmatpush2.bf16.msra.mxu0 0
        %1383 = vmatprep.subr.bf16.mxu0 0
        %1384 = vmatpush2.bf16.msra.mxu0 0
        %1385 = vmatprep.subr.bf16.mxu0 0
        %1386 = vmatpush2.bf16.msra.mxu0 0
        %1387 = vmatprep.mubr.bf16.mxu0 0
        %1388 = vmatmul.mubr.bf16.gmra.mxu0 %v1353
        %v1389 = vpop.f32.mrf.mxu0
        %v1390 = vadd.f32 0.0, %v1389
        %v1391 = vpop.f32.mrf.mxu0
        %v1392 = vpop.f32.mrf.mxu0
        %v1393 = vpop.f32.mrf.mxu0
        %1394 = vdwg.mxu0
        %v1399 = vunpack.c.l.b16 %v1331
        %v1400 = vunpack.c.l.b16 %v1332
        %v1401 = vunpack.c.l.b16 %v1333
        %v1402 = vunpack.c.l.b16 %v1334
        %v1403 = vpack.c.b16 %v1400, %v1399
        %v1404 = vpack.c.b16 %v1402, %v1401
        %1407 = vmatprep.subr.bf16.mxu0 0
        %1408 = vmatpush1.bf16.msra.mxu0 0
        %1409 = vmatprep.subr.bf16.mxu0 0
        %1410 = vmatpush1.bf16.msra.mxu0 0
        %1411 = vmatprep.subr.bf16.mxu0 0
        %1412 = vmatpush1.bf16.msra.mxu0 0
        %1413 = vmatprep.subr.bf16.mxu0 0
        %1414 = vmatpush1.bf16.msra.mxu0 0
        %1415 = vmatprep.subr.bf16.mxu0 0
        %1416 = vmatpush1.bf16.msra.mxu0 0
        %1417 = vmatprep.subr.bf16.mxu0 0
        %1418 = vmatpush1.bf16.msra.mxu0 0
        %1419 = vmatprep.subr.bf16.mxu0 0
        %1420 = vmatpush1.bf16.msra.mxu0 %v1404
        %1421 = vmatprep.subr.bf16.mxu0 0
        %1422 = vmatpush1.bf16.msra.mxu0 %v1403
        %1423 = vmatprep.subr.bf16.mxu0 0
        %1424 = vmatpush2.bf16.msra.mxu0 0
        %1425 = vmatprep.subr.bf16.mxu0 0
        %1426 = vmatpush2.bf16.msra.mxu0 0
        %1427 = vmatprep.subr.bf16.mxu0 0
        %1428 = vmatpush2.bf16.msra.mxu0 0
        %1429 = vmatprep.subr.bf16.mxu0 0
        %1430 = vmatpush2.bf16.msra.mxu0 0
        %1431 = vmatprep.subr.bf16.mxu0 0
        %1432 = vmatpush2.bf16.msra.mxu0 0
        %1433 = vmatprep.subr.bf16.mxu0 0
        %1434 = vmatpush2.bf16.msra.mxu0 0
        %1435 = vmatprep.subr.bf16.mxu0 0
        %1436 = vmatpush2.bf16.msra.mxu0 0
        %1437 = vmatprep.subr.bf16.mxu0 0
        %1438 = vmatpush2.bf16.msra.mxu0 0
        %1439 = vmatprep.mubr.bf16.mxu0 0
        %1440 = vmatmul.mubr.bf16.gmra.mxu0 %v693
        %v1441 = vpop.f32.mrf.mxu0
        %v1442 = vadd.f32 %v1390, %v1441
        %v1443 = vpop.f32.mrf.mxu0
        %v1444 = vpop.f32.mrf.mxu0
        %v1445 = vpop.f32.mrf.mxu0
        %1446 = vdwg.mxu0
        %v1447 = vmax.f32 %v1442, 0.0
        %v1448 = vld [vmem:[%s9] sm:$0xf]
        %v1449 = vld [vmem:[%s9 + $0x4] sm:$0xf]
        %v1450 = vld [vmem:[%s9 + $0x8] sm:$0xf]
        %v1451 = vld [vmem:[%s9 + $0xc] sm:$0xf]
        %v1452 = vld [vmem:[%s9 + $0x10] sm:$0xf]
        %v1453 = vld [vmem:[%s9 + $0x14] sm:$0xf]
        %v1454 = vld [vmem:[%s9 + $0x18] sm:$0xf]
        %v1455 = vld [vmem:[%s9 + $0x1c] sm:$0xf]
        %v1456 = vpack.c.bf16 %v1447, %v1447
        %v1465 = vunpack.c.l.b16 %v1448
        %v1466 = vunpack.c.l.b16 %v1449
        %v1467 = vunpack.c.l.b16 %v1450
        %v1468 = vunpack.c.l.b16 %v1451
        %v1469 = vunpack.c.l.b16 %v1452
        %v1470 = vunpack.c.l.b16 %v1453
        %v1471 = vunpack.c.l.b16 %v1454
        %v1472 = vunpack.c.l.b16 %v1455
        %v1473 = vpack.c.b16 %v1466, %v1465
        %v1474 = vpack.c.b16 %v1468, %v1467
        %v1475 = vpack.c.b16 %v1470, %v1469
        %v1476 = vpack.c.b16 %v1472, %v1471
        %vm1481 = vcmask 523264
        %v1483 = vsel %vm1481, %v1456, 0
        %1485 = vmatprep.subr.bf16.mxu0 0
        %1486 = vmatpush1.bf16.msra.mxu0 0
        %1487 = vmatprep.subr.bf16.mxu0 0
        %1488 = vmatpush1.bf16.msra.mxu0 0
        %1489 = vmatprep.subr.bf16.mxu0 0
        %1490 = vmatpush1.bf16.msra.mxu0 0
        %1491 = vmatprep.subr.bf16.mxu0 0
        %1492 = vmatpush1.bf16.msra.mxu0 0
        %1493 = vmatprep.subr.bf16.mxu0 0
        %1494 = vmatpush1.bf16.msra.mxu0 %v1476
        %1495 = vmatprep.subr.bf16.mxu0 0
        %1496 = vmatpush1.bf16.msra.mxu0 %v1475
        %1497 = vmatprep.subr.bf16.mxu0 0
        %1498 = vmatpush1.bf16.msra.mxu0 %v1474
        %1499 = vmatprep.subr.bf16.mxu0 0
        %1500 = vmatpush1.bf16.msra.mxu0 %v1473
        %1501 = vmatprep.subr.bf16.mxu0 0
        %1502 = vmatpush2.bf16.msra.mxu0 0
        %1503 = vmatprep.subr.bf16.mxu0 0
        %1504 = vmatpush2.bf16.msra.mxu0 0
        %1505 = vmatprep.subr.bf16.mxu0 0
        %1506 = vmatpush2.bf16.msra.mxu0 0
        %1507 = vmatprep.subr.bf16.mxu0 0
        %1508 = vmatpush2.bf16.msra.mxu0 0
        %1509 = vmatprep.subr.bf16.mxu0 0
        %1510 = vmatpush2.bf16.msra.mxu0 0
        %1511 = vmatprep.subr.bf16.mxu0 0
        %1512 = vmatpush2.bf16.msra.mxu0 0
        %1513 = vmatprep.subr.bf16.mxu0 0
        %1514 = vmatpush2.bf16.msra.mxu0 0
        %1515 = vmatprep.subr.bf16.mxu0 0
        %1516 = vmatpush2.bf16.msra.mxu0 0
        %1517 = vmatprep.mubr.bf16.mxu0 0
        %1518 = vmatmul.mubr.bf16.gmra.mxu0 %v1483
        %v1519 = vpop.f32.mrf.mxu0
        %v1520 = vadd.f32 0.0, %v1519
        %v1521 = vpop.f32.mrf.mxu0
        %v1522 = vpop.f32.mrf.mxu0
        %v1523 = vpop.f32.mrf.mxu0
        %1524 = vdwg.mxu0
        %v1525 = vsel %vm557, %v1520, 0.0
        %1526 = vadd.xlane.f32.xlu0 %v1525
        %v1527 = vpop.xlane.xlu0 %1526
        %v1528 = vmul.f32 %v1527, %v1310
        %v1529 = vsub.f32 %v1520, %v1528
        %v1530 = vmul.f32 %v1529, %v1529
        %v1531 = vsel %vm557, %v1530, 0.0
        %1532 = vadd.xlane.f32.xlu0 %v1531
        %v1533 = vpop.xlane.xlu0 %1532
        %v1534 = vmul.f32 %v1533, %v1310
        %v1535 = vadd.f32 %v1534, 1e-05
        %v1536 = vrsqrt.pop %v1535
        %v1537 = vmul.f32 %v1529, %v1536
        %v1538 = vlaneseq
        %v1539 = vshrl.u32 %v1538, 7
        %v1540 = vsub.s32 2, %v1539
        %v1541 = vrot.slane %v1306, %v1540
        %v1542 = vmul.f32 %v1537, %v1541
        %v1543 = vlaneseq
        %v1544 = vshrl.u32 %v1543, 7
        %v1545 = vsub.s32 3, %v1544
        %v1546 = vrot.slane %v1306, %v1545
        %v1547 = vadd.f32 %v1542, %v1546
        %v1548 = vadd.f32 %v534, %v1547
        %s1549 = scalar_lea.vmem %s4, 16
        %v1550 = vld [vmem:[%s1549] sm:$0xf]
        %v1551 = vld [vmem:[%s1549 + $0x4] sm:$0xf]
        %v1552 = vld [vmem:[%s1549 + $0x8] sm:$0xf]
        %v1553 = vld [vmem:[%s1549 + $0xc] sm:$0xf]
        %v1554 = vpack.c.bf16 %v1548, %v1548
        %v1559 = vunpack.c.l.b16 %v1550
        %v1560 = vunpack.c.l.b16 %v1551
        %v1561 = vunpack.c.l.b16 %v1552
        %v1562 = vunpack.c.l.b16 %v1553
        %v1563 = vpack.c.b16 %v1560, %v1559
        %v1564 = vpack.c.b16 %v1562, %v1561
        %v1568 = vsel %vm557, %v1554, 0
        %1570 = vmatprep.subr.bf16.mxu0 0
        %1571 = vmatpush1.bf16.msra.mxu0 0
        %1572 = vmatprep.subr.bf16.mxu0 0
        %1573 = vmatpush1.bf16.msra.mxu0 0
        %1574 = vmatprep.subr.bf16.mxu0 0
        %1575 = vmatpush1.bf16.msra.mxu0 0
        %1576 = vmatprep.subr.bf16.mxu0 0
        %1577 = vmatpush1.bf16.msra.mxu0 0
        %1578 = vmatprep.subr.bf16.mxu0 0
        %1579 = vmatpush1.bf16.msra.mxu0 0
        %1580 = vmatprep.subr.bf16.mxu0 0
        %1581 = vmatpush1.bf16.msra.mxu0 0
        %1582 = vmatprep.subr.bf16.mxu0 0
        %1583 = vmatpush1.bf16.msra.mxu0 %v1564
        %1584 = vmatprep.subr.bf16.mxu0 0
        %1585 = vmatpush1.bf16.msra.mxu0 %v1563
        %1586 = vmatprep.subr.bf16.mxu0 0
        %1587 = vmatpush2.bf16.msra.mxu0 0
        %1588 = vmatprep.subr.bf16.mxu0 0
        %1589 = vmatpush2.bf16.msra.mxu0 0
        %1590 = vmatprep.subr.bf16.mxu0 0
        %1591 = vmatpush2.bf16.msra.mxu0 0
        %1592 = vmatprep.subr.bf16.mxu0 0
        %1593 = vmatpush2.bf16.msra.mxu0 0
        %1594 = vmatprep.subr.bf16.mxu0 0
        %1595 = vmatpush2.bf16.msra.mxu0 0
        %1596 = vmatprep.subr.bf16.mxu0 0
        %1597 = vmatpush2.bf16.msra.mxu0 0
        %1598 = vmatprep.subr.bf16.mxu0 0
        %1599 = vmatpush2.bf16.msra.mxu0 0
        %1600 = vmatprep.subr.bf16.mxu0 0
        %1601 = vmatpush2.bf16.msra.mxu0 0
        %1602 = vmatprep.mubr.bf16.mxu0 0
        %1603 = vmatmul.mubr.bf16.gmra.mxu0 %v1568
        %v1604 = vpop.f32.mrf.mxu0
        %v1605 = vadd.f32 0.0, %v1604
        %v1606 = vpop.f32.mrf.mxu0
        %v1607 = vpop.f32.mrf.mxu0
        %v1608 = vpop.f32.mrf.mxu0
        %1609 = vdwg.mxu0
        %s1610 = scalar_lea.vmem [#allocation7], 16
        %v1611 = vld [vmem:[%s1610] sm:$0xf]
        %v1612 = vld [vmem:[%s1610 + $0x4] sm:$0xf]
        %v1613 = vld [vmem:[%s1610 + $0x8] sm:$0xf]
        %v1614 = vld [vmem:[%s1610 + $0xc] sm:$0xf]
        %v1619 = vunpack.c.l.b16 %v1611
        %v1620 = vunpack.c.l.b16 %v1612
        %v1621 = vunpack.c.l.b16 %v1613
        %v1622 = vunpack.c.l.b16 %v1614
        %v1623 = vpack.c.b16 %v1620, %v1619
        %v1624 = vpack.c.b16 %v1622, %v1621
        %1627 = vmatprep.subr.bf16.mxu0 0
        %1628 = vmatpush1.bf16.msra.mxu0 0
        %1629 = vmatprep.subr.bf16.mxu0 0
        %1630 = vmatpush1.bf16.msra.mxu0 0
        %1631 = vmatprep.subr.bf16.mxu0 0
        %1632 = vmatpush1.bf16.msra.mxu0 0
        %1633 = vmatprep.subr.bf16.mxu0 0
        %1634 = vmatpush1.bf16.msra.mxu0 0
        %1635 = vmatprep.subr.bf16.mxu0 0
        %1636 = vmatpush1.bf16.msra.mxu0 0
        %1637 = vmatprep.subr.bf16.mxu0 0
        %1638 = vmatpush1.bf16.msra.mxu0 0
        %1639 = vmatprep.subr.bf16.mxu0 0
        %1640 = vmatpush1.bf16.msra.mxu0 %v1624
        %1641 = vmatprep.subr.bf16.mxu0 0
        %1642 = vmatpush1.bf16.msra.mxu0 %v1623
        %1643 = vmatprep.subr.bf16.mxu0 0
        %1644 = vmatpush2.bf16.msra.mxu0 0
        %1645 = vmatprep.subr.bf16.mxu0 0
        %1646 = vmatpush2.bf16.msra.mxu0 0
        %1647 = vmatprep.subr.bf16.mxu0 0
        %1648 = vmatpush2.bf16.msra.mxu0 0
        %1649 = vmatprep.subr.bf16.mxu0 0
        %1650 = vmatpush2.bf16.msra.mxu0 0
        %1651 = vmatprep.subr.bf16.mxu0 0
        %1652 = vmatpush2.bf16.msra.mxu0 0
        %1653 = vmatprep.subr.bf16.mxu0 0
        %1654 = vmatpush2.bf16.msra.mxu0 0
        %1655 = vmatprep.subr.bf16.mxu0 0
        %1656 = vmatpush2.bf16.msra.mxu0 0
        %1657 = vmatprep.subr.bf16.mxu0 0
        %1658 = vmatpush2.bf16.msra.mxu0 0
        %1659 = vmatprep.mubr.bf16.mxu0 0
        %1660 = vmatmul.mubr.bf16.gmra.mxu0 %v753
        %v1661 = vpop.f32.mrf.mxu0
        %v1662 = vadd.f32 0.0, %v1661
        %v1663 = vpop.f32.mrf.mxu0
        %v1664 = vpop.f32.mrf.mxu0
        %v1665 = vadd.f32 0.0, %v1664
        %v1666 = vpop.f32.mrf.mxu0
        %1667 = vdwg.mxu0
        %v1668 = vpack.c.bf16 %v1605, %v1605
        %v1669 = vpack.c.bf16 %v1665, %v1662
        %v1671 = vsel %vm798, %v1668, 0
        %v1674 = vsel %vm798, %v1669, 0
        %1676 = vmatprep.subr.bf16.mxu0 0
        %1677 = vmatpush1.bf16.xpose.msra.mxu0 0
        %1678 = vmatprep.subr.bf16.mxu0 0
        %1679 = vmatpush1.bf16.xpose.msra.mxu0 0
        %1680 = vmatprep.subr.bf16.mxu0 0
        %1681 = vmatpush1.bf16.xpose.msra.mxu0 0
        %1682 = vmatprep.subr.bf16.mxu0 0
        %1683 = vmatpush1.bf16.xpose.msra.mxu0 0
        %1684 = vmatprep.subr.bf16.mxu0 0
        %1685 = vmatpush1.bf16.xpose.msra.mxu0 0
        %1686 = vmatprep.subr.bf16.mxu0 0
        %1687 = vmatpush1.bf16.xpose.msra.mxu0 0
        %1688 = vmatprep.subr.bf16.mxu0 0
        %1689 = vmatpush1.bf16.xpose.msra.mxu0 0
        %1690 = vmatprep.subr.bf16.mxu0 0
        %1691 = vmatpush1.bf16.xpose.msra.mxu0 %v1674
        %1692 = vmatprep.subr.bf16.mxu0 0
        %1693 = vmatpush2.bf16.xpose.msra.mxu0 0
        %1694 = vmatprep.subr.bf16.mxu0 0
        %1695 = vmatpush2.bf16.xpose.msra.mxu0 0
        %1696 = vmatprep.subr.bf16.mxu0 0
        %1697 = vmatpush2.bf16.xpose.msra.mxu0 0
        %1698 = vmatprep.subr.bf16.mxu0 0
        %1699 = vmatpush2.bf16.xpose.msra.mxu0 0
        %1700 = vmatprep.subr.bf16.mxu0 0
        %1701 = vmatpush2.bf16.xpose.msra.mxu0 0
        %1702 = vmatprep.subr.bf16.mxu0 0
        %1703 = vmatpush2.bf16.xpose.msra.mxu0 0
        %1704 = vmatprep.subr.bf16.mxu0 0
        %1705 = vmatpush2.bf16.xpose.msra.mxu0 0
        %1706 = vmatprep.subr.bf16.mxu0 0
        %1707 = vmatpush2.bf16.xpose.msra.mxu0 0
        %1708 = vmatprep.mubr.bf16.mxu0 0
        %1709 = vmatmul.mubr.bf16.gmra.mxu0 %v1671
        %v1710 = vpop.f32.mrf.mxu0
        %v1711 = vadd.f32 0.0, %v1710
        %v1712 = vpop.f32.mrf.mxu0
        %v1713 = vpop.f32.mrf.mxu0
        %v1714 = vpop.f32.mrf.mxu0
        %1715 = vdwg.mxu0
        %v1716 = vsel %vm845, %v1711, -inf
        %1717 = vmax.xlane.f32.xlu0 %v1716
        %v1718 = vpop.xlane.xlu0 %1717
        %v1719 = vsub.f32 %v1711, %v1718
        %v1720 = vmul.f32 %v1719, 1.442695
        %v1721 = vpow.pop %v1720
        %v1722 = vsel %vm845, %v1721, 0.0
        %1723 = vadd.xlane.f32.xlu0 %v1722
        %v1724 = vpop.xlane.xlu0 %1723
        %v1725 = vrcp.pop %v1724
        %v1726 = vmul.f32 %v1721, %v1725
        %v1727 = vpack.c.bf16 %v1726, %v1726
        %1729 = vrot.lane.b32.xlu0 %v1669, 96
        %v1730 = vpop.permute.xlu0 %1729
        %v1733 = vsel %vm845, %v1727, 0
        %1735 = vmatprep.subr.bf16.mxu0 0
        %1736 = vmatpush1.bf16.msra.mxu0 0
        %1737 = vmatprep.subr.bf16.mxu0 0
        %1738 = vmatpush1.bf16.msra.mxu0 0
        %1739 = vmatprep.subr.bf16.mxu0 0
        %1740 = vmatpush1.bf16.msra.mxu0 0
        %1741 = vmatprep.subr.bf16.mxu0 0
        %1742 = vmatpush1.bf16.msra.mxu0 0
        %1743 = vmatprep.subr.bf16.mxu0 0
        %1744 = vmatpush1.bf16.msra.mxu0 0
        %1745 = vmatprep.subr.bf16.mxu0 0
        %1746 = vmatpush1.bf16.msra.mxu0 0
        %1747 = vmatprep.subr.bf16.mxu0 0
        %1748 = vmatpush1.bf16.msra.mxu0 0
        %1749 = vmatprep.subr.bf16.mxu0 0
        %1750 = vmatpush1.bf16.msra.mxu0 %v1730
        %1751 = vmatprep.subr.bf16.mxu0 0
        %1752 = vmatpush2.bf16.msra.mxu0 0
        %1753 = vmatprep.subr.bf16.mxu0 0
        %1754 = vmatpush2.bf16.msra.mxu0 0
        %1755 = vmatprep.subr.bf16.mxu0 0
        %1756 = vmatpush2.bf16.msra.mxu0 0
        %1757 = vmatprep.subr.bf16.mxu0 0
        %1758 = vmatpush2.bf16.msra.mxu0 0
        %1759 = vmatprep.subr.bf16.mxu0 0
        %1760 = vmatpush2.bf16.msra.mxu0 0
        %1761 = vmatprep.subr.bf16.mxu0 0
        %1762 = vmatpush2.bf16.msra.mxu0 0
        %1763 = vmatprep.subr.bf16.mxu0 0
        %1764 = vmatpush2.bf16.msra.mxu0 0
        %1765 = vmatprep.subr.bf16.mxu0 0
        %1766 = vmatpush2.bf16.msra.mxu0 0
        %1767 = vmatprep.mubr.bf16.mxu0 0
        %1768 = vmatmul.mubr.bf16.gmra.mxu0 %v1733
        %v1769 = vpop.f32.mrf.mxu0
        %v1770 = vadd.f32 0.0, %v1769
        %v1771 = vpop.f32.mrf.mxu0
        %v1772 = vpop.f32.mrf.mxu0
        %v1773 = vpop.f32.mrf.mxu0
        %1774 = vdwg.mxu0
        %1776 = vrot.lane.b32.xlu0 %v1668, 120
        %v1777 = vpop.permute.xlu0 %1776
        %1778 = vrot.lane.b32.xlu0 %v1669, 120
        %v1779 = vpop.permute.xlu0 %1778
        %v1781 = vsel %vm798, %v1777, 0
        %v1784 = vsel %vm798, %v1779, 0
        %1786 = vmatprep.subr.bf16.mxu0 0
        %1787 = vmatpush1.bf16.xpose.msra.mxu0 0
        %1788 = vmatprep.subr.bf16.mxu0 0
        %1789 = vmatpush1.bf16.xpose.msra.mxu0 0
        %1790 = vmatprep.subr.bf16.mxu0 0
        %1791 = vmatpush1.bf16.xpose.msra.mxu0 0
        %1792 = vmatprep.subr.bf16.mxu0 0
        %1793 = vmatpush1.bf16.xpose.msra.mxu0 0
        %1794 = vmatprep.subr.bf16.mxu0 0
        %1795 = vmatpush1.bf16.xpose.msra.mxu0 0
        %1796 = vmatprep.subr.bf16.mxu0 0
        %1797 = vmatpush1.bf16.xpose.msra.mxu0 0
        %1798 = vmatprep.subr.bf16.mxu0 0
        %1799 = vmatpush1.bf16.xpose.msra.mxu0 0
        %1800 = vmatprep.subr.bf16.mxu0 0
        %1801 = vmatpush1.bf16.xpose.msra.mxu0 %v1784
        %1802 = vmatprep.subr.bf16.mxu0 0
        %1803 = vmatpush2.bf16.xpose.msra.mxu0 0
        %1804 = vmatprep.subr.bf16.mxu0 0
        %1805 = vmatpush2.bf16.xpose.msra.mxu0 0
        %1806 = vmatprep.subr.bf16.mxu0 0
        %1807 = vmatpush2.bf16.xpose.msra.mxu0 0
        %1808 = vmatprep.subr.bf16.mxu0 0
        %1809 = vmatpush2.bf16.xpose.msra.mxu0 0
        %1810 = vmatprep.subr.bf16.mxu0 0
        %1811 = vmatpush2.bf16.xpose.msra.mxu0 0
        %1812 = vmatprep.subr.bf16.mxu0 0
        %1813 = vmatpush2.bf16.xpose.msra.mxu0 0
        %1814 = vmatprep.subr.bf16.mxu0 0
        %1815 = vmatpush2.bf16.xpose.msra.mxu0 0
        %1816 = vmatprep.subr.bf16.mxu0 0
        %1817 = vmatpush2.bf16.xpose.msra.mxu0 0
        %1818 = vmatprep.mubr.bf16.mxu0 0
        %1819 = vmatmul.mubr.bf16.gmra.mxu0 %v1781
        %v1820 = vpop.f32.mrf.mxu0
        %v1821 = vadd.f32 0.0, %v1820
        %v1822 = vpop.f32.mrf.mxu0
        %v1823 = vpop.f32.mrf.mxu0
        %v1824 = vpop.f32.mrf.mxu0
        %1825 = vdwg.mxu0
        %v1826 = vsel %vm845, %v1821, -inf
        %1827 = vmax.xlane.f32.xlu0 %v1826
        %v1828 = vpop.xlane.xlu0 %1827
        %v1829 = vsub.f32 %v1821, %v1828
        %v1830 = vmul.f32 %v1829, 1.442695
        %v1831 = vpow.pop %v1830
        %v1832 = vsel %vm845, %v1831, 0.0
        %1833 = vadd.xlane.f32.xlu0 %v1832
        %v1834 = vpop.xlane.xlu0 %1833
        %v1835 = vrcp.pop %v1834
        %v1836 = vmul.f32 %v1831, %v1835
        %v1837 = vpack.c.bf16 %v1836, %v1836
        %1838 = vrot.lane.b32.xlu0 %v1669, 88
        %v1839 = vpop.permute.xlu0 %1838
        %v1842 = vsel %vm845, %v1837, 0
        %1844 = vmatprep.subr.bf16.mxu0 0
        %1845 = vmatpush1.bf16.msra.mxu0 0
        %1846 = vmatprep.subr.bf16.mxu0 0
        %1847 = vmatpush1.bf16.msra.mxu0 0
        %1848 = vmatprep.subr.bf16.mxu0 0
        %1849 = vmatpush1.bf16.msra.mxu0 0
        %1850 = vmatprep.subr.bf16.mxu0 0
        %1851 = vmatpush1.bf16.msra.mxu0 0
        %1852 = vmatprep.subr.bf16.mxu0 0
        %1853 = vmatpush1.bf16.msra.mxu0 0
        %1854 = vmatprep.subr.bf16.mxu0 0
        %1855 = vmatpush1.bf16.msra.mxu0 0
        %1856 = vmatprep.subr.bf16.mxu0 0
        %1857 = vmatpush1.bf16.msra.mxu0 0
        %1858 = vmatprep.subr.bf16.mxu0 0
        %1859 = vmatpush1.bf16.msra.mxu0 %v1839
        %1860 = vmatprep.subr.bf16.mxu0 0
        %1861 = vmatpush2.bf16.msra.mxu0 0
        %1862 = vmatprep.subr.bf16.mxu0 0
        %1863 = vmatpush2.bf16.msra.mxu0 0
        %1864 = vmatprep.subr.bf16.mxu0 0
        %1865 = vmatpush2.bf16.msra.mxu0 0
        %1866 = vmatprep.subr.bf16.mxu0 0
        %1867 = vmatpush2.bf16.msra.mxu0 0
        %1868 = vmatprep.subr.bf16.mxu0 0
        %1869 = vmatpush2.bf16.msra.mxu0 0
        %1870 = vmatprep.subr.bf16.mxu0 0
        %1871 = vmatpush2.bf16.msra.mxu0 0
        %1872 = vmatprep.subr.bf16.mxu0 0
        %1873 = vmatpush2.bf16.msra.mxu0 0
        %1874 = vmatprep.subr.bf16.mxu0 0
        %1875 = vmatpush2.bf16.msra.mxu0 0
        %1876 = vmatprep.mubr.bf16.mxu0 0
        %1877 = vmatmul.mubr.bf16.gmra.mxu0 %v1842
        %v1878 = vpop.f32.mrf.mxu0
        %v1879 = vadd.f32 0.0, %v1878
        %v1880 = vpop.f32.mrf.mxu0
        %v1881 = vpop.f32.mrf.mxu0
        %v1882 = vpop.f32.mrf.mxu0
        %1883 = vdwg.mxu0
        %1884 = vrot.lane.b32.xlu0 %v1668, 112
        %v1885 = vpop.permute.xlu0 %1884
        %1886 = vrot.lane.b32.xlu0 %v1669, 112
        %v1887 = vpop.permute.xlu0 %1886
        %v1889 = vsel %vm798, %v1885, 0
        %v1892 = vsel %vm798, %v1887, 0
        %1894 = vmatprep.subr.bf16.mxu0 0
        %1895 = vmatpush1.bf16.xpose.msra.mxu0 0
        %1896 = vmatprep.subr.bf16.mxu0 0
        %1897 = vmatpush1.bf16.xpose.msra.mxu0 0
        %1898 = vmatprep.subr.bf16.mxu0 0
        %1899 = vmatpush1.bf16.xpose.msra.mxu0 0
        %1900 = vmatprep.subr.bf16.mxu0 0
        %1901 = vmatpush1.bf16.xpose.msra.mxu0 0
        %1902 = vmatprep.subr.bf16.mxu0 0
        %1903 = vmatpush1.bf16.xpose.msra.mxu0 0
        %1904 = vmatprep.subr.bf16.mxu0 0
        %1905 = vmatpush1.bf16.xpose.msra.mxu0 0
        %1906 = vmatprep.subr.bf16.mxu0 0
        %1907 = vmatpush1.bf16.xpose.msra.mxu0 0
        %1908 = vmatprep.subr.bf16.mxu0 0
        %1909 = vmatpush1.bf16.xpose.msra.mxu0 %v1892
        %1910 = vmatprep.subr.bf16.mxu0 0
        %1911 = vmatpush2.bf16.xpose.msra.mxu0 0
        %1912 = vmatprep.subr.bf16.mxu0 0
        %1913 = vmatpush2.bf16.xpose.msra.mxu0 0
        %1914 = vmatprep.subr.bf16.mxu0 0
        %1915 = vmatpush2.bf16.xpose.msra.mxu0 0
        %1916 = vmatprep.subr.bf16.mxu0 0
        %1917 = vmatpush2.bf16.xpose.msra.mxu0 0
        %1918 = vmatprep.subr.bf16.mxu0 0
        %1919 = vmatpush2.bf16.xpose.msra.mxu0 0
        %1920 = vmatprep.subr.bf16.mxu0 0
        %1921 = vmatpush2.bf16.xpose.msra.mxu0 0
        %1922 = vmatprep.subr.bf16.mxu0 0
        %1923 = vmatpush2.bf16.xpose.msra.mxu0 0
        %1924 = vmatprep.subr.bf16.mxu0 0
        %1925 = vmatpush2.bf16.xpose.msra.mxu0 0
        %1926 = vmatprep.mubr.bf16.mxu0 0
        %1927 = vmatmul.mubr.bf16.gmra.mxu0 %v1889
        %v1928 = vpop.f32.mrf.mxu0
        %v1929 = vadd.f32 0.0, %v1928
        %v1930 = vpop.f32.mrf.mxu0
        %v1931 = vpop.f32.mrf.mxu0
        %v1932 = vpop.f32.mrf.mxu0
        %1933 = vdwg.mxu0
        %v1934 = vsel %vm845, %v1929, -inf
        %1935 = vmax.xlane.f32.xlu0 %v1934
        %v1936 = vpop.xlane.xlu0 %1935
        %v1937 = vsub.f32 %v1929, %v1936
        %v1938 = vmul.f32 %v1937, 1.442695
        %v1939 = vpow.pop %v1938
        %v1940 = vsel %vm845, %v1939, 0.0
        %1941 = vadd.xlane.f32.xlu0 %v1940
        %v1942 = vpop.xlane.xlu0 %1941
        %v1943 = vrcp.pop %v1942
        %v1944 = vmul.f32 %v1939, %v1943
        %v1945 = vpack.c.bf16 %v1944, %v1944
        %1946 = vrot.lane.b32.xlu0 %v1669, 80
        %v1947 = vpop.permute.xlu0 %1946
        %v1950 = vsel %vm845, %v1945, 0
        %1952 = vmatprep.subr.bf16.mxu0 0
        %1953 = vmatpush1.bf16.msra.mxu0 0
        %1954 = vmatprep.subr.bf16.mxu0 0
        %1955 = vmatpush1.bf16.msra.mxu0 0
        %1956 = vmatprep.subr.bf16.mxu0 0
        %1957 = vmatpush1.bf16.msra.mxu0 0
        %1958 = vmatprep.subr.bf16.mxu0 0
        %1959 = vmatpush1.bf16.msra.mxu0 0
        %1960 = vmatprep.subr.bf16.mxu0 0
        %1961 = vmatpush1.bf16.msra.mxu0 0
        %1962 = vmatprep.subr.bf16.mxu0 0
        %1963 = vmatpush1.bf16.msra.mxu0 0
        %1964 = vmatprep.subr.bf16.mxu0 0
        %1965 = vmatpush1.bf16.msra.mxu0 0
        %1966 = vmatprep.subr.bf16.mxu0 0
        %1967 = vmatpush1.bf16.msra.mxu0 %v1947
        %1968 = vmatprep.subr.bf16.mxu0 0
        %1969 = vmatpush2.bf16.msra.mxu0 0
        %1970 = vmatprep.subr.bf16.mxu0 0
        %1971 = vmatpush2.bf16.msra.mxu0 0
        %1972 = vmatprep.subr.bf16.mxu0 0
        %1973 = vmatpush2.bf16.msra.mxu0 0
        %1974 = vmatprep.subr.bf16.mxu0 0
        %1975 = vmatpush2.bf16.msra.mxu0 0
        %1976 = vmatprep.subr.bf16.mxu0 0
        %1977 = vmatpush2.bf16.msra.mxu0 0
        %1978 = vmatprep.subr.bf16.mxu0 0
        %1979 = vmatpush2.bf16.msra.mxu0 0
        %1980 = vmatprep.subr.bf16.mxu0 0
        %1981 = vmatpush2.bf16.msra.mxu0 0
        %1982 = vmatprep.subr.bf16.mxu0 0
        %1983 = vmatpush2.bf16.msra.mxu0 0
        %1984 = vmatprep.mubr.bf16.mxu0 0
        %1985 = vmatmul.mubr.bf16.gmra.mxu0 %v1950
        %v1986 = vpop.f32.mrf.mxu0
        %v1987 = vadd.f32 0.0, %v1986
        %v1988 = vpop.f32.mrf.mxu0
        %v1989 = vpop.f32.mrf.mxu0
        %v1990 = vpop.f32.mrf.mxu0
        %1991 = vdwg.mxu0
        %1992 = vrot.lane.b32.xlu0 %v1668, 104
        %v1993 = vpop.permute.xlu0 %1992
        %1994 = vrot.lane.b32.xlu0 %v1669, 104
        %v1995 = vpop.permute.xlu0 %1994
        %v1997 = vsel %vm798, %v1993, 0
        %v2000 = vsel %vm798, %v1995, 0
        %2002 = vmatprep.subr.bf16.mxu0 0
        %2003 = vmatpush1.bf16.xpose.msra.mxu0 0
        %2004 = vmatprep.subr.bf16.mxu0 0
        %2005 = vmatpush1.bf16.xpose.msra.mxu0 0
        %2006 = vmatprep.subr.bf16.mxu0 0
        %2007 = vmatpush1.bf16.xpose.msra.mxu0 0
        %2008 = vmatprep.subr.bf16.mxu0 0
        %2009 = vmatpush1.bf16.xpose.msra.mxu0 0
        %2010 = vmatprep.subr.bf16.mxu0 0
        %2011 = vmatpush1.bf16.xpose.msra.mxu0 0
        %2012 = vmatprep.subr.bf16.mxu0 0
        %2013 = vmatpush1.bf16.xpose.msra.mxu0 0
        %2014 = vmatprep.subr.bf16.mxu0 0
        %2015 = vmatpush1.bf16.xpose.msra.mxu0 0
        %2016 = vmatprep.subr.bf16.mxu0 0
        %2017 = vmatpush1.bf16.xpose.msra.mxu0 %v2000
        %2018 = vmatprep.subr.bf16.mxu0 0
        %2019 = vmatpush2.bf16.xpose.msra.mxu0 0
        %2020 = vmatprep.subr.bf16.mxu0 0
        %2021 = vmatpush2.bf16.xpose.msra.mxu0 0
        %2022 = vmatprep.subr.bf16.mxu0 0
        %2023 = vmatpush2.bf16.xpose.msra.mxu0 0
        %2024 = vmatprep.subr.bf16.mxu0 0
        %2025 = vmatpush2.bf16.xpose.msra.mxu0 0
        %2026 = vmatprep.subr.bf16.mxu0 0
        %2027 = vmatpush2.bf16.xpose.msra.mxu0 0
        %2028 = vmatprep.subr.bf16.mxu0 0
        %2029 = vmatpush2.bf16.xpose.msra.mxu0 0
        %2030 = vmatprep.subr.bf16.mxu0 0
        %2031 = vmatpush2.bf16.xpose.msra.mxu0 0
        %2032 = vmatprep.subr.bf16.mxu0 0
        %2033 = vmatpush2.bf16.xpose.msra.mxu0 0
        %2034 = vmatprep.mubr.bf16.mxu0 0
        %2035 = vmatmul.mubr.bf16.gmra.mxu0 %v1997
        %v2036 = vpop.f32.mrf.mxu0
        %v2037 = vadd.f32 0.0, %v2036
        %v2038 = vpop.f32.mrf.mxu0
        %v2039 = vpop.f32.mrf.mxu0
        %v2040 = vpop.f32.mrf.mxu0
        %2041 = vdwg.mxu0
        %v2042 = vsel %vm845, %v2037, -inf
        %2043 = vmax.xlane.f32.xlu0 %v2042
        %v2044 = vpop.xlane.xlu0 %2043
        %v2045 = vsub.f32 %v2037, %v2044
        %v2046 = vmul.f32 %v2045, 1.442695
        %v2047 = vpow.pop %v2046
        %v2048 = vsel %vm845, %v2047, 0.0
        %2049 = vadd.xlane.f32.xlu0 %v2048
        %v2050 = vpop.xlane.xlu0 %2049
        %v2051 = vrcp.pop %v2050
        %v2052 = vmul.f32 %v2047, %v2051
        %v2053 = vpack.c.bf16 %v2052, %v2052
        %2054 = vrot.lane.b32.xlu0 %v1669, 72
        %v2055 = vpop.permute.xlu0 %2054
        %v2058 = vsel %vm845, %v2053, 0
        %2060 = vmatprep.subr.bf16.mxu0 0
        %2061 = vmatpush1.bf16.msra.mxu0 0
        %2062 = vmatprep.subr.bf16.mxu0 0
        %2063 = vmatpush1.bf16.msra.mxu0 0
        %2064 = vmatprep.subr.bf16.mxu0 0
        %2065 = vmatpush1.bf16.msra.mxu0 0
        %2066 = vmatprep.subr.bf16.mxu0 0
        %2067 = vmatpush1.bf16.msra.mxu0 0
        %2068 = vmatprep.subr.bf16.mxu0 0
        %2069 = vmatpush1.bf16.msra.mxu0 0
        %2070 = vmatprep.subr.bf16.mxu0 0
        %2071 = vmatpush1.bf16.msra.mxu0 0
        %2072 = vmatprep.subr.bf16.mxu0 0
        %2073 = vmatpush1.bf16.msra.mxu0 0
        %2074 = vmatprep.subr.bf16.mxu0 0
        %2075 = vmatpush1.bf16.msra.mxu0 %v2055
        %2076 = vmatprep.subr.bf16.mxu0 0
        %2077 = vmatpush2.bf16.msra.mxu0 0
        %2078 = vmatprep.subr.bf16.mxu0 0
        %2079 = vmatpush2.bf16.msra.mxu0 0
        %2080 = vmatprep.subr.bf16.mxu0 0
        %2081 = vmatpush2.bf16.msra.mxu0 0
        %2082 = vmatprep.subr.bf16.mxu0 0
        %2083 = vmatpush2.bf16.msra.mxu0 0
        %2084 = vmatprep.subr.bf16.mxu0 0
        %2085 = vmatpush2.bf16.msra.mxu0 0
        %2086 = vmatprep.subr.bf16.mxu0 0
        %2087 = vmatpush2.bf16.msra.mxu0 0
        %2088 = vmatprep.subr.bf16.mxu0 0
        %2089 = vmatpush2.bf16.msra.mxu0 0
        %2090 = vmatprep.subr.bf16.mxu0 0
        %2091 = vmatpush2.bf16.msra.mxu0 0
        %2092 = vmatprep.mubr.bf16.mxu0 0
        %2093 = vmatmul.mubr.bf16.gmra.mxu0 %v2058
        %v2094 = vpop.f32.mrf.mxu0
        %v2095 = vadd.f32 0.0, %v2094
        %v2096 = vpop.f32.mrf.mxu0
        %v2097 = vpop.f32.mrf.mxu0
        %v2098 = vpop.f32.mrf.mxu0
        %2099 = vdwg.mxu0
        %2101 = vrot.lane.b32.xlu0 %v1879, 8
        %v2102 = vpop.permute.xlu0 %2101
        %2105 = vrot.lane.b32.xlu0 %v1987, 16
        %v2106 = vpop.permute.xlu0 %2105
        %2109 = vrot.lane.b32.xlu0 %v2095, 24
        %v2110 = vpop.permute.xlu0 %2109
        %v2112 = vsel %vm798, %v1770, %v2102
        %v2113 = vsel %vm845, %v2112, %v2106
        %v2114 = vsel %vm1244, %v2113, %v2110
        %s2115 = scalar_lea.vmem [#allocation8], 16
        %v2116 = vld [vmem:[%s2115] sm:$0xf]
        %v2117 = vld [vmem:[%s2115 + $0x4] sm:$0xf]
        %v2118 = vld [vmem:[%s2115 + $0x8] sm:$0xf]
        %v2119 = vld [vmem:[%s2115 + $0xc] sm:$0xf]
        %v2120 = vpack.c.bf16 %v2114, %v2114
        %v2125 = vunpack.c.l.b16 %v2116
        %v2126 = vunpack.c.l.b16 %v2117
        %v2127 = vunpack.c.l.b16 %v2118
        %v2128 = vunpack.c.l.b16 %v2119
        %v2129 = vpack.c.b16 %v2126, %v2125
        %v2130 = vpack.c.b16 %v2128, %v2127
        %v2134 = vsel %vm557, %v2120, 0
        %2136 = vmatprep.subr.bf16.mxu0 0
        %2137 = vmatpush1.bf16.msra.mxu0 0
        %2138 = vmatprep.subr.bf16.mxu0 0
        %2139 = vmatpush1.bf16.msra.mxu0 0
        %2140 = vmatprep.subr.bf16.mxu0 0
        %2141 = vmatpush1.bf16.msra.mxu0 0
        %2142 = vmatprep.subr.bf16.mxu0 0
        %2143 = vmatpush1.bf16.msra.mxu0 0
        %2144 = vmatprep.subr.bf16.mxu0 0
        %2145 = vmatpush1.bf16.msra.mxu0 0
        %2146 = vmatprep.subr.bf16.mxu0 0
        %2147 = vmatpush1.bf16.msra.mxu0 0
        %2148 = vmatprep.subr.bf16.mxu0 0
        %2149 = vmatpush1.bf16.msra.mxu0 %v2130
        %2150 = vmatprep.subr.bf16.mxu0 0
        %2151 = vmatpush1.bf16.msra.mxu0 %v2129
        %2152 = vmatprep.subr.bf16.mxu0 0
        %2153 = vmatpush2.bf16.msra.mxu0 0
        %2154 = vmatprep.subr.bf16.mxu0 0
        %2155 = vmatpush2.bf16.msra.mxu0 0
        %2156 = vmatprep.subr.bf16.mxu0 0
        %2157 = vmatpush2.bf16.msra.mxu0 0
        %2158 = vmatprep.subr.bf16.mxu0 0
        %2159 = vmatpush2.bf16.msra.mxu0 0
        %2160 = vmatprep.subr.bf16.mxu0 0
        %2161 = vmatpush2.bf16.msra.mxu0 0
        %2162 = vmatprep.subr.bf16.mxu0 0
        %2163 = vmatpush2.bf16.msra.mxu0 0
        %2164 = vmatprep.subr.bf16.mxu0 0
        %2165 = vmatpush2.bf16.msra.mxu0 0
        %2166 = vmatprep.subr.bf16.mxu0 0
        %2167 = vmatpush2.bf16.msra.mxu0 0
        %2168 = vmatprep.mubr.bf16.mxu0 0
        %2169 = vmatmul.mubr.bf16.gmra.mxu0 %v2134
        %v2170 = vpop.f32.mrf.mxu0
        %v2171 = vadd.f32 0.0, %v2170
        %v2172 = vpop.f32.mrf.mxu0
        %v2173 = vpop.f32.mrf.mxu0
        %v2174 = vpop.f32.mrf.mxu0
        %2175 = vdwg.mxu0
        %s2176 = scalar_lea.vmem %s10, 4
        %v2177 = vld [vmem:[%s2176] sm:$0xf]
        %v2178 = vsel %vm557, %v2171, 0.0
        %2179 = vadd.xlane.f32.xlu0 %v2178
        %v2180 = vpop.xlane.xlu0 %2179
        %v2181 = vmul.f32 %v2180, %v1310
        %v2182 = vsub.f32 %v2171, %v2181
        %v2183 = vmul.f32 %v2182, %v2182
        %v2184 = vsel %vm557, %v2183, 0.0
        %2185 = vadd.xlane.f32.xlu0 %v2184
        %v2186 = vpop.xlane.xlu0 %2185
        %v2187 = vmul.f32 %v2186, %v1310
        %v2188 = vadd.f32 %v2187, 1e-05
        %v2189 = vrsqrt.pop %v2188
        %v2190 = vmul.f32 %v2182, %v2189
        %v2191 = vlaneseq
        %v2192 = vshrl.u32 %v2191, 7
        %v2193 = vsub.s32 0, %v2192
        %v2194 = vrot.slane %v2177, %v2193
        %v2195 = vmul.f32 %v2190, %v2194
        %v2196 = vlaneseq
        %v2197 = vshrl.u32 %v2196, 7
        %v2198 = vsub.s32 1, %v2197
        %v2199 = vrot.slane %v2177, %v2198
        %v2200 = vadd.f32 %v2195, %v2199
        %s2201 = scalar_lea.vmem [#allocation10], 16
        %v2202 = vld [vmem:[%s2201] sm:$0xf]
        %v2203 = vld [vmem:[%s2201 + $0x4] sm:$0xf]
        %v2204 = vld [vmem:[%s2201 + $0x8] sm:$0xf]
        %v2205 = vld [vmem:[%s2201 + $0xc] sm:$0xf]
        %s2206 = scalar_lea.vmem [#allocation11], 16
        %v2207 = vld [vmem:[%s2206] sm:$0xf]
        %v2208 = vld [vmem:[%s2206 + $0x4] sm:$0xf]
        %v2209 = vld [vmem:[%s2206 + $0x8] sm:$0xf]
        %v2210 = vld [vmem:[%s2206 + $0xc] sm:$0xf]
        %v2211 = vpack.c.bf16 %v2200, %v2200
        %v2216 = vunpack.c.l.b16 %v2207
        %v2217 = vunpack.c.l.b16 %v2208
        %v2218 = vunpack.c.l.b16 %v2209
        %v2219 = vunpack.c.l.b16 %v2210
        %v2220 = vpack.c.b16 %v2217, %v2216
        %v2221 = vpack.c.b16 %v2219, %v2218
        %v2225 = vsel %vm557, %v2211, 0
        %2227 = vmatprep.subr.bf16.mxu0 0
        %2228 = vmatpush1.bf16.msra.mxu0 0
        %2229 = vmatprep.subr.bf16.mxu0 0
        %2230 = vmatpush1.bf16.msra.mxu0 0
        %2231 = vmatprep.subr.bf16.mxu0 0
        %2232 = vmatpush1.bf16.msra.mxu0 0
        %2233 = vmatprep.subr.bf16.mxu0 0
        %2234 = vmatpush1.bf16.msra.mxu0 0
        %2235 = vmatprep.subr.bf16.mxu0 0
        %2236 = vmatpush1.bf16.msra.mxu0 0
        %2237 = vmatprep.subr.bf16.mxu0 0
        %2238 = vmatpush1.bf16.msra.mxu0 0
        %2239 = vmatprep.subr.bf16.mxu0 0
        %2240 = vmatpush1.bf16.msra.mxu0 %v2221
        %2241 = vmatprep.subr.bf16.mxu0 0
        %2242 = vmatpush1.bf16.msra.mxu0 %v2220
        %2243 = vmatprep.subr.bf16.mxu0 0
        %2244 = vmatpush2.bf16.msra.mxu0 0
        %2245 = vmatprep.subr.bf16.mxu0 0
        %2246 = vmatpush2.bf16.msra.mxu0 0
        %2247 = vmatprep.subr.bf16.mxu0 0
        %2248 = vmatpush2.bf16.msra.mxu0 0
        %2249 = vmatprep.subr.bf16.mxu0 0
        %2250 = vmatpush2.bf16.msra.mxu0 0
        %2251 = vmatprep.subr.bf16.mxu0 0
        %2252 = vmatpush2.bf16.msra.mxu0 0
        %2253 = vmatprep.subr.bf16.mxu0 0
        %2254 = vmatpush2.bf16.msra.mxu0 0
        %2255 = vmatprep.subr.bf16.mxu0 0
        %2256 = vmatpush2.bf16.msra.mxu0 0
        %2257 = vmatprep.subr.bf16.mxu0 0
        %2258 = vmatpush2.bf16.msra.mxu0 0
        %2259 = vmatprep.mubr.bf16.mxu0 0
        %2260 = vmatmul.mubr.bf16.gmra.mxu0 %v2225
        %v2261 = vpop.f32.mrf.mxu0
        %v2262 = vadd.f32 0.0, %v2261
        %v2263 = vpop.f32.mrf.mxu0
        %v2264 = vpop.f32.mrf.mxu0
        %v2265 = vpop.f32.mrf.mxu0
        %2266 = vdwg.mxu0
        %v2271 = vunpack.c.l.b16 %v2202
        %v2272 = vunpack.c.l.b16 %v2203
        %v2273 = vunpack.c.l.b16 %v2204
        %v2274 = vunpack.c.l.b16 %v2205
        %v2275 = vpack.c.b16 %v2272, %v2271
        %v2276 = vpack.c.b16 %v2274, %v2273
        %2279 = vmatprep.subr.bf16.mxu0 0
        %2280 = vmatpush1.bf16.msra.mxu0 0
        %2281 = vmatprep.subr.bf16.mxu0 0
        %2282 = vmatpush1.bf16.msra.mxu0 0
        %2283 = vmatprep.subr.bf16.mxu0 0
        %2284 = vmatpush1.bf16.msra.mxu0 0
        %2285 = vmatprep.subr.bf16.mxu0 0
        %2286 = vmatpush1.bf16.msra.mxu0 0
        %2287 = vmatprep.subr.bf16.mxu0 0
        %2288 = vmatpush1.bf16.msra.mxu0 0
        %2289 = vmatprep.subr.bf16.mxu0 0
        %2290 = vmatpush1.bf16.msra.mxu0 0
        %2291 = vmatprep.subr.bf16.mxu0 0
        %2292 = vmatpush1.bf16.msra.mxu0 %v2276
        %2293 = vmatprep.subr.bf16.mxu0 0
        %2294 = vmatpush1.bf16.msra.mxu0 %v2275
        %2295 = vmatprep.subr.bf16.mxu0 0
        %2296 = vmatpush2.bf16.msra.mxu0 0
        %2297 = vmatprep.subr.bf16.mxu0 0
        %2298 = vmatpush2.bf16.msra.mxu0 0
        %2299 = vmatprep.subr.bf16.mxu0 0
        %2300 = vmatpush2.bf16.msra.mxu0 0
        %2301 = vmatprep.subr.bf16.mxu0 0
        %2302 = vmatpush2.bf16.msra.mxu0 0
        %2303 = vmatprep.subr.bf16.mxu0 0
        %2304 = vmatpush2.bf16.msra.mxu0 0
        %2305 = vmatprep.subr.bf16.mxu0 0
        %2306 = vmatpush2.bf16.msra.mxu0 0
        %2307 = vmatprep.subr.bf16.mxu0 0
        %2308 = vmatpush2.bf16.msra.mxu0 0
        %2309 = vmatprep.subr.bf16.mxu0 0
        %2310 = vmatpush2.bf16.msra.mxu0 0
        %2311 = vmatprep.mubr.bf16.mxu0 0
        %2312 = vmatmul.mubr.bf16.gmra.mxu0 %v1568
        %v2313 = vpop.f32.mrf.mxu0
        %v2314 = vadd.f32 %v2262, %v2313
        %v2315 = vpop.f32.mrf.mxu0
        %v2316 = vpop.f32.mrf.mxu0
        %v2317 = vpop.f32.mrf.mxu0
        %2318 = vdwg.mxu0
        %v2319 = vmax.f32 %v2314, 0.0
        %s2320 = scalar_lea.vmem %s9, 32
        %v2321 = vld [vmem:[%s2320] sm:$0xf]
        %v2322 = vld [vmem:[%s2320 + $0x4] sm:$0xf]
        %v2323 = vld [vmem:[%s2320 + $0x8] sm:$0xf]
        %v2324 = vld [vmem:[%s2320 + $0xc] sm:$0xf]
        %v2325 = vld [vmem:[%s2320 + $0x10] sm:$0xf]
        %v2326 = vld [vmem:[%s2320 + $0x14] sm:$0xf]
        %v2327 = vld [vmem:[%s2320 + $0x18] sm:$0xf]
        %v2328 = vld [vmem:[%s2320 + $0x1c] sm:$0xf]
        %v2329 = vpack.c.bf16 %v2319, %v2319
        %v2338 = vunpack.c.l.b16 %v2321
        %v2339 = vunpack.c.l.b16 %v2322
        %v2340 = vunpack.c.l.b16 %v2323
        %v2341 = vunpack.c.l.b16 %v2324
        %v2342 = vunpack.c.l.b16 %v2325
        %v2343 = vunpack.c.l.b16 %v2326
        %v2344 = vunpack.c.l.b16 %v2327
        %v2345 = vunpack.c.l.b16 %v2328
        %v2346 = vpack.c.b16 %v2339, %v2338
        %v2347 = vpack.c.b16 %v2341, %v2340
        %v2348 = vpack.c.b16 %v2343, %v2342
        %v2349 = vpack.c.b16 %v2345, %v2344
        %v2355 = vsel %vm1481, %v2329, 0
        %2357 = vmatprep.subr.bf16.mxu0 0
        %2358 = vmatpush1.bf16.msra.mxu0 0
        %2359 = vmatprep.subr.bf16.mxu0 0
        %2360 = vmatpush1.bf16.msra.mxu0 0
        %2361 = vmatprep.subr.bf16.mxu0 0
        %2362 = vmatpush1.bf16.msra.mxu0 0
        %2363 = vmatprep.subr.bf16.mxu0 0
        %2364 = vmatpush1.bf16.msra.mxu0 0
        %2365 = vmatprep.subr.bf16.mxu0 0
        %2366 = vmatpush1.bf16.msra.mxu0 %v2349
        %2367 = vmatprep.subr.bf16.mxu0 0
        %2368 = vmatpush1.bf16.msra.mxu0 %v2348
        %2369 = vmatprep.subr.bf16.mxu0 0
        %2370 = vmatpush1.bf16.msra.mxu0 %v2347
        %2371 = vmatprep.subr.bf16.mxu0 0
        %2372 = vmatpush1.bf16.msra.mxu0 %v2346
        %2373 = vmatprep.subr.bf16.mxu0 0
        %2374 = vmatpush2.bf16.msra.mxu0 0
        %2375 = vmatprep.subr.bf16.mxu0 0
        %2376 = vmatpush2.bf16.msra.mxu0 0
        %2377 = vmatprep.subr.bf16.mxu0 0
        %2378 = vmatpush2.bf16.msra.mxu0 0
        %2379 = vmatprep.subr.bf16.mxu0 0
        %2380 = vmatpush2.bf16.msra.mxu0 0
        %2381 = vmatprep.subr.bf16.mxu0 0
        %2382 = vmatpush2.bf16.msra.mxu0 0
        %2383 = vmatprep.subr.bf16.mxu0 0
        %2384 = vmatpush2.bf16.msra.mxu0 0
        %2385 = vmatprep.subr.bf16.mxu0 0
        %2386 = vmatpush2.bf16.msra.mxu0 0
        %2387 = vmatprep.subr.bf16.mxu0 0
        %2388 = vmatpush2.bf16.msra.mxu0 0
        %2389 = vmatprep.mubr.bf16.mxu0 0
        %2390 = vmatmul.mubr.bf16.gmra.mxu0 %v2355
        %v2391 = vpop.f32.mrf.mxu0
        %v2392 = vadd.f32 0.0, %v2391
        %v2393 = vpop.f32.mrf.mxu0
        %v2394 = vpop.f32.mrf.mxu0
        %v2395 = vpop.f32.mrf.mxu0
        %2396 = vdwg.mxu0
        %v2397 = vsel %vm557, %v2392, 0.0
        %2398 = vadd.xlane.f32.xlu0 %v2397
        %v2399 = vpop.xlane.xlu0 %2398
        %v2400 = vmul.f32 %v2399, %v1310
        %v2401 = vsub.f32 %v2392, %v2400
        %v2402 = vmul.f32 %v2401, %v2401
        %v2403 = vsel %vm557, %v2402, 0.0
        %2404 = vadd.xlane.f32.xlu0 %v2403
        %v2405 = vpop.xlane.xlu0 %2404
        %v2406 = vmul.f32 %v2405, %v1310
        %v2407 = vadd.f32 %v2406, 1e-05
        %v2408 = vrsqrt.pop %v2407
        %v2409 = vmul.f32 %v2401, %v2408
        %v2410 = vlaneseq
        %v2411 = vshrl.u32 %v2410, 7
        %v2412 = vsub.s32 2, %v2411
        %v2413 = vrot.slane %v2177, %v2412
        %v2414 = vmul.f32 %v2409, %v2413
        %v2415 = vlaneseq
        %v2416 = vshrl.u32 %v2415, 7
        %v2417 = vsub.s32 3, %v2416
        %v2418 = vrot.slane %v2177, %v2417
        %v2419 = vadd.f32 %v2414, %v2418
        %v2420 = vadd.f32 %v1548, %v2419
        %2421 = vst.msk [vmem:[%s525] sm:$0xff] %vm557, %v2420
        %s2422 = sand.u32 %s285, 1
        %s2423 = scalar_lea.sflag [#allocation4], %s2422
        %s2424 = sand.u32 %s285, 1
        %s2425 = smul.addr %s2424, 16
        %s2426 = scalar_lea.vmem [#allocation13], %s2425
        %s2427 = sand.u32 %s311, 1
        %s2428 = scalar_lea.sflag [#allocation15], %s2427
        %s2429 = sand.u32 %s311, 1
        %s2430 = smul.addr %s2429, 8
        %s2431 = scalar_lea.vmem [#allocation14], %s2430
        // Predicated region
        $region89: #{tpu_custom_call.1} parent=63 // pred_check
          %p2432 = pneg %p295
        $region90: #{tpu_custom_call.1} parent=63 // pred_check_branch
          %2434 = sbr.rel (%p2432) target = $region92
        $region91: #{tpu_custom_call.1} parent=63 // pred_region
          %s2436 = ssub.s32 256, 256
          %2437 = vsyncadd %s2423, %s2436
          %s2438 = smul.addr %s36, 2
          %s2439 = smul.addr %s2438, 128
          %s2440 = scalar_lea.hbm %s11, %s2439
          %s2441 = sshll.u32 %s2426, 4
          %s2442 = int_to_ptr.vmem [resolvable:$true] %s2441
          %2447 = dma.vmem_to_hbm [thread:$0]  %s2442, 256, %s2440, %s2423, 128, 128, 8
        $region92: #{tpu_custom_call.1} parent=63 // pred_fallthru
          _
        // Predicated region
        $region93: #{tpu_custom_call.1} parent=63 // pred_check
          %p2448 = pneg %p321
        $region94: #{tpu_custom_call.1} parent=63 // pred_check_branch
          %2450 = sbr.rel (%p2448) target = $region96
        $region95: #{tpu_custom_call.1} parent=63 // pred_region
          %s2452 = ssub.s32 128, 128
          %2453 = vsyncadd %s2428, %s2452
          %s2454 = smul.addr %s36, 128
          %s2455 = scalar_lea.hbm %s12, %s2454
          %s2457 = sshll.u32 %s2431, 4
          %s2458 = int_to_ptr.vmem [resolvable:$true] %s2457
          %2460 = dma.vmem_to_hbm [thread:$0]  %s2458, 128, %s2455, %s2428
        $region96: #{tpu_custom_call.1} parent=63 // pred_fallthru
          _
      $region64: #{tpu_custom_call.1} parent=5 // pred_fallthru
        _
      %p2461 = scmp.le.s32.totalorder 2, %s31
      // Predicated region
      $region97: #{tpu_custom_call.1} parent=5 // pred_check
        %p2462 = pneg %p2461
      $region98: #{tpu_custom_call.1} parent=5 // pred_check_branch
        %2464 = sbr.rel (%p2462) target = $region100
      $region99: #{tpu_custom_call.1} parent=5 // pred_region
        %s2465 = ssub.s32 %s31, 2
        // Predicated region
        $region101: #{tpu_custom_call.1} parent=99 // pred_check
          %p2466 = pneg %p301
        $region102: #{tpu_custom_call.1} parent=99 // pred_check_branch
          %2468 = sbr.rel (%p2466) target = $region104
        $region103: #{tpu_custom_call.1} parent=99 // pred_region
          %s2469 = sand.u32 %s286, 1
          %s2470 = scalar_lea.sflag [#allocation4], %s2469
          %s2471 = sand.u32 %s286, 1
          %s2472 = smul.addr %s2471, 16
          %s2473 = scalar_lea.vmem [#allocation13], %s2472
          %2474 = dma.done %s2470, 256
        $region104: #{tpu_custom_call.1} parent=99 // pred_fallthru
          _
        // Predicated region
        $region105: #{tpu_custom_call.1} parent=99 // pred_check
          %p2475 = pneg %p327
        $region106: #{tpu_custom_call.1} parent=99 // pred_check_branch
          %2477 = sbr.rel (%p2475) target = $region108
        $region107: #{tpu_custom_call.1} parent=99 // pred_region
          %s2478 = sand.u32 %s312, 1
          %s2479 = scalar_lea.sflag [#allocation15], %s2478
          %s2480 = sand.u32 %s312, 1
          %s2481 = smul.addr %s2480, 8
          %s2482 = scalar_lea.vmem [#allocation14], %s2481
          %2483 = dma.done %s2479, 128
        $region108: #{tpu_custom_call.1} parent=99 // pred_fallthru
          _
      $region100: #{tpu_custom_call.1} parent=5 // pred_fallthru
        _
    $region6: #{tpu_custom_call.1} parent=1 // loop_footer
      %s35 = sadd.s32 1, %s31
    $region7: #{tpu_custom_call.1} parent=1 // loop_footer_branch
      %30 = sbr.rel target = $region3
    $region8: #{tpu_custom_call.1} parent=1 // loop_exit
      _
    %2484 = vsyncpa [#allocation3], 1
    %s2485 = scalar_lea.sflag [#allocation3], 1
    %2486 = vsyncpa %s2485, 1
    %2487 = vsyncpa [#allocation6], 1
    %2488 = vsyncpa [#allocation9], 1
    %2489 = vsyncpa [#allocation12], 1
    %2490 = vsyncpa [#allocation4], 1
    %s2491 = scalar_lea.sflag [#allocation4], 1
    %2492 = vsyncpa %s2491, 1
    %2493 = vsyncpa [#allocation15], 1
    %s2494 = scalar_lea.sflag [#allocation15], 1
    %2495 = vsyncpa %s2494, 1

</llo_original>
